<compile_context>
chip_gen: v7x
topology: tpu7x:2x2x1
jax: 0.10.0
libtpu: 0.0.40
codegen_flags: <defaults>
</compile_context>

<pallas_src>
import numpy as np

import jax
import jax.numpy as jnp
from jax.experimental import pallas as pl
from jax.experimental.pallas import tpu as pltpu


# ----------------------------------------------------------------------------
# Fused forward kernel (one image per grid step)
# ----------------------------------------------------------------------------
def _net_kernel(x_ref, a1_ref, b1_ref, r1_ref, c1_ref,
                a2_ref, b2_ref, r2_ref, c2_ref,
                g_ref, fb1_ref, w2_ref, fb2_ref, w3_ref, fb3_ref,
                o_ref):
    def mm(a, b):
        return jnp.dot(a, b, preferred_element_type=jnp.float32)

    x = x_ref[0]                                            # (32, 32)

    # ---- conv1 (1->6, 3x3, valid) + bias + ReLU -> Y1 (6*30, 30) ----
    # rows = out_channel*30 + out_row, cols = out_col
    y1 = mm(a1_ref[0], x[:, 0:30])
    y1 = y1 + mm(a1_ref[1], x[:, 1:31])
    y1 = y1 + mm(a1_ref[2], x[:, 2:32])
    y1 = jnp.maximum(y1 + b1_ref[...], 0.0)

    # ---- 2x2 max-pool -> P1 (6*15, 15) ----
    u1 = jnp.maximum(mm(r1_ref[0], y1), mm(r1_ref[1], y1))  # row pairs
    p1 = jnp.maximum(mm(u1, c1_ref[0]), mm(u1, c1_ref[1]))  # col pairs

    # ---- conv2 (6->16, 3x3, valid) + bias + ReLU -> Y2 (16*13, 13) ----
    y2 = mm(a2_ref[0], p1[:, 0:13])
    y2 = y2 + mm(a2_ref[1], p1[:, 1:14])
    y2 = y2 + mm(a2_ref[2], p1[:, 2:15])
    y2 = jnp.maximum(y2 + b2_ref[...], 0.0)

    # ---- 2x2 max-pool (floor mode: 13 -> 6) -> P2 (16*6, 6) ----
    u2 = jnp.maximum(mm(r2_ref[0], y2), mm(r2_ref[1], y2))
    p2 = jnp.maximum(mm(u2, c2_ref[0]), mm(u2, c2_ref[1]))

    # ---- fc1 (576 -> 120, padded to 128) + ReLU ----
    # (C,H,W) flatten is folded into G: sum_j sum_r P2[r, j] * G[j, r, n]
    s = p2[:, 0:1] * g_ref[0]
    for j in range(1, 6):
        s = s + p2[:, j:j + 1] * g_ref[j]                   # (96, 128)
    ones8 = jnp.ones((8, 96), dtype=jnp.float32)
    h = jnp.maximum(mm(ones8, s) + fb1_ref[...], 0.0)       # (8, 128), rows equal

    # ---- fc2 (120 -> 84, padded to 128) + ReLU ----
    h = jnp.maximum(mm(h, w2_ref[...]) + fb2_ref[...], 0.0)  # (8, 128)

    # ---- fc3 (84 -> 10, padded to 128) ----
    out = mm(h, w3_ref[...]) + fb3_ref[...]                  # (8, 128)
    o_ref[0] = out[0:1, :]                                   # lane-dense store


def net_forward(x, packed):
    """x: (B, 1, 32, 32) f32.  Returns logits (B, 10) f32."""
    B = x.shape[0]
    x3 = x.reshape(B, 32, 32)

    def w3d(shape):
        return pl.BlockSpec(shape, lambda b: (0, 0, 0))

    def w2d(shape):
        return pl.BlockSpec(shape, lambda b: (0, 0))

    out = pl.pallas_call(
        _net_kernel,
        out_shape=jax.ShapeDtypeStruct((B, 1, 128), jnp.float32),
        grid=(B,),
        in_specs=[
            pl.BlockSpec((1, 32, 32), lambda b: (b, 0, 0)),   # image
            w3d((3, 180, 32)),   # A1  (banded conv1 weights, one per kj)
            w2d((180, 1)),       # conv1 bias, repeated per output row
            w3d((2, 90, 180)),   # R1  row-pair selectors for pool1
            w3d((2, 30, 15)),    # C1  col-pair selectors for pool1
            w3d((3, 208, 90)),   # A2  (banded conv2 weights, one per kj)
            w2d((208, 1)),       # conv2 bias, repeated per output row
            w3d((2, 96, 208)),   # R2  row-pair selectors for pool2
            w3d((2, 13, 6)),     # C2  col-pair selectors for pool2
            w3d((6, 96, 128)),   # G   fc1 weights, flatten-order folded in
            w2d((1, 128)),       # fc1 bias (padded)
            w2d((128, 128)),     # fc2 weights (padded)
            w2d((1, 128)),       # fc2 bias (padded)
            w2d((128, 128)),     # fc3 weights (padded)
            w2d((1, 128)),       # fc3 bias (padded)
        ],
        out_specs=pl.BlockSpec((1, 1, 128), lambda b: (b, 0, 0)),
        compiler_params=pltpu.CompilerParams(
            dimension_semantics=("parallel",)),
    )(x3, *packed)
    return out[:, 0, :10]


# ----------------------------------------------------------------------------
# Parameters (PyTorch layout) and one-time packing into kernel form
# ----------------------------------------------------------------------------
def init_params(key):
    def uniform(k, shape, fan_in):
        bound = 1.0 / jnp.sqrt(jnp.float32(fan_in))
        return jax.random.uniform(k, shape, jnp.float32, -bound, bound)

    keys = jax.random.split(key, 10)
    return {
        "conv1_w": uniform(keys[0], (6, 1, 3, 3), 9),
        "conv1_b": uniform(keys[1], (6,), 9),
        "conv2_w": uniform(keys[2], (16, 6, 3, 3), 54),
        "conv2_b": uniform(keys[3], (16,), 54),
        "fc1_w": uniform(keys[4], (120, 16 * 6 * 6), 16 * 6 * 6),
        "fc1_b": uniform(keys[5], (120,), 16 * 6 * 6),
        "fc2_w": uniform(keys[6], (84, 120), 120),
        "fc2_b": uniform(keys[7], (84,), 120),
        "fc3_w": uniform(keys[8], (10, 84), 84),
        "fc3_b": uniform(keys[9], (10,), 84),
    }


def pack_params(p):
    """One-time repack of PyTorch-layout params into kernel-ready matrices."""
    w1 = np.asarray(p["conv1_w"]); b1 = np.asarray(p["conv1_b"])
    w2 = np.asarray(p["conv2_w"]); b2 = np.asarray(p["conv2_b"])
    fw1 = np.asarray(p["fc1_w"]); fb1 = np.asarray(p["fc1_b"])
    fw2 = np.asarray(p["fc2_w"]); fb2 = np.asarray(p["fc2_b"])
    fw3 = np.asarray(p["fc3_w"]); fb3 = np.asarray(p["fc3_b"])

    # conv1: A1[kj][o*30+y, y+ki] = w1[o, 0, ki, kj]
    A1 = np.zeros((3, 180, 32), np.float32)
    for o in range(6):
        for y in range(30):
            for ki in range(3):
                for kj in range(3):
                    A1[kj, o * 30 + y, y + ki] = w1[o, 0, ki, kj]
    b1rep = np.repeat(b1, 30).reshape(180, 1).astype(np.float32)

    # pool1 selectors (30x30 per channel -> 15x15)
    R1 = np.zeros((2, 90, 180), np.float32)
    for o in range(6):
        for i in range(15):
            R1[0, o * 15 + i, o * 30 + 2 * i] = 1.0
            R1[1, o * 15 + i, o * 30 + 2 * i + 1] = 1.0
    C1 = np.zeros((2, 30, 15), np.float32)
    for j in range(15):
        C1[0, 2 * j, j] = 1.0
        C1[1, 2 * j + 1, j] = 1.0

    # conv2: A2[kj][o*13+y, c*15+y+ki] = w2[o, c, ki, kj]
    A2 = np.zeros((3, 208, 90), np.float32)
    for o in range(16):
        for y in range(13):
            for c in range(6):
                for ki in range(3):
                    for kj in range(3):
                        A2[kj, o * 13 + y, c * 15 + y + ki] = w2[o, c, ki, kj]
    b2rep = np.repeat(b2, 13).reshape(208, 1).astype(np.float32)

    # pool2 selectors (13x13 per channel -> 6x6, floor mode drops row/col 12)
    R2 = np.zeros((2, 96, 208), np.float32)
    for o in range(16):
        for i in range(6):
            R2[0, o * 6 + i, o * 13 + 2 * i] = 1.0
            R2[1, o * 6 + i, o * 13 + 2 * i + 1] = 1.0
    C2 = np.zeros((2, 13, 6), np.float32)
    for j in range(6):
        C2[0, 2 * j, j] = 1.0
        C2[1, 2 * j + 1, j] = 1.0

    # fc1: G[j, o*6+i, n] = fc1_w[n, o*36 + i*6 + j]  (PyTorch (C,H,W) flatten)
    G = np.zeros((6, 96, 128), np.float32)
    for o in range(16):
        for i in range(6):
            for j in range(6):
                G[j, o * 6 + i, :120] = fw1[:, o * 36 + i * 6 + j]
    fb1p = np.zeros((1, 128), np.float32); fb1p[0, :120] = fb1

    W2p = np.zeros((128, 128), np.float32); W2p[:120, :84] = fw2.T
    fb2p = np.zeros((1, 128), np.float32); fb2p[0, :84] = fb2
    W3p = np.zeros((128, 128), np.float32); W3p[:84, :10] = fw3.T
    fb3p = np.zeros((1, 128), np.float32); fb3p[0, :10] = fb3

    return tuple(jnp.asarray(a) for a in (
        A1, b1rep, R1, C1, A2, b2rep, R2, C2,
        G, fb1p, W2p, fb2p, W3p, fb3p))


# ----------------------------------------------------------------------------
# Pure-JAX reference (mirrors the PyTorch module exactly)
# ----------------------------------------------------------------------------
def net_reference(x, params):
    hi = jax.lax.Precision.HIGHEST
    dn = ("NCHW", "OIHW", "NCHW")

    def conv(v, w, b):
        v = jax.lax.conv_general_dilated(v, w, (1, 1), "VALID",
                                         dimension_numbers=dn, precision=hi)
        return jax.nn.relu(v + b.reshape(1, -1, 1, 1))

    def pool(v):
        _, _, H, W = v.shape
        v = v[:, :, : (H // 2) * 2, : (W // 2) * 2]
        return jnp.maximum(
            jnp.maximum(v[:, :, 0::2, 0::2], v[:, :, 0::2, 1::2]),
            jnp.maximum(v[:, :, 1::2, 0::2], v[:, :, 1::2, 1::2]))

    y = pool(conv(x, params["conv1_w"], params["conv1_b"]))
    y = pool(conv(y, params["conv2_w"], params["conv2_b"]))
    y = y.reshape(y.shape[0], -1)                     # (B, 16*6*6), (C,H,W) order
    y = jax.nn.relu(jnp.dot(y, params["fc1_w"].T, precision=hi) + params["fc1_b"])
    y = jax.nn.relu(jnp.dot(y, params["fc2_w"].T, precision=hi) + params["fc2_b"])
    return jnp.dot(y, params["fc3_w"].T, precision=hi) + params["fc3_b"]


if __name__ == "__main__":
    key = jax.random.PRNGKey(0)
    k_param, k_x = jax.random.split(key)
    params = init_params(k_param)
    packed = pack_params(params)

    # LeNet forward implies a 1x32x32 input; use a small batch of 2.
    x = jax.random.normal(k_x, (2, 1, 32, 32), dtype=jnp.float32)

    fwd = jax.jit(net_forward)
    out = jax.block_until_ready(fwd(x, packed))
    assert out.shape == (2, 10) and out.dtype == jnp.float32

    ref = jax.block_until_ready(net_reference(x, params))
    err = float(jnp.max(jnp.abs(out - ref)))
    assert err < 2e-3, f"kernel/reference mismatch: max abs err {err}"

    print("KERNEL_OK")
</pallas_src>

<mosaic_0001>
module attributes {stable_mosaic.version = 11 : i64} {
  func.func @_net_kernel(%arg0: i32, %arg1: memref<1x32x32xf32, #tpu.memory_space<vmem>>, %arg2: memref<3x180x32xf32, #tpu.memory_space<vmem>>, %arg3: memref<180x1xf32, #tpu.memory_space<vmem>>, %arg4: memref<2x90x180xf32, #tpu.memory_space<vmem>>, %arg5: memref<2x30x15xf32, #tpu.memory_space<vmem>>, %arg6: memref<3x208x90xf32, #tpu.memory_space<vmem>>, %arg7: memref<208x1xf32, #tpu.memory_space<vmem>>, %arg8: memref<2x96x208xf32, #tpu.memory_space<vmem>>, %arg9: memref<2x13x6xf32, #tpu.memory_space<vmem>>, %arg10: memref<6x96x128xf32, #tpu.memory_space<vmem>>, %arg11: memref<1x128xf32, #tpu.memory_space<vmem>>, %arg12: memref<128x128xf32, #tpu.memory_space<vmem>>, %arg13: memref<1x128xf32, #tpu.memory_space<vmem>>, %arg14: memref<128x128xf32, #tpu.memory_space<vmem>>, %arg15: memref<1x128xf32, #tpu.memory_space<vmem>>, %arg16: memref<1x1x128xf32, #tpu.memory_space<vmem>>) attributes {dimension_semantics = [#tpu.dimension_semantics<parallel>], iteration_bounds = array<i64: 2>, scalar_prefetch = 0 : i64, scratch_operands = 0 : i64, tpu.core_type = #tpu.core_type<tc>, window_params = [{transform_indices = @transform_0, window_bounds = array<i64: 1, 32, 32>}, {pipeline_mode = #tpu.pipeline_mode<synchronous>, transform_indices = @transform_1, window_bounds = array<i64: 3, 180, 32>}, {pipeline_mode = #tpu.pipeline_mode<synchronous>, transform_indices = @transform_2, window_bounds = array<i64: 180, 1>}, {pipeline_mode = #tpu.pipeline_mode<synchronous>, transform_indices = @transform_3, window_bounds = array<i64: 2, 90, 180>}, {pipeline_mode = #tpu.pipeline_mode<synchronous>, transform_indices = @transform_4, window_bounds = array<i64: 2, 30, 15>}, {pipeline_mode = #tpu.pipeline_mode<synchronous>, transform_indices = @transform_5, window_bounds = array<i64: 3, 208, 90>}, {pipeline_mode = #tpu.pipeline_mode<synchronous>, transform_indices = @transform_6, window_bounds = array<i64: 208, 1>}, {pipeline_mode = #tpu.pipeline_mode<synchronous>, transform_indices = @transform_7, window_bounds = array<i64: 2, 96, 208>}, {pipeline_mode = #tpu.pipeline_mode<synchronous>, transform_indices = @transform_8, window_bounds = array<i64: 2, 13, 6>}, {pipeline_mode = #tpu.pipeline_mode<synchronous>, transform_indices = @transform_9, window_bounds = array<i64: 6, 96, 128>}, {pipeline_mode = #tpu.pipeline_mode<synchronous>, transform_indices = @transform_10, window_bounds = array<i64: 1, 128>}, {pipeline_mode = #tpu.pipeline_mode<synchronous>, transform_indices = @transform_11, window_bounds = array<i64: 128, 128>}, {pipeline_mode = #tpu.pipeline_mode<synchronous>, transform_indices = @transform_12, window_bounds = array<i64: 1, 128>}, {pipeline_mode = #tpu.pipeline_mode<synchronous>, transform_indices = @transform_13, window_bounds = array<i64: 128, 128>}, {pipeline_mode = #tpu.pipeline_mode<synchronous>, transform_indices = @transform_14, window_bounds = array<i64: 1, 128>}, {transform_indices = @transform_15, window_bounds = array<i64: 1, 1, 128>}]} {
    %c0 = arith.constant 0 : index
    %c0_0 = arith.constant 0 : index
    %c0_1 = arith.constant 0 : index
    %0 = vector.load %arg1[%c0, %c0_0, %c0_1] : memref<1x32x32xf32, #tpu.memory_space<vmem>>, vector<1x32x32xf32>
    %1 = vector.shape_cast %0 : vector<1x32x32xf32> to vector<32x32xf32>
    %c0_2 = arith.constant 0 : index
    %c0_3 = arith.constant 0 : index
    %c0_4 = arith.constant 0 : index
    %2 = vector.load %arg2[%c0_2, %c0_3, %c0_4] : memref<3x180x32xf32, #tpu.memory_space<vmem>>, vector<1x180x32xf32>
    %3 = vector.shape_cast %2 : vector<1x180x32xf32> to vector<180x32xf32>
    %4 = vector.extract_strided_slice %1 {offsets = [0, 0], sizes = [32, 30], strides = [1, 1]} : vector<32x32xf32> to vector<32x30xf32>
    %cst = arith.constant dense<0.000000e+00> : vector<180x30xf32>
    %5 = tpu.matmul %3, %4, %cst {dimension_numbers = #tpu.dot_dimension_numbers<[1], [0], [0], [1], [0, 0, 1, 1], [], []>} : vector<180x32xf32>, vector<32x30xf32>, vector<180x30xf32> -> vector<180x30xf32>
    %c1 = arith.constant 1 : index
    %c0_5 = arith.constant 0 : index
    %c0_6 = arith.constant 0 : index
    %6 = vector.load %arg2[%c1, %c0_5, %c0_6] : memref<3x180x32xf32, #tpu.memory_space<vmem>>, vector<1x180x32xf32>
    %7 = vector.shape_cast %6 : vector<1x180x32xf32> to vector<180x32xf32>
    %8 = vector.extract_strided_slice %1 {offsets = [0, 1], sizes = [32, 30], strides = [1, 1]} : vector<32x32xf32> to vector<32x30xf32>
    %cst_7 = arith.constant dense<0.000000e+00> : vector<180x30xf32>
    %9 = tpu.matmul %7, %8, %cst_7 {dimension_numbers = #tpu.dot_dimension_numbers<[1], [0], [0], [1], [0, 0, 1, 1], [], []>} : vector<180x32xf32>, vector<32x30xf32>, vector<180x30xf32> -> vector<180x30xf32>
    %10 = arith.addf %5, %9 : vector<180x30xf32>
    %c2 = arith.constant 2 : index
    %c0_8 = arith.constant 0 : index
    %c0_9 = arith.constant 0 : index
    %11 = vector.load %arg2[%c2, %c0_8, %c0_9] : memref<3x180x32xf32, #tpu.memory_space<vmem>>, vector<1x180x32xf32>
    %12 = vector.shape_cast %11 : vector<1x180x32xf32> to vector<180x32xf32>
    %13 = vector.extract_strided_slice %1 {offsets = [0, 2], sizes = [32, 30], strides = [1, 1]} : vector<32x32xf32> to vector<32x30xf32>
    %cst_10 = arith.constant dense<0.000000e+00> : vector<180x30xf32>
    %14 = tpu.matmul %12, %13, %cst_10 {dimension_numbers = #tpu.dot_dimension_numbers<[1], [0], [0], [1], [0, 0, 1, 1], [], []>} : vector<180x32xf32>, vector<32x30xf32>, vector<180x30xf32> -> vector<180x30xf32>
    %15 = arith.addf %10, %14 : vector<180x30xf32>
    %c0_11 = arith.constant 0 : index
    %c0_12 = arith.constant 0 : index
    %16 = vector.load %arg3[%c0_11, %c0_12] : memref<180x1xf32, #tpu.memory_space<vmem>>, vector<180x1xf32>
    %17 = vector.broadcast %16 : vector<180x1xf32> to vector<180x30xf32>
    %18 = arith.addf %15, %17 : vector<180x30xf32>
    %cst_13 = arith.constant 0.000000e+00 : f32
    %19 = vector.broadcast %cst_13 : f32 to vector<180x30xf32>
    %20 = arith.maximumf %18, %19 : vector<180x30xf32>
    %c0_14 = arith.constant 0 : index
    %c0_15 = arith.constant 0 : index
    %c0_16 = arith.constant 0 : index
    %21 = vector.load %arg4[%c0_14, %c0_15, %c0_16] : memref<2x90x180xf32, #tpu.memory_space<vmem>>, vector<1x90x180xf32>
    %22 = vector.shape_cast %21 : vector<1x90x180xf32> to vector<90x180xf32>
    %cst_17 = arith.constant dense<0.000000e+00> : vector<90x30xf32>
    %23 = tpu.matmul %22, %20, %cst_17 {dimension_numbers = #tpu.dot_dimension_numbers<[1], [0], [0], [1], [0, 0, 1, 1], [], []>} : vector<90x180xf32>, vector<180x30xf32>, vector<90x30xf32> -> vector<90x30xf32>
    %c1_18 = arith.constant 1 : index
    %c0_19 = arith.constant 0 : index
    %c0_20 = arith.constant 0 : index
    %24 = vector.load %arg4[%c1_18, %c0_19, %c0_20] : memref<2x90x180xf32, #tpu.memory_space<vmem>>, vector<1x90x180xf32>
    %25 = vector.shape_cast %24 : vector<1x90x180xf32> to vector<90x180xf32>
    %cst_21 = arith.constant dense<0.000000e+00> : vector<90x30xf32>
    %26 = tpu.matmul %25, %20, %cst_21 {dimension_numbers = #tpu.dot_dimension_numbers<[1], [0], [0], [1], [0, 0, 1, 1], [], []>} : vector<90x180xf32>, vector<180x30xf32>, vector<90x30xf32> -> vector<90x30xf32>
    %27 = arith.maximumf %23, %26 : vector<90x30xf32>
    %c0_22 = arith.constant 0 : index
    %c0_23 = arith.constant 0 : index
    %c0_24 = arith.constant 0 : index
    %28 = vector.load %arg5[%c0_22, %c0_23, %c0_24] : memref<2x30x15xf32, #tpu.memory_space<vmem>>, vector<1x30x15xf32>
    %29 = vector.shape_cast %28 : vector<1x30x15xf32> to vector<30x15xf32>
    %cst_25 = arith.constant dense<0.000000e+00> : vector<90x15xf32>
    %30 = tpu.matmul %27, %29, %cst_25 {dimension_numbers = #tpu.dot_dimension_numbers<[1], [0], [0], [1], [0, 0, 1, 1], [], []>} : vector<90x30xf32>, vector<30x15xf32>, vector<90x15xf32> -> vector<90x15xf32>
    %c1_26 = arith.constant 1 : index
    %c0_27 = arith.constant 0 : index
    %c0_28 = arith.constant 0 : index
    %31 = vector.load %arg5[%c1_26, %c0_27, %c0_28] : memref<2x30x15xf32, #tpu.memory_space<vmem>>, vector<1x30x15xf32>
    %32 = vector.shape_cast %31 : vector<1x30x15xf32> to vector<30x15xf32>
    %cst_29 = arith.constant dense<0.000000e+00> : vector<90x15xf32>
    %33 = tpu.matmul %27, %32, %cst_29 {dimension_numbers = #tpu.dot_dimension_numbers<[1], [0], [0], [1], [0, 0, 1, 1], [], []>} : vector<90x30xf32>, vector<30x15xf32>, vector<90x15xf32> -> vector<90x15xf32>
    %34 = arith.maximumf %30, %33 : vector<90x15xf32>
    %c0_30 = arith.constant 0 : index
    %c0_31 = arith.constant 0 : index
    %c0_32 = arith.constant 0 : index
    %35 = vector.load %arg6[%c0_30, %c0_31, %c0_32] : memref<3x208x90xf32, #tpu.memory_space<vmem>>, vector<1x208x90xf32>
    %36 = vector.shape_cast %35 : vector<1x208x90xf32> to vector<208x90xf32>
    %37 = vector.extract_strided_slice %34 {offsets = [0, 0], sizes = [90, 13], strides = [1, 1]} : vector<90x15xf32> to vector<90x13xf32>
    %cst_33 = arith.constant dense<0.000000e+00> : vector<208x13xf32>
    %38 = tpu.matmul %36, %37, %cst_33 {dimension_numbers = #tpu.dot_dimension_numbers<[1], [0], [0], [1], [0, 0, 1, 1], [], []>} : vector<208x90xf32>, vector<90x13xf32>, vector<208x13xf32> -> vector<208x13xf32>
    %c1_34 = arith.constant 1 : index
    %c0_35 = arith.constant 0 : index
    %c0_36 = arith.constant 0 : index
    %39 = vector.load %arg6[%c1_34, %c0_35, %c0_36] : memref<3x208x90xf32, #tpu.memory_space<vmem>>, vector<1x208x90xf32>
    %40 = vector.shape_cast %39 : vector<1x208x90xf32> to vector<208x90xf32>
    %41 = vector.extract_strided_slice %34 {offsets = [0, 1], sizes = [90, 13], strides = [1, 1]} : vector<90x15xf32> to vector<90x13xf32>
    %cst_37 = arith.constant dense<0.000000e+00> : vector<208x13xf32>
    %42 = tpu.matmul %40, %41, %cst_37 {dimension_numbers = #tpu.dot_dimension_numbers<[1], [0], [0], [1], [0, 0, 1, 1], [], []>} : vector<208x90xf32>, vector<90x13xf32>, vector<208x13xf32> -> vector<208x13xf32>
    %43 = arith.addf %38, %42 : vector<208x13xf32>
    %c2_38 = arith.constant 2 : index
    %c0_39 = arith.constant 0 : index
    %c0_40 = arith.constant 0 : index
    %44 = vector.load %arg6[%c2_38, %c0_39, %c0_40] : memref<3x208x90xf32, #tpu.memory_space<vmem>>, vector<1x208x90xf32>
    %45 = vector.shape_cast %44 : vector<1x208x90xf32> to vector<208x90xf32>
    %46 = vector.extract_strided_slice %34 {offsets = [0, 2], sizes = [90, 13], strides = [1, 1]} : vector<90x15xf32> to vector<90x13xf32>
    %cst_41 = arith.constant dense<0.000000e+00> : vector<208x13xf32>
    %47 = tpu.matmul %45, %46, %cst_41 {dimension_numbers = #tpu.dot_dimension_numbers<[1], [0], [0], [1], [0, 0, 1, 1], [], []>} : vector<208x90xf32>, vector<90x13xf32>, vector<208x13xf32> -> vector<208x13xf32>
    %48 = arith.addf %43, %47 : vector<208x13xf32>
    %c0_42 = arith.constant 0 : index
    %c0_43 = arith.constant 0 : index
    %49 = vector.load %arg7[%c0_42, %c0_43] : memref<208x1xf32, #tpu.memory_space<vmem>>, vector<208x1xf32>
    %50 = vector.broadcast %49 : vector<208x1xf32> to vector<208x13xf32>
    %51 = arith.addf %48, %50 : vector<208x13xf32>
    %cst_44 = arith.constant 0.000000e+00 : f32
    %52 = vector.broadcast %cst_44 : f32 to vector<208x13xf32>
    %53 = arith.maximumf %51, %52 : vector<208x13xf32>
    %c0_45 = arith.constant 0 : index
    %c0_46 = arith.constant 0 : index
    %c0_47 = arith.constant 0 : index
    %54 = vector.load %arg8[%c0_45, %c0_46, %c0_47] : memref<2x96x208xf32, #tpu.memory_space<vmem>>, vector<1x96x208xf32>
    %55 = vector.shape_cast %54 : vector<1x96x208xf32> to vector<96x208xf32>
    %cst_48 = arith.constant dense<0.000000e+00> : vector<96x13xf32>
    %56 = tpu.matmul %55, %53, %cst_48 {dimension_numbers = #tpu.dot_dimension_numbers<[1], [0], [0], [1], [0, 0, 1, 1], [], []>} : vector<96x208xf32>, vector<208x13xf32>, vector<96x13xf32> -> vector<96x13xf32>
    %c1_49 = arith.constant 1 : index
    %c0_50 = arith.constant 0 : index
    %c0_51 = arith.constant 0 : index
    %57 = vector.load %arg8[%c1_49, %c0_50, %c0_51] : memref<2x96x208xf32, #tpu.memory_space<vmem>>, vector<1x96x208xf32>
    %58 = vector.shape_cast %57 : vector<1x96x208xf32> to vector<96x208xf32>
    %cst_52 = arith.constant dense<0.000000e+00> : vector<96x13xf32>
    %59 = tpu.matmul %58, %53, %cst_52 {dimension_numbers = #tpu.dot_dimension_numbers<[1], [0], [0], [1], [0, 0, 1, 1], [], []>} : vector<96x208xf32>, vector<208x13xf32>, vector<96x13xf32> -> vector<96x13xf32>
    %60 = arith.maximumf %56, %59 : vector<96x13xf32>
    %c0_53 = arith.constant 0 : index
    %c0_54 = arith.constant 0 : index
    %c0_55 = arith.constant 0 : index
    %61 = vector.load %arg9[%c0_53, %c0_54, %c0_55] : memref<2x13x6xf32, #tpu.memory_space<vmem>>, vector<1x13x6xf32>
    %62 = vector.shape_cast %61 : vector<1x13x6xf32> to vector<13x6xf32>
    %cst_56 = arith.constant dense<0.000000e+00> : vector<96x6xf32>
    %63 = tpu.matmul %60, %62, %cst_56 {dimension_numbers = #tpu.dot_dimension_numbers<[1], [0], [0], [1], [0, 0, 1, 1], [], []>} : vector<96x13xf32>, vector<13x6xf32>, vector<96x6xf32> -> vector<96x6xf32>
    %c1_57 = arith.constant 1 : index
    %c0_58 = arith.constant 0 : index
    %c0_59 = arith.constant 0 : index
    %64 = vector.load %arg9[%c1_57, %c0_58, %c0_59] : memref<2x13x6xf32, #tpu.memory_space<vmem>>, vector<1x13x6xf32>
    %65 = vector.shape_cast %64 : vector<1x13x6xf32> to vector<13x6xf32>
    %cst_60 = arith.constant dense<0.000000e+00> : vector<96x6xf32>
    %66 = tpu.matmul %60, %65, %cst_60 {dimension_numbers = #tpu.dot_dimension_numbers<[1], [0], [0], [1], [0, 0, 1, 1], [], []>} : vector<96x13xf32>, vector<13x6xf32>, vector<96x6xf32> -> vector<96x6xf32>
    %67 = arith.maximumf %63, %66 : vector<96x6xf32>
    %68 = vector.extract_strided_slice %67 {offsets = [0, 0], sizes = [96, 1], strides = [1, 1]} : vector<96x6xf32> to vector<96x1xf32>
    %c0_61 = arith.constant 0 : index
    %c0_62 = arith.constant 0 : index
    %c0_63 = arith.constant 0 : index
    %69 = vector.load %arg10[%c0_61, %c0_62, %c0_63] : memref<6x96x128xf32, #tpu.memory_space<vmem>>, vector<1x96x128xf32>
    %70 = vector.shape_cast %69 : vector<1x96x128xf32> to vector<96x128xf32>
    %71 = vector.broadcast %68 : vector<96x1xf32> to vector<96x128xf32>
    %72 = arith.mulf %71, %70 : vector<96x128xf32>
    %73 = vector.extract_strided_slice %67 {offsets = [0, 1], sizes = [96, 1], strides = [1, 1]} : vector<96x6xf32> to vector<96x1xf32>
    %c1_64 = arith.constant 1 : index
    %c0_65 = arith.constant 0 : index
    %c0_66 = arith.constant 0 : index
    %74 = vector.load %arg10[%c1_64, %c0_65, %c0_66] : memref<6x96x128xf32, #tpu.memory_space<vmem>>, vector<1x96x128xf32>
    %75 = vector.shape_cast %74 : vector<1x96x128xf32> to vector<96x128xf32>
    %76 = vector.broadcast %73 : vector<96x1xf32> to vector<96x128xf32>
    %77 = arith.mulf %76, %75 : vector<96x128xf32>
    %78 = arith.addf %72, %77 : vector<96x128xf32>
    %79 = vector.extract_strided_slice %67 {offsets = [0, 2], sizes = [96, 1], strides = [1, 1]} : vector<96x6xf32> to vector<96x1xf32>
    %c2_67 = arith.constant 2 : index
    %c0_68 = arith.constant 0 : index
    %c0_69 = arith.constant 0 : index
    %80 = vector.load %arg10[%c2_67, %c0_68, %c0_69] : memref<6x96x128xf32, #tpu.memory_space<vmem>>, vector<1x96x128xf32>
    %81 = vector.shape_cast %80 : vector<1x96x128xf32> to vector<96x128xf32>
    %82 = vector.broadcast %79 : vector<96x1xf32> to vector<96x128xf32>
    %83 = arith.mulf %82, %81 : vector<96x128xf32>
    %84 = arith.addf %78, %83 : vector<96x128xf32>
    %85 = vector.extract_strided_slice %67 {offsets = [0, 3], sizes = [96, 1], strides = [1, 1]} : vector<96x6xf32> to vector<96x1xf32>
    %c3 = arith.constant 3 : index
    %c0_70 = arith.constant 0 : index
    %c0_71 = arith.constant 0 : index
    %86 = vector.load %arg10[%c3, %c0_70, %c0_71] : memref<6x96x128xf32, #tpu.memory_space<vmem>>, vector<1x96x128xf32>
    %87 = vector.shape_cast %86 : vector<1x96x128xf32> to vector<96x128xf32>
    %88 = vector.broadcast %85 : vector<96x1xf32> to vector<96x128xf32>
    %89 = arith.mulf %88, %87 : vector<96x128xf32>
    %90 = arith.addf %84, %89 : vector<96x128xf32>
    %91 = vector.extract_strided_slice %67 {offsets = [0, 4], sizes = [96, 1], strides = [1, 1]} : vector<96x6xf32> to vector<96x1xf32>
    %c4 = arith.constant 4 : index
    %c0_72 = arith.constant 0 : index
    %c0_73 = arith.constant 0 : index
    %92 = vector.load %arg10[%c4, %c0_72, %c0_73] : memref<6x96x128xf32, #tpu.memory_space<vmem>>, vector<1x96x128xf32>
    %93 = vector.shape_cast %92 : vector<1x96x128xf32> to vector<96x128xf32>
    %94 = vector.broadcast %91 : vector<96x1xf32> to vector<96x128xf32>
    %95 = arith.mulf %94, %93 : vector<96x128xf32>
    %96 = arith.addf %90, %95 : vector<96x128xf32>
    %97 = vector.extract_strided_slice %67 {offsets = [0, 5], sizes = [96, 1], strides = [1, 1]} : vector<96x6xf32> to vector<96x1xf32>
    %c5 = arith.constant 5 : index
    %c0_74 = arith.constant 0 : index
    %c0_75 = arith.constant 0 : index
    %98 = vector.load %arg10[%c5, %c0_74, %c0_75] : memref<6x96x128xf32, #tpu.memory_space<vmem>>, vector<1x96x128xf32>
    %99 = vector.shape_cast %98 : vector<1x96x128xf32> to vector<96x128xf32>
    %100 = vector.broadcast %97 : vector<96x1xf32> to vector<96x128xf32>
    %101 = arith.mulf %100, %99 : vector<96x128xf32>
    %102 = arith.addf %96, %101 : vector<96x128xf32>
    %cst_76 = arith.constant 1.000000e+00 : f32
    %103 = vector.broadcast %cst_76 : f32 to vector<8x96xf32>
    %cst_77 = arith.constant dense<0.000000e+00> : vector<8x128xf32>
    %104 = tpu.matmul %103, %102, %cst_77 {dimension_numbers = #tpu.dot_dimension_numbers<[1], [0], [0], [1], [0, 0, 1, 1], [], []>} : vector<8x96xf32>, vector<96x128xf32>, vector<8x128xf32> -> vector<8x128xf32>
    %c0_78 = arith.constant 0 : index
    %c0_79 = arith.constant 0 : index
    %105 = vector.load %arg11[%c0_78, %c0_79] : memref<1x128xf32, #tpu.memory_space<vmem>>, vector<1x128xf32>
    %106 = vector.broadcast %105 : vector<1x128xf32> to vector<8x128xf32>
    %107 = arith.addf %104, %106 : vector<8x128xf32>
    %cst_80 = arith.constant 0.000000e+00 : f32
    %108 = vector.broadcast %cst_80 : f32 to vector<8x128xf32>
    %109 = arith.maximumf %107, %108 : vector<8x128xf32>
    %c0_81 = arith.constant 0 : index
    %c0_82 = arith.constant 0 : index
    %110 = vector.load %arg12[%c0_81, %c0_82] : memref<128x128xf32, #tpu.memory_space<vmem>>, vector<128x128xf32>
    %cst_83 = arith.constant dense<0.000000e+00> : vector<8x128xf32>
    %111 = tpu.matmul %109, %110, %cst_83 {dimension_numbers = #tpu.dot_dimension_numbers<[1], [0], [0], [1], [0, 0, 1, 1], [], []>} : vector<8x128xf32>, vector<128x128xf32>, vector<8x128xf32> -> vector<8x128xf32>
    %c0_84 = arith.constant 0 : index
    %c0_85 = arith.constant 0 : index
    %112 = vector.load %arg13[%c0_84, %c0_85] : memref<1x128xf32, #tpu.memory_space<vmem>>, vector<1x128xf32>
    %113 = vector.broadcast %112 : vector<1x128xf32> to vector<8x128xf32>
    %114 = arith.addf %111, %113 : vector<8x128xf32>
    %cst_86 = arith.constant 0.000000e+00 : f32
    %115 = vector.broadcast %cst_86 : f32 to vector<8x128xf32>
    %116 = arith.maximumf %114, %115 : vector<8x128xf32>
    %c0_87 = arith.constant 0 : index
    %c0_88 = arith.constant 0 : index
    %117 = vector.load %arg14[%c0_87, %c0_88] : memref<128x128xf32, #tpu.memory_space<vmem>>, vector<128x128xf32>
    %cst_89 = arith.constant dense<0.000000e+00> : vector<8x128xf32>
    %118 = tpu.matmul %116, %117, %cst_89 {dimension_numbers = #tpu.dot_dimension_numbers<[1], [0], [0], [1], [0, 0, 1, 1], [], []>} : vector<8x128xf32>, vector<128x128xf32>, vector<8x128xf32> -> vector<8x128xf32>
    %c0_90 = arith.constant 0 : index
    %c0_91 = arith.constant 0 : index
    %119 = vector.load %arg15[%c0_90, %c0_91] : memref<1x128xf32, #tpu.memory_space<vmem>>, vector<1x128xf32>
    %120 = vector.broadcast %119 : vector<1x128xf32> to vector<8x128xf32>
    %121 = arith.addf %118, %120 : vector<8x128xf32>
    %122 = vector.extract_strided_slice %121 {offsets = [0, 0], sizes = [1, 128], strides = [1, 1]} : vector<8x128xf32> to vector<1x128xf32>
    %c0_92 = arith.constant 0 : index
    %c0_93 = arith.constant 0 : index
    %c0_94 = arith.constant 0 : index
    %123 = vector.load %arg16[%c0_92, %c0_93, %c0_94] : memref<1x1x128xf32, #tpu.memory_space<vmem>>, vector<1x1x128xf32>
    %124 = vector.shape_cast %123 : vector<1x1x128xf32> to vector<1x128xf32>
    %125 = vector.shape_cast %122 : vector<1x128xf32> to vector<1x1x128xf32>
    tpu.vector_store %arg16[%c0_92, %c0_93, %c0_94], %125 {strides = array<i32>} : memref<1x1x128xf32, #tpu.memory_space<vmem>>, vector<1x1x128xf32>,
    return
  }
  func.func @transform_0(%arg0: i32) -> (i32, i32, i32) {
    %c0_i32 = arith.constant 0 : i32
    %c0_i32_0 = arith.constant 0 : i32
    %c0_i32_1 = arith.constant 0 : i32
    return %arg0, %c0_i32, %c0_i32_0 : i32, i32, i32
  }
  func.func @transform_1(%arg0: i32) -> (i32, i32, i32) {
    %c0_i32 = arith.constant 0 : i32
    %c0_i32_0 = arith.constant 0 : i32
    %c0_i32_1 = arith.constant 0 : i32
    %c0_i32_2 = arith.constant 0 : i32
    return %c0_i32, %c0_i32_0, %c0_i32_1 : i32, i32, i32
  }
  func.func @transform_2(%arg0: i32) -> (i32, i32) {
    %c0_i32 = arith.constant 0 : i32
    %c0_i32_0 = arith.constant 0 : i32
    %c0_i32_1 = arith.constant 0 : i32
    return %c0_i32, %c0_i32_0 : i32, i32
  }
  func.func @transform_3(%arg0: i32) -> (i32, i32, i32) {
    %c0_i32 = arith.constant 0 : i32
    %c0_i32_0 = arith.constant 0 : i32
    %c0_i32_1 = arith.constant 0 : i32
    %c0_i32_2 = arith.constant 0 : i32
    return %c0_i32, %c0_i32_0, %c0_i32_1 : i32, i32, i32
  }
  func.func @transform_4(%arg0: i32) -> (i32, i32, i32) {
    %c0_i32 = arith.constant 0 : i32
    %c0_i32_0 = arith.constant 0 : i32
    %c0_i32_1 = arith.constant 0 : i32
    %c0_i32_2 = arith.constant 0 : i32
    return %c0_i32, %c0_i32_0, %c0_i32_1 : i32, i32, i32
  }
  func.func @transform_5(%arg0: i32) -> (i32, i32, i32) {
    %c0_i32 = arith.constant 0 : i32
    %c0_i32_0 = arith.constant 0 : i32
    %c0_i32_1 = arith.constant 0 : i32
    %c0_i32_2 = arith.constant 0 : i32
    return %c0_i32, %c0_i32_0, %c0_i32_1 : i32, i32, i32
  }
  func.func @transform_6(%arg0: i32) -> (i32, i32) {
    %c0_i32 = arith.constant 0 : i32
    %c0_i32_0 = arith.constant 0 : i32
    %c0_i32_1 = arith.constant 0 : i32
    return %c0_i32, %c0_i32_0 : i32, i32
  }
  func.func @transform_7(%arg0: i32) -> (i32, i32, i32) {
    %c0_i32 = arith.constant 0 : i32
    %c0_i32_0 = arith.constant 0 : i32
    %c0_i32_1 = arith.constant 0 : i32
    %c0_i32_2 = arith.constant 0 : i32
    return %c0_i32, %c0_i32_0, %c0_i32_1 : i32, i32, i32
  }
  func.func @transform_8(%arg0: i32) -> (i32, i32, i32) {
    %c0_i32 = arith.constant 0 : i32
    %c0_i32_0 = arith.constant 0 : i32
    %c0_i32_1 = arith.constant 0 : i32
    %c0_i32_2 = arith.constant 0 : i32
    return %c0_i32, %c0_i32_0, %c0_i32_1 : i32, i32, i32
  }
  func.func @transform_9(%arg0: i32) -> (i32, i32, i32) {
    %c0_i32 = arith.constant 0 : i32
    %c0_i32_0 = arith.constant 0 : i32
    %c0_i32_1 = arith.constant 0 : i32
    %c0_i32_2 = arith.constant 0 : i32
    return %c0_i32, %c0_i32_0, %c0_i32_1 : i32, i32, i32
  }
  func.func @transform_10(%arg0: i32) -> (i32, i32) {
    %c0_i32 = arith.constant 0 : i32
    %c0_i32_0 = arith.constant 0 : i32
    %c0_i32_1 = arith.constant 0 : i32
    return %c0_i32, %c0_i32_0 : i32, i32
  }
  func.func @transform_11(%arg0: i32) -> (i32, i32) {
    %c0_i32 = arith.constant 0 : i32
    %c0_i32_0 = arith.constant 0 : i32
    %c0_i32_1 = arith.constant 0 : i32
    return %c0_i32, %c0_i32_0 : i32, i32
  }
  func.func @transform_12(%arg0: i32) -> (i32, i32) {
    %c0_i32 = arith.constant 0 : i32
    %c0_i32_0 = arith.constant 0 : i32
    %c0_i32_1 = arith.constant 0 : i32
    return %c0_i32, %c0_i32_0 : i32, i32
  }
  func.func @transform_13(%arg0: i32) -> (i32, i32) {
    %c0_i32 = arith.constant 0 : i32
    %c0_i32_0 = arith.constant 0 : i32
    %c0_i32_1 = arith.constant 0 : i32
    return %c0_i32, %c0_i32_0 : i32, i32
  }
  func.func @transform_14(%arg0: i32) -> (i32, i32) {
    %c0_i32 = arith.constant 0 : i32
    %c0_i32_0 = arith.constant 0 : i32
    %c0_i32_1 = arith.constant 0 : i32
    return %c0_i32, %c0_i32_0 : i32, i32
  }
  func.func @transform_15(%arg0: i32) -> (i32, i32, i32) {
    %c0_i32 = arith.constant 0 : i32
    %c0_i32_0 = arith.constant 0 : i32
    %c0_i32_1 = arith.constant 0 : i32
    return %arg0, %c0_i32, %c0_i32_0 : i32, i32, i32
  }
}

</mosaic_0001>

<llo_original>
// kernel: net_forward.1
$region0: #{net_forward.1}
  #allocation0 [shape = 'u32[]', space=smem, size = 0x4, offset = 0x4, fixed_abs, tag = 'smem constant byte address 0x4 - core index']
  #allocation1 [shape = 'u32[144,128]{1,0:T(1,128)}', space=vmem, size = 0x12000, scoped, tag = 'internal scratch']
  %s0 = inlined_call_operand.vmem [shape: f32[2,32,32], index: 0, kind: input, shape index: {}]
  %s1 = inlined_call_operand.vmem [shape: f32[3,180,32], index: 1, kind: input, shape index: {}]
  %s2 = inlined_call_operand.vmem [shape: f32[180,1], index: 2, kind: input, shape index: {}]
  %s3 = inlined_call_operand.vmem [shape: f32[2,90,180], index: 3, kind: input, shape index: {}]
  %s4 = inlined_call_operand.vmem [shape: f32[2,30,15], index: 4, kind: input, shape index: {}]
  %s5 = inlined_call_operand.vmem [shape: f32[3,208,90], index: 5, kind: input, shape index: {}]
  %s6 = inlined_call_operand.vmem [shape: f32[208,1], index: 6, kind: input, shape index: {}]
  %s7 = inlined_call_operand.vmem [shape: f32[2,96,208], index: 7, kind: input, shape index: {}]
  %s8 = inlined_call_operand.vmem [shape: f32[2,13,6], index: 8, kind: input, shape index: {}]
  %s9 = inlined_call_operand.vmem [shape: f32[6,96,128], index: 9, kind: input, shape index: {}]
  %s10 = inlined_call_operand.vmem [shape: f32[1,128], index: 10, kind: input, shape index: {}]
  %s11 = inlined_call_operand.vmem [shape: f32[128,128], index: 11, kind: input, shape index: {}]
  %s12 = inlined_call_operand.vmem [shape: f32[1,128], index: 12, kind: input, shape index: {}]
  %s13 = inlined_call_operand.vmem [shape: f32[128,128], index: 13, kind: input, shape index: {}]
  %s14 = inlined_call_operand.vmem [shape: f32[1,128], index: 14, kind: input, shape index: {}]
  %s15 = inlined_call_operand.hbm [shape: f32[2,1,128], index: 15, kind: output, shape index: {}]
  %s16 = sld [smem:[#allocation0]]
  $region93: #{net_forward.1} parent=0
    _
  %s18 = ssub.s32 1, %s16
  %s19 = scalar_select 0, %s18, %s16
  $region1: #{net_forward.1} parent=0
    #allocation2 [shape = 'u8[1024]{0}', space=vmem, size = 0x400, scoped, tag = 'output window, operand 0']
    #allocation3 [shape = 's32[2]{0}', space=sflag, size = 0x8, scoped, tag = 'scoped memory for net_forward.1']
    %20 = vsyncpa [#allocation3], 0
    %s21 = scalar_lea.sflag [#allocation3], 1
    %22 = vsyncpa %s21, 0
    loop: start=0, step=1, limit=4
    $region2: #{net_forward.1} parent=1 // loop_pre_header
      _
    $region3: #{net_forward.1} parent=1 // loop_header
      %s24 = sphi 0, %s28
      %p25 = scmp.ge.s32.totalorder %s24, 4
      %s34 = sphi 0, %s36
      %s37 = sphi 0, %s34
      %s38 = sphi 0, %s37
      %s54 = sphi 0, %s38
      %s58 = sphi 0, %s58
      %s60 = sphi 0, %s58
      %s61 = sphi 0, %s60
      %s75 = sphi 0, %s61
      %s79 = sphi 0, %s79
      %s81 = sphi 0, %s79
      %s82 = sphi 0, %s81
      %s96 = sphi 0, %s82
      %s100 = sphi 0, %s100
      %s102 = sphi 0, %s100
      %s103 = sphi 0, %s102
      %s117 = sphi 0, %s103
      %s121 = sphi 0, %s121
      %s123 = sphi 0, %s121
      %s124 = sphi 0, %s123
      %s138 = sphi 0, %s124
      %s142 = sphi 0, %s142
      %s144 = sphi 0, %s142
      %s145 = sphi 0, %s144
      %s159 = sphi 0, %s145
      %s163 = sphi 0, %s163
      %s165 = sphi 0, %s163
      %s166 = sphi 0, %s165
      %s180 = sphi 0, %s166
      %s184 = sphi 0, %s184
      %s186 = sphi 0, %s184
      %s187 = sphi 0, %s186
      %s201 = sphi 0, %s187
      %s205 = sphi 0, %s205
      %s207 = sphi 0, %s205
      %s208 = sphi 0, %s207
      %s222 = sphi 0, %s208
      %s226 = sphi 0, %s226
      %s228 = sphi 0, %s226
      %s229 = sphi 0, %s228
      %s243 = sphi 0, %s229
      %s247 = sphi 0, %s247
      %s249 = sphi 0, %s247
      %s250 = sphi 0, %s249
      %s264 = sphi 0, %s250
      %s268 = sphi 0, %s268
      %s270 = sphi 0, %s268
      %s271 = sphi 0, %s270
      %s285 = sphi 0, %s271
      %s289 = sphi 0, %s289
      %s291 = sphi 0, %s289
      %s292 = sphi 0, %s291
      %s306 = sphi 0, %s292
      %s310 = sphi 0, %s310
      %s312 = sphi 0, %s310
      %s313 = sphi 0, %s312
      %s327 = sphi 0, %s313
      %s331 = sphi 0, %s331
      %s333 = sphi 0, %s331
      %s334 = sphi 0, %s333
      %s348 = sphi 0, %s334
      %s354 = sphi 0, %s356
      %s357 = sphi 0, %s354
      %s358 = sphi 0, %s357
      %s374 = sphi 0, %s358
    $region4: #{net_forward.1} parent=1 // loop_header_branch
      %27 = sbr.rel (%p25) target = $region8
    $region5: #{net_forward.1} parent=1 // loop_body
      %s29 = ssub.s32 %s24, 1
      %s30 = ssub.s32 %s24, 2
      %s31 = sadd.s32 %s24, 1
      %s32 = ssub.s32 %s24, %s31
      %p33 = scmp.eq.s32.totalorder %s32, 0
      %s35 = sadd.s32 %s34, 1
      %s36 = scalar_select %p33, %s34, %s35
      %p39 = pneg %p33
      %p40 = scmp.eq.s32.totalorder %s24, 1
      %p41 = por %p39, %p40
      %p42 = scmp.ne.s32.totalorder %s34, %s37
      %p43 = scmp.eq.s32.totalorder %s24, 0
      %p44 = por %p42, %p43
      %p45 = scmp.ne.s32.totalorder %s34, %s37
      %p46 = scmp.eq.s32.totalorder %s29, 1
      %p47 = por %p45, %p46
      %p48 = scmp.ne.s32.totalorder %s37, %s38
      %p49 = scmp.eq.s32.totalorder %s29, 0
      %p50 = por %p48, %p49
      %p51 = scmp.ne.s32.totalorder %s37, %s38
      %p52 = scmp.eq.s32.totalorder %s30, 1
      %p53 = por %p51, %p52
      %p55 = scmp.ne.s32.totalorder %s38, %s54
      %p56 = scmp.eq.s32.totalorder %s30, 0
      %p57 = por %p55, %p56
      %s59 = sadd.s32 %s58, 1
      %p62 = scmp.eq.s32.totalorder %s24, 1
      %p63 = scmp.ne.s32.totalorder %s58, %s60
      %p64 = scmp.eq.s32.totalorder %s24, 0
      %p65 = por %p63, %p64
      %p66 = scmp.ne.s32.totalorder %s58, %s60
      %p67 = scmp.eq.s32.totalorder %s29, 1
      %p68 = por %p66, %p67
      %p69 = scmp.ne.s32.totalorder %s60, %s61
      %p70 = scmp.eq.s32.totalorder %s29, 0
      %p71 = por %p69, %p70
      %p72 = scmp.ne.s32.totalorder %s60, %s61
      %p73 = scmp.eq.s32.totalorder %s30, 1
      %p74 = por %p72, %p73
      %p76 = scmp.ne.s32.totalorder %s61, %s75
      %p77 = scmp.eq.s32.totalorder %s30, 0
      %p78 = por %p76, %p77
      %s80 = sadd.s32 %s79, 1
      %p83 = scmp.eq.s32.totalorder %s24, 1
      %p84 = scmp.ne.s32.totalorder %s79, %s81
      %p85 = scmp.eq.s32.totalorder %s24, 0
      %p86 = por %p84, %p85
      %p87 = scmp.ne.s32.totalorder %s79, %s81
      %p88 = scmp.eq.s32.totalorder %s29, 1
      %p89 = por %p87, %p88
      %p90 = scmp.ne.s32.totalorder %s81, %s82
      %p91 = scmp.eq.s32.totalorder %s29, 0
      %p92 = por %p90, %p91
      %p93 = scmp.ne.s32.totalorder %s81, %s82
      %p94 = scmp.eq.s32.totalorder %s30, 1
      %p95 = por %p93, %p94
      %p97 = scmp.ne.s32.totalorder %s82, %s96
      %p98 = scmp.eq.s32.totalorder %s30, 0
      %p99 = por %p97, %p98
      %s101 = sadd.s32 %s100, 1
      %p104 = scmp.eq.s32.totalorder %s24, 1
      %p105 = scmp.ne.s32.totalorder %s100, %s102
      %p106 = scmp.eq.s32.totalorder %s24, 0
      %p107 = por %p105, %p106
      %p108 = scmp.ne.s32.totalorder %s100, %s102
      %p109 = scmp.eq.s32.totalorder %s29, 1
      %p110 = por %p108, %p109
      %p111 = scmp.ne.s32.totalorder %s102, %s103
      %p112 = scmp.eq.s32.totalorder %s29, 0
      %p113 = por %p111, %p112
      %p114 = scmp.ne.s32.totalorder %s102, %s103
      %p115 = scmp.eq.s32.totalorder %s30, 1
      %p116 = por %p114, %p115
      %p118 = scmp.ne.s32.totalorder %s103, %s117
      %p119 = scmp.eq.s32.totalorder %s30, 0
      %p120 = por %p118, %p119
      %s122 = sadd.s32 %s121, 1
      %p125 = scmp.eq.s32.totalorder %s24, 1
      %p126 = scmp.ne.s32.totalorder %s121, %s123
      %p127 = scmp.eq.s32.totalorder %s24, 0
      %p128 = por %p126, %p127
      %p129 = scmp.ne.s32.totalorder %s121, %s123
      %p130 = scmp.eq.s32.totalorder %s29, 1
      %p131 = por %p129, %p130
      %p132 = scmp.ne.s32.totalorder %s123, %s124
      %p133 = scmp.eq.s32.totalorder %s29, 0
      %p134 = por %p132, %p133
      %p135 = scmp.ne.s32.totalorder %s123, %s124
      %p136 = scmp.eq.s32.totalorder %s30, 1
      %p137 = por %p135, %p136
      %p139 = scmp.ne.s32.totalorder %s124, %s138
      %p140 = scmp.eq.s32.totalorder %s30, 0
      %p141 = por %p139, %p140
      %s143 = sadd.s32 %s142, 1
      %p146 = scmp.eq.s32.totalorder %s24, 1
      %p147 = scmp.ne.s32.totalorder %s142, %s144
      %p148 = scmp.eq.s32.totalorder %s24, 0
      %p149 = por %p147, %p148
      %p150 = scmp.ne.s32.totalorder %s142, %s144
      %p151 = scmp.eq.s32.totalorder %s29, 1
      %p152 = por %p150, %p151
      %p153 = scmp.ne.s32.totalorder %s144, %s145
      %p154 = scmp.eq.s32.totalorder %s29, 0
      %p155 = por %p153, %p154
      %p156 = scmp.ne.s32.totalorder %s144, %s145
      %p157 = scmp.eq.s32.totalorder %s30, 1
      %p158 = por %p156, %p157
      %p160 = scmp.ne.s32.totalorder %s145, %s159
      %p161 = scmp.eq.s32.totalorder %s30, 0
      %p162 = por %p160, %p161
      %s164 = sadd.s32 %s163, 1
      %p167 = scmp.eq.s32.totalorder %s24, 1
      %p168 = scmp.ne.s32.totalorder %s163, %s165
      %p169 = scmp.eq.s32.totalorder %s24, 0
      %p170 = por %p168, %p169
      %p171 = scmp.ne.s32.totalorder %s163, %s165
      %p172 = scmp.eq.s32.totalorder %s29, 1
      %p173 = por %p171, %p172
      %p174 = scmp.ne.s32.totalorder %s165, %s166
      %p175 = scmp.eq.s32.totalorder %s29, 0
      %p176 = por %p174, %p175
      %p177 = scmp.ne.s32.totalorder %s165, %s166
      %p178 = scmp.eq.s32.totalorder %s30, 1
      %p179 = por %p177, %p178
      %p181 = scmp.ne.s32.totalorder %s166, %s180
      %p182 = scmp.eq.s32.totalorder %s30, 0
      %p183 = por %p181, %p182
      %s185 = sadd.s32 %s184, 1
      %p188 = scmp.eq.s32.totalorder %s24, 1
      %p189 = scmp.ne.s32.totalorder %s184, %s186
      %p190 = scmp.eq.s32.totalorder %s24, 0
      %p191 = por %p189, %p190
      %p192 = scmp.ne.s32.totalorder %s184, %s186
      %p193 = scmp.eq.s32.totalorder %s29, 1
      %p194 = por %p192, %p193
      %p195 = scmp.ne.s32.totalorder %s186, %s187
      %p196 = scmp.eq.s32.totalorder %s29, 0
      %p197 = por %p195, %p196
      %p198 = scmp.ne.s32.totalorder %s186, %s187
      %p199 = scmp.eq.s32.totalorder %s30, 1
      %p200 = por %p198, %p199
      %p202 = scmp.ne.s32.totalorder %s187, %s201
      %p203 = scmp.eq.s32.totalorder %s30, 0
      %p204 = por %p202, %p203
      %s206 = sadd.s32 %s205, 1
      %p209 = scmp.eq.s32.totalorder %s24, 1
      %p210 = scmp.ne.s32.totalorder %s205, %s207
      %p211 = scmp.eq.s32.totalorder %s24, 0
      %p212 = por %p210, %p211
      %p213 = scmp.ne.s32.totalorder %s205, %s207
      %p214 = scmp.eq.s32.totalorder %s29, 1
      %p215 = por %p213, %p214
      %p216 = scmp.ne.s32.totalorder %s207, %s208
      %p217 = scmp.eq.s32.totalorder %s29, 0
      %p218 = por %p216, %p217
      %p219 = scmp.ne.s32.totalorder %s207, %s208
      %p220 = scmp.eq.s32.totalorder %s30, 1
      %p221 = por %p219, %p220
      %p223 = scmp.ne.s32.totalorder %s208, %s222
      %p224 = scmp.eq.s32.totalorder %s30, 0
      %p225 = por %p223, %p224
      %s227 = sadd.s32 %s226, 1
      %p230 = scmp.eq.s32.totalorder %s24, 1
      %p231 = scmp.ne.s32.totalorder %s226, %s228
      %p232 = scmp.eq.s32.totalorder %s24, 0
      %p233 = por %p231, %p232
      %p234 = scmp.ne.s32.totalorder %s226, %s228
      %p235 = scmp.eq.s32.totalorder %s29, 1
      %p236 = por %p234, %p235
      %p237 = scmp.ne.s32.totalorder %s228, %s229
      %p238 = scmp.eq.s32.totalorder %s29, 0
      %p239 = por %p237, %p238
      %p240 = scmp.ne.s32.totalorder %s228, %s229
      %p241 = scmp.eq.s32.totalorder %s30, 1
      %p242 = por %p240, %p241
      %p244 = scmp.ne.s32.totalorder %s229, %s243
      %p245 = scmp.eq.s32.totalorder %s30, 0
      %p246 = por %p244, %p245
      %s248 = sadd.s32 %s247, 1
      %p251 = scmp.eq.s32.totalorder %s24, 1
      %p252 = scmp.ne.s32.totalorder %s247, %s249
      %p253 = scmp.eq.s32.totalorder %s24, 0
      %p254 = por %p252, %p253
      %p255 = scmp.ne.s32.totalorder %s247, %s249
      %p256 = scmp.eq.s32.totalorder %s29, 1
      %p257 = por %p255, %p256
      %p258 = scmp.ne.s32.totalorder %s249, %s250
      %p259 = scmp.eq.s32.totalorder %s29, 0
      %p260 = por %p258, %p259
      %p261 = scmp.ne.s32.totalorder %s249, %s250
      %p262 = scmp.eq.s32.totalorder %s30, 1
      %p263 = por %p261, %p262
      %p265 = scmp.ne.s32.totalorder %s250, %s264
      %p266 = scmp.eq.s32.totalorder %s30, 0
      %p267 = por %p265, %p266
      %s269 = sadd.s32 %s268, 1
      %p272 = scmp.eq.s32.totalorder %s24, 1
      %p273 = scmp.ne.s32.totalorder %s268, %s270
      %p274 = scmp.eq.s32.totalorder %s24, 0
      %p275 = por %p273, %p274
      %p276 = scmp.ne.s32.totalorder %s268, %s270
      %p277 = scmp.eq.s32.totalorder %s29, 1
      %p278 = por %p276, %p277
      %p279 = scmp.ne.s32.totalorder %s270, %s271
      %p280 = scmp.eq.s32.totalorder %s29, 0
      %p281 = por %p279, %p280
      %p282 = scmp.ne.s32.totalorder %s270, %s271
      %p283 = scmp.eq.s32.totalorder %s30, 1
      %p284 = por %p282, %p283
      %p286 = scmp.ne.s32.totalorder %s271, %s285
      %p287 = scmp.eq.s32.totalorder %s30, 0
      %p288 = por %p286, %p287
      %s290 = sadd.s32 %s289, 1
      %p293 = scmp.eq.s32.totalorder %s24, 1
      %p294 = scmp.ne.s32.totalorder %s289, %s291
      %p295 = scmp.eq.s32.totalorder %s24, 0
      %p296 = por %p294, %p295
      %p297 = scmp.ne.s32.totalorder %s289, %s291
      %p298 = scmp.eq.s32.totalorder %s29, 1
      %p299 = por %p297, %p298
      %p300 = scmp.ne.s32.totalorder %s291, %s292
      %p301 = scmp.eq.s32.totalorder %s29, 0
      %p302 = por %p300, %p301
      %p303 = scmp.ne.s32.totalorder %s291, %s292
      %p304 = scmp.eq.s32.totalorder %s30, 1
      %p305 = por %p303, %p304
      %p307 = scmp.ne.s32.totalorder %s292, %s306
      %p308 = scmp.eq.s32.totalorder %s30, 0
      %p309 = por %p307, %p308
      %s311 = sadd.s32 %s310, 1
      %p314 = scmp.eq.s32.totalorder %s24, 1
      %p315 = scmp.ne.s32.totalorder %s310, %s312
      %p316 = scmp.eq.s32.totalorder %s24, 0
      %p317 = por %p315, %p316
      %p318 = scmp.ne.s32.totalorder %s310, %s312
      %p319 = scmp.eq.s32.totalorder %s29, 1
      %p320 = por %p318, %p319
      %p321 = scmp.ne.s32.totalorder %s312, %s313
      %p322 = scmp.eq.s32.totalorder %s29, 0
      %p323 = por %p321, %p322
      %p324 = scmp.ne.s32.totalorder %s312, %s313
      %p325 = scmp.eq.s32.totalorder %s30, 1
      %p326 = por %p324, %p325
      %p328 = scmp.ne.s32.totalorder %s313, %s327
      %p329 = scmp.eq.s32.totalorder %s30, 0
      %p330 = por %p328, %p329
      %s332 = sadd.s32 %s331, 1
      %p335 = scmp.eq.s32.totalorder %s24, 1
      %p336 = scmp.ne.s32.totalorder %s331, %s333
      %p337 = scmp.eq.s32.totalorder %s24, 0
      %p338 = por %p336, %p337
      %p339 = scmp.ne.s32.totalorder %s331, %s333
      %p340 = scmp.eq.s32.totalorder %s29, 1
      %p341 = por %p339, %p340
      %p342 = scmp.ne.s32.totalorder %s333, %s334
      %p343 = scmp.eq.s32.totalorder %s29, 0
      %p344 = por %p342, %p343
      %p345 = scmp.ne.s32.totalorder %s333, %s334
      %p346 = scmp.eq.s32.totalorder %s30, 1
      %p347 = por %p345, %p346
      %p349 = scmp.ne.s32.totalorder %s334, %s348
      %p350 = scmp.eq.s32.totalorder %s30, 0
      %p351 = por %p349, %p350
      %s352 = ssub.s32 %s24, %s31
      %p353 = scmp.eq.s32.totalorder %s352, 0
      %s355 = sadd.s32 %s354, 1
      %s356 = scalar_select %p353, %s354, %s355
      %p359 = pneg %p353
      %p360 = scmp.eq.s32.totalorder %s24, 1
      %p361 = por %p359, %p360
      %p362 = scmp.ne.s32.totalorder %s354, %s357
      %p363 = scmp.eq.s32.totalorder %s24, 0
      %p364 = por %p362, %p363
      %p365 = scmp.ne.s32.totalorder %s354, %s357
      %p366 = scmp.eq.s32.totalorder %s29, 1
      %p367 = por %p365, %p366
      %p368 = scmp.ne.s32.totalorder %s357, %s358
      %p369 = scmp.eq.s32.totalorder %s29, 0
      %p370 = por %p368, %p369
      %p371 = scmp.ne.s32.totalorder %s357, %s358
      %p372 = scmp.eq.s32.totalorder %s30, 1
      %p373 = por %p371, %p372
      %p375 = scmp.ne.s32.totalorder %s358, %s374
      %p376 = scmp.eq.s32.totalorder %s30, 0
      %p377 = por %p375, %p376
      %p378 = scmp.le.s32.totalorder 1, %s24
      %p379 = scmp.lt.s32.totalorder %s24, 3
      %p380 = pnand %p378, %p379
      %p381 = pneg %p380
      // Predicated region
      $region9: #{net_forward.1} parent=5 // pred_check
        _
      $region10: #{net_forward.1} parent=5 // pred_check_branch
        %383 = sbr.rel (%p380) target = $region12
      $region11: #{net_forward.1} parent=5 // pred_region
        %s384 = ssub.s32 %s24, 1
        // Predicated region
        $region13: #{net_forward.1} parent=11 // pred_check
          %p385 = pneg %p71
        $region14: #{net_forward.1} parent=11 // pred_check_branch
          %387 = sbr.rel (%p385) target = $region16
        $region15: #{net_forward.1} parent=11 // pred_region
          _
        $region16: #{net_forward.1} parent=11 // pred_fallthru
          _
        // Predicated region
        $region17: #{net_forward.1} parent=11 // pred_check
          %p388 = pneg %p92
        $region18: #{net_forward.1} parent=11 // pred_check_branch
          %390 = sbr.rel (%p388) target = $region20
        $region19: #{net_forward.1} parent=11 // pred_region
          _
        $region20: #{net_forward.1} parent=11 // pred_fallthru
          _
        // Predicated region
        $region21: #{net_forward.1} parent=11 // pred_check
          %p391 = pneg %p113
        $region22: #{net_forward.1} parent=11 // pred_check_branch
          %393 = sbr.rel (%p391) target = $region24
        $region23: #{net_forward.1} parent=11 // pred_region
          _
        $region24: #{net_forward.1} parent=11 // pred_fallthru
          _
        // Predicated region
        $region25: #{net_forward.1} parent=11 // pred_check
          %p394 = pneg %p134
        $region26: #{net_forward.1} parent=11 // pred_check_branch
          %396 = sbr.rel (%p394) target = $region28
        $region27: #{net_forward.1} parent=11 // pred_region
          _
        $region28: #{net_forward.1} parent=11 // pred_fallthru
          _
        // Predicated region
        $region29: #{net_forward.1} parent=11 // pred_check
          %p397 = pneg %p155
        $region30: #{net_forward.1} parent=11 // pred_check_branch
          %399 = sbr.rel (%p397) target = $region32
        $region31: #{net_forward.1} parent=11 // pred_region
          _
        $region32: #{net_forward.1} parent=11 // pred_fallthru
          _
        // Predicated region
        $region33: #{net_forward.1} parent=11 // pred_check
          %p400 = pneg %p176
        $region34: #{net_forward.1} parent=11 // pred_check_branch
          %402 = sbr.rel (%p400) target = $region36
        $region35: #{net_forward.1} parent=11 // pred_region
          _
        $region36: #{net_forward.1} parent=11 // pred_fallthru
          _
        // Predicated region
        $region37: #{net_forward.1} parent=11 // pred_check
          %p403 = pneg %p197
        $region38: #{net_forward.1} parent=11 // pred_check_branch
          %405 = sbr.rel (%p403) target = $region40
        $region39: #{net_forward.1} parent=11 // pred_region
          _
        $region40: #{net_forward.1} parent=11 // pred_fallthru
          _
        // Predicated region
        $region41: #{net_forward.1} parent=11 // pred_check
          %p406 = pneg %p218
        $region42: #{net_forward.1} parent=11 // pred_check_branch
          %408 = sbr.rel (%p406) target = $region44
        $region43: #{net_forward.1} parent=11 // pred_region
          _
        $region44: #{net_forward.1} parent=11 // pred_fallthru
          _
        // Predicated region
        $region45: #{net_forward.1} parent=11 // pred_check
          %p409 = pneg %p239
        $region46: #{net_forward.1} parent=11 // pred_check_branch
          %411 = sbr.rel (%p409) target = $region48
        $region47: #{net_forward.1} parent=11 // pred_region
          _
        $region48: #{net_forward.1} parent=11 // pred_fallthru
          _
        // Predicated region
        $region49: #{net_forward.1} parent=11 // pred_check
          %p412 = pneg %p260
        $region50: #{net_forward.1} parent=11 // pred_check_branch
          %414 = sbr.rel (%p412) target = $region52
        $region51: #{net_forward.1} parent=11 // pred_region
          _
        $region52: #{net_forward.1} parent=11 // pred_fallthru
          _
        // Predicated region
        $region53: #{net_forward.1} parent=11 // pred_check
          %p415 = pneg %p281
        $region54: #{net_forward.1} parent=11 // pred_check_branch
          %417 = sbr.rel (%p415) target = $region56
        $region55: #{net_forward.1} parent=11 // pred_region
          _
        $region56: #{net_forward.1} parent=11 // pred_fallthru
          _
        // Predicated region
        $region57: #{net_forward.1} parent=11 // pred_check
          %p418 = pneg %p302
        $region58: #{net_forward.1} parent=11 // pred_check_branch
          %420 = sbr.rel (%p418) target = $region60
        $region59: #{net_forward.1} parent=11 // pred_region
          _
        $region60: #{net_forward.1} parent=11 // pred_fallthru
          _
        // Predicated region
        $region61: #{net_forward.1} parent=11 // pred_check
          %p421 = pneg %p323
        $region62: #{net_forward.1} parent=11 // pred_check_branch
          %423 = sbr.rel (%p421) target = $region64
        $region63: #{net_forward.1} parent=11 // pred_region
          _
        $region64: #{net_forward.1} parent=11 // pred_fallthru
          _
        // Predicated region
        $region65: #{net_forward.1} parent=11 // pred_check
          %p424 = pneg %p344
        $region66: #{net_forward.1} parent=11 // pred_check_branch
          %426 = sbr.rel (%p424) target = $region68
        $region67: #{net_forward.1} parent=11 // pred_region
          _
        $region68: #{net_forward.1} parent=11 // pred_fallthru
          _
      $region12: #{net_forward.1} parent=5 // pred_fallthru
        _
      %p427 = scmp.lt.s32.totalorder %s24, 2
      // Predicated region
      $region69: #{net_forward.1} parent=5 // pred_check
        %p428 = pneg %p427
      $region70: #{net_forward.1} parent=5 // pred_check_branch
        %430 = sbr.rel (%p428) target = $region72
      $region71: #{net_forward.1} parent=5 // pred_region
        // Predicated region
        $region73: #{net_forward.1} parent=71 // pred_check
          %p431 = pneg %p44
        $region74: #{net_forward.1} parent=71 // pred_check_branch
          %433 = sbr.rel (%p431) target = $region76
        $region75: #{net_forward.1} parent=71 // pred_region
          %p434 = scmp.lt.s32.totalorder %s24, 1
          %s435 = scalar_select %p434, %s24, 1
          %s436 = smul.addr %s435, 4
          %s437 = smul.addr %s436, 8
          %s438 = scalar_lea.vmem %s0, %s437
        $region76: #{net_forward.1} parent=71 // pred_fallthru
          _
      $region72: #{net_forward.1} parent=5 // pred_fallthru
        _
      %p439 = scmp.le.s32.totalorder 1, %s24
      %p440 = scmp.lt.s32.totalorder %s24, 3
      %p441 = pnand %p439, %p440
      %p442 = pneg %p441
      // Predicated region
      $region77: #{net_forward.1} parent=5 // pred_check
        _
      $region78: #{net_forward.1} parent=5 // pred_check_branch
        %444 = sbr.rel (%p441) target = $region80
      $region79: #{net_forward.1} parent=5 // pred_region
        %s445 = ssub.s32 %s24, 1
        %p446 = scmp.lt.s32.totalorder %s29, 1
        %s447 = scalar_select %p446, %s29, 1
        %s448 = smul.addr %s447, 4
        %s449 = smul.addr %s448, 8
        %s450 = scalar_lea.vmem %s0, %s449
        %p451 = pneg %p50
        %p452 = pneg %p47
        %p453 = pneg %p71
        %p454 = pneg %p68
        %p455 = pneg %p92
        %p456 = pneg %p89
        %p457 = pneg %p113
        %p458 = pneg %p110
        %p459 = pneg %p134
        %p460 = pneg %p131
        %p461 = pneg %p155
        %p462 = pneg %p152
        %p463 = pneg %p176
        %p464 = pneg %p173
        %p465 = pneg %p197
        %p466 = pneg %p194
        %p467 = pneg %p218
        %p468 = pneg %p215
        %p469 = pneg %p239
        %p470 = pneg %p236
        %p471 = pneg %p260
        %p472 = pneg %p257
        %p473 = pneg %p281
        %p474 = pneg %p278
        %p475 = pneg %p302
        %p476 = pneg %p299
        %p477 = pneg %p323
        %p478 = pneg %p320
        %p479 = pneg %p344
        %p480 = pneg %p341
        %p481 = pneg %p370
        %p482 = pneg %p367
        %s483 = sand.u32 %s357, 1
        %s484 = scalar_lea.sflag [#allocation3], %s483
        %s485 = sand.u32 %s357, 1
        %s486 = scalar_lea.vmem [#allocation2], %s485
        %p487 = scmp.lt.s32.totalorder %s29, 1
        %s488 = scalar_select %p487, %s29, 1
        %s489 = smul.addr %s488, 4
        %s490 = smul.addr %s489, 8
        %s491 = scalar_lea.vmem %s0, %s490
        %v492 = vld [vmem:[%s491] sm:$0xff]
        %v493 = vld [vmem:[%s491 + $0x8] sm:$0xff]
        %v494 = vld [vmem:[%s491 + $0x10] sm:$0xff]
        %v495 = vld [vmem:[%s491 + $0x18] sm:$0xff]
        %v496 = vld [vmem:[%s1] sm:$0xff]
        %v497 = vld [vmem:[%s1 + $0x8] sm:$0xff]
        %v498 = vld [vmem:[%s1 + $0x10] sm:$0xff]
        %v499 = vld [vmem:[%s1 + $0x18] sm:$0xff]
        %v500 = vld [vmem:[%s1 + $0x20] sm:$0xff]
        %v501 = vld [vmem:[%s1 + $0x28] sm:$0xff]
        %v502 = vld [vmem:[%s1 + $0x30] sm:$0xff]
        %v503 = vld [vmem:[%s1 + $0x38] sm:$0xff]
        %v504 = vld [vmem:[%s1 + $0x40] sm:$0xff]
        %v505 = vld [vmem:[%s1 + $0x48] sm:$0xff]
        %v506 = vld [vmem:[%s1 + $0x50] sm:$0xff]
        %v507 = vld [vmem:[%s1 + $0x58] sm:$0xff]
        %v508 = vld [vmem:[%s1 + $0x60] sm:$0xff]
        %v509 = vld [vmem:[%s1 + $0x68] sm:$0xff]
        %v510 = vld [vmem:[%s1 + $0x70] sm:$0xff]
        %v511 = vld [vmem:[%s1 + $0x78] sm:$0xff]
        %v512 = vld [vmem:[%s1 + $0x80] sm:$0xff]
        %v513 = vld [vmem:[%s1 + $0x88] sm:$0xff]
        %v514 = vld [vmem:[%s1 + $0x90] sm:$0xff]
        %v515 = vld [vmem:[%s1 + $0x98] sm:$0xff]
        %v516 = vld [vmem:[%s1 + $0xa0] sm:$0xff]
        %v517 = vld [vmem:[%s1 + $0xa8] sm:$0xff]
        %v518 = vld [vmem:[%s1 + $0xb0] sm:$0xf]
        %s519 = scalar_lea.vmem %s1, 184
        %v520 = vld [vmem:[%s519] sm:$0xff]
        %v521 = vld [vmem:[%s519 + $0x8] sm:$0xff]
        %v522 = vld [vmem:[%s519 + $0x10] sm:$0xff]
        %v523 = vld [vmem:[%s519 + $0x18] sm:$0xff]
        %v524 = vld [vmem:[%s519 + $0x20] sm:$0xff]
        %v525 = vld [vmem:[%s519 + $0x28] sm:$0xff]
        %v526 = vld [vmem:[%s519 + $0x30] sm:$0xff]
        %v527 = vld [vmem:[%s519 + $0x38] sm:$0xff]
        %v528 = vld [vmem:[%s519 + $0x40] sm:$0xff]
        %v529 = vld [vmem:[%s519 + $0x48] sm:$0xff]
        %v530 = vld [vmem:[%s519 + $0x50] sm:$0xff]
        %v531 = vld [vmem:[%s519 + $0x58] sm:$0xff]
        %v532 = vld [vmem:[%s519 + $0x60] sm:$0xff]
        %v533 = vld [vmem:[%s519 + $0x68] sm:$0xff]
        %v534 = vld [vmem:[%s519 + $0x70] sm:$0xff]
        %v535 = vld [vmem:[%s519 + $0x78] sm:$0xff]
        %v536 = vld [vmem:[%s519 + $0x80] sm:$0xff]
        %v537 = vld [vmem:[%s519 + $0x88] sm:$0xff]
        %v538 = vld [vmem:[%s519 + $0x90] sm:$0xff]
        %v539 = vld [vmem:[%s519 + $0x98] sm:$0xff]
        %v540 = vld [vmem:[%s519 + $0xa0] sm:$0xff]
        %v541 = vld [vmem:[%s519 + $0xa8] sm:$0xff]
        %v542 = vld [vmem:[%s519 + $0xb0] sm:$0xf]
        %547 = vrot.lane.b32.xlu0 %v492, 127
        %v548 = vpop.permute.xlu0 %547
        %549 = vrot.lane.b32.xlu0 %v493, 127
        %v550 = vpop.permute.xlu0 %549
        %551 = vrot.lane.b32.xlu0 %v494, 127
        %v552 = vpop.permute.xlu0 %551
        %553 = vrot.lane.b32.xlu0 %v495, 127
        %v554 = vpop.permute.xlu0 %553
        %vm559 = vcmask 261120
        %v561 = vsel %vm559, %v520, 0
        %v564 = vsel %vm559, %v521, 0
        %v567 = vsel %vm559, %v522, 0
        %v570 = vsel %vm559, %v523, 0
        %v573 = vsel %vm559, %v524, 0
        %v576 = vsel %vm559, %v525, 0
        %v579 = vsel %vm559, %v526, 0
        %v582 = vsel %vm559, %v527, 0
        %v585 = vsel %vm559, %v528, 0
        %v588 = vsel %vm559, %v529, 0
        %v591 = vsel %vm559, %v530, 0
        %v594 = vsel %vm559, %v531, 0
        %v597 = vsel %vm559, %v532, 0
        %v600 = vsel %vm559, %v533, 0
        %v603 = vsel %vm559, %v534, 0
        %v606 = vsel %vm559, %v535, 0
        %v609 = vsel %vm559, %v536, 0
        %v612 = vsel %vm559, %v537, 0
        %v615 = vsel %vm559, %v538, 0
        %v618 = vsel %vm559, %v539, 0
        %v621 = vsel %vm559, %v540, 0
        %v624 = vsel %vm559, %v541, 0
        %v627 = vsel %vm559, %v542, 0
        %629 = vmatprep.subr.mxu0 0.0
        %630 = vmatpush1.msra.mxu0 %v548
        %631 = vmatprep.subr.mxu0 0.0
        %632 = vmatpush1.msra.mxu0 %v550
        %633 = vmatprep.subr.mxu0 0.0
        %634 = vmatpush1.msra.mxu0 %v552
        %635 = vmatprep.subr.mxu0 0.0
        %636 = vmatpush1.msra.mxu0 %v554
        %637 = vmatprep.subr.mxu0 0.0
        %638 = vmatpush1.msra.mxu0 0.0
        %639 = vmatprep.subr.mxu0 0.0
        %640 = vmatpush1.msra.mxu0 0.0
        %641 = vmatprep.subr.mxu0 0.0
        %642 = vmatpush1.msra.mxu0 0.0
        %643 = vmatprep.subr.mxu0 0.0
        %644 = vmatpush1.msra.mxu0 0.0
        %645 = vmatprep.subr.mxu0 0.0
        %646 = vmatpush1.msra.mxu0 0.0
        %647 = vmatprep.subr.mxu0 0.0
        %648 = vmatpush1.msra.mxu0 0.0
        %649 = vmatprep.subr.mxu0 0.0
        %650 = vmatpush1.msra.mxu0 0.0
        %651 = vmatprep.subr.mxu0 0.0
        %652 = vmatpush1.msra.mxu0 0.0
        %653 = vmatprep.subr.mxu0 0.0
        %654 = vmatpush1.msra.mxu0 0.0
        %655 = vmatprep.subr.mxu0 0.0
        %656 = vmatpush1.msra.mxu0 0.0
        %657 = vmatprep.subr.mxu0 0.0
        %658 = vmatpush1.msra.mxu0 0.0
        %659 = vmatprep.subr.mxu0 0.0
        %660 = vmatpush1.msra.mxu0 0.0
        %661 = vmatprep.subr.mxu0 0.0
        %662 = vmatpush1.msra.mxu0 0.0
        %663 = vmatprep.subr.mxu0 0.0
        %664 = vmatpush1.msra.mxu0 0.0
        %665 = vmatprep.subr.mxu0 0.0
        %666 = vmatpush1.msra.mxu0 0.0
        %667 = vmatprep.subr.mxu0 0.0
        %668 = vmatpush1.msra.mxu0 0.0
        %669 = vmatprep.subr.mxu0 0.0
        %670 = vmatpush1.msra.mxu0 0.0
        %671 = vmatprep.subr.mxu0 0.0
        %672 = vmatpush1.msra.mxu0 0.0
        %673 = vmatprep.subr.mxu0 0.0
        %674 = vmatpush1.msra.mxu0 0.0
        %675 = vmatprep.subr.mxu0 0.0
        %676 = vmatpush1.msra.mxu0 0.0
        %677 = vmatprep.subr.mxu0 0.0
        %678 = vmatpush1.msra.mxu0 0.0
        %679 = vmatprep.subr.mxu0 0.0
        %680 = vmatpush1.msra.mxu0 0.0
        %681 = vmatprep.subr.mxu0 0.0
        %682 = vmatpush1.msra.mxu0 0.0
        %683 = vmatprep.subr.mxu0 0.0
        %684 = vmatpush1.msra.mxu0 0.0
        %685 = vmatprep.subr.mxu0 0.0
        %686 = vmatpush1.msra.mxu0 0.0
        %687 = vmatprep.subr.mxu0 0.0
        %688 = vmatpush1.msra.mxu0 0.0
        %689 = vmatprep.subr.mxu0 0.0
        %690 = vmatpush1.msra.mxu0 0.0
        %691 = vmatprep.subr.mxu0 0.0
        %692 = vmatpush1.msra.mxu0 0.0
        %693 = vmatprep.mubr.f32.mxu0 0.0
        %694 = vmatmul.mubr.f32.gmra.mrb[0].mxu0 %v561
        %v695 = vpop.f32.mrb[0].mxu0
        %v696 = vadd.f32 0.0, %v695
        %v697 = vpop.f32.mrb[0].mxu0
        %698 = vmatprep.mubr.f32.mxu0 0.0
        %699 = vmatmul.mubr.f32.gmra.mrb[0].mxu0 %v564
        %v700 = vpop.f32.mrb[0].mxu0
        %v701 = vadd.f32 0.0, %v700
        %v702 = vpop.f32.mrb[0].mxu0
        %703 = vmatprep.mubr.f32.mxu0 0.0
        %704 = vmatmul.mubr.f32.gmra.mrb[0].mxu0 %v567
        %v705 = vpop.f32.mrb[0].mxu0
        %v706 = vadd.f32 0.0, %v705
        %v707 = vpop.f32.mrb[0].mxu0
        %708 = vmatprep.mubr.f32.mxu0 0.0
        %709 = vmatmul.mubr.f32.gmra.mrb[0].mxu0 %v570
        %v710 = vpop.f32.mrb[0].mxu0
        %v711 = vadd.f32 0.0, %v710
        %v712 = vpop.f32.mrb[0].mxu0
        %713 = vmatprep.mubr.f32.mxu0 0.0
        %714 = vmatmul.mubr.f32.gmra.mrb[0].mxu0 %v573
        %v715 = vpop.f32.mrb[0].mxu0
        %v716 = vadd.f32 0.0, %v715
        %v717 = vpop.f32.mrb[0].mxu0
        %718 = vmatprep.mubr.f32.mxu0 0.0
        %719 = vmatmul.mubr.f32.gmra.mrb[0].mxu0 %v576
        %v720 = vpop.f32.mrb[0].mxu0
        %v721 = vadd.f32 0.0, %v720
        %v722 = vpop.f32.mrb[0].mxu0
        %723 = vmatprep.mubr.f32.mxu0 0.0
        %724 = vmatmul.mubr.f32.gmra.mrb[0].mxu0 %v579
        %v725 = vpop.f32.mrb[0].mxu0
        %v726 = vadd.f32 0.0, %v725
        %v727 = vpop.f32.mrb[0].mxu0
        %728 = vmatprep.mubr.f32.mxu0 0.0
        %729 = vmatmul.mubr.f32.gmra.mrb[0].mxu0 %v582
        %v730 = vpop.f32.mrb[0].mxu0
        %v731 = vadd.f32 0.0, %v730
        %v732 = vpop.f32.mrb[0].mxu0
        %733 = vmatprep.mubr.f32.mxu0 0.0
        %734 = vmatmul.mubr.f32.gmra.mrb[0].mxu0 %v585
        %v735 = vpop.f32.mrb[0].mxu0
        %v736 = vadd.f32 0.0, %v735
        %v737 = vpop.f32.mrb[0].mxu0
        %738 = vmatprep.mubr.f32.mxu0 0.0
        %739 = vmatmul.mubr.f32.gmra.mrb[0].mxu0 %v588
        %v740 = vpop.f32.mrb[0].mxu0
        %v741 = vadd.f32 0.0, %v740
        %v742 = vpop.f32.mrb[0].mxu0
        %743 = vmatprep.mubr.f32.mxu0 0.0
        %744 = vmatmul.mubr.f32.gmra.mrb[0].mxu0 %v591
        %v745 = vpop.f32.mrb[0].mxu0
        %v746 = vadd.f32 0.0, %v745
        %v747 = vpop.f32.mrb[0].mxu0
        %748 = vmatprep.mubr.f32.mxu0 0.0
        %749 = vmatmul.mubr.f32.gmra.mrb[0].mxu0 %v594
        %v750 = vpop.f32.mrb[0].mxu0
        %v751 = vadd.f32 0.0, %v750
        %v752 = vpop.f32.mrb[0].mxu0
        %753 = vmatprep.mubr.f32.mxu0 0.0
        %754 = vmatmul.mubr.f32.gmra.mrb[0].mxu0 %v597
        %v755 = vpop.f32.mrb[0].mxu0
        %v756 = vadd.f32 0.0, %v755
        %v757 = vpop.f32.mrb[0].mxu0
        %758 = vmatprep.mubr.f32.mxu0 0.0
        %759 = vmatmul.mubr.f32.gmra.mrb[0].mxu0 %v600
        %v760 = vpop.f32.mrb[0].mxu0
        %v761 = vadd.f32 0.0, %v760
        %v762 = vpop.f32.mrb[0].mxu0
        %763 = vmatprep.mubr.f32.mxu0 0.0
        %764 = vmatmul.mubr.f32.gmra.mrb[0].mxu0 %v603
        %v765 = vpop.f32.mrb[0].mxu0
        %v766 = vadd.f32 0.0, %v765
        %v767 = vpop.f32.mrb[0].mxu0
        %768 = vmatprep.mubr.f32.mxu0 0.0
        %769 = vmatmul.mubr.f32.gmra.mrb[0].mxu0 %v606
        %v770 = vpop.f32.mrb[0].mxu0
        %v771 = vadd.f32 0.0, %v770
        %v772 = vpop.f32.mrb[0].mxu0
        %773 = vmatprep.mubr.f32.mxu0 0.0
        %774 = vmatmul.mubr.f32.gmra.mrb[0].mxu0 %v609
        %v775 = vpop.f32.mrb[0].mxu0
        %v776 = vadd.f32 0.0, %v775
        %v777 = vpop.f32.mrb[0].mxu0
        %778 = vmatprep.mubr.f32.mxu0 0.0
        %779 = vmatmul.mubr.f32.gmra.mrb[0].mxu0 %v612
        %v780 = vpop.f32.mrb[0].mxu0
        %v781 = vadd.f32 0.0, %v780
        %v782 = vpop.f32.mrb[0].mxu0
        %783 = vmatprep.mubr.f32.mxu0 0.0
        %784 = vmatmul.mubr.f32.gmra.mrb[0].mxu0 %v615
        %v785 = vpop.f32.mrb[0].mxu0
        %v786 = vadd.f32 0.0, %v785
        %v787 = vpop.f32.mrb[0].mxu0
        %788 = vmatprep.mubr.f32.mxu0 0.0
        %789 = vmatmul.mubr.f32.gmra.mrb[0].mxu0 %v618
        %v790 = vpop.f32.mrb[0].mxu0
        %v791 = vadd.f32 0.0, %v790
        %v792 = vpop.f32.mrb[0].mxu0
        %793 = vmatprep.mubr.f32.mxu0 0.0
        %794 = vmatmul.mubr.f32.gmra.mrb[0].mxu0 %v621
        %v795 = vpop.f32.mrb[0].mxu0
        %v796 = vadd.f32 0.0, %v795
        %v797 = vpop.f32.mrb[0].mxu0
        %798 = vmatprep.mubr.f32.mxu0 0.0
        %799 = vmatmul.mubr.f32.gmra.mrb[0].mxu0 %v624
        %v800 = vpop.f32.mrb[0].mxu0
        %v801 = vadd.f32 0.0, %v800
        %v802 = vpop.f32.mrb[0].mxu0
        %803 = vmatprep.mubr.f32.mxu0 0.0
        %804 = vmatmul.mubr.f32.gmra.mrb[0].mxu0 %v627
        %v805 = vpop.f32.mrb[0].mxu0
        %v806 = vadd.f32 0.0, %v805
        %v807 = vpop.f32.mrb[0].mxu0
        %808 = vdwg.mxu0
        %v810 = vsel %vm559, %v496, 0
        %v813 = vsel %vm559, %v497, 0
        %v816 = vsel %vm559, %v498, 0
        %v819 = vsel %vm559, %v499, 0
        %v822 = vsel %vm559, %v500, 0
        %v825 = vsel %vm559, %v501, 0
        %v828 = vsel %vm559, %v502, 0
        %v831 = vsel %vm559, %v503, 0
        %v834 = vsel %vm559, %v504, 0
        %v837 = vsel %vm559, %v505, 0
        %v840 = vsel %vm559, %v506, 0
        %v843 = vsel %vm559, %v507, 0
        %v846 = vsel %vm559, %v508, 0
        %v849 = vsel %vm559, %v509, 0
        %v852 = vsel %vm559, %v510, 0
        %v855 = vsel %vm559, %v511, 0
        %v858 = vsel %vm559, %v512, 0
        %v861 = vsel %vm559, %v513, 0
        %v864 = vsel %vm559, %v514, 0
        %v867 = vsel %vm559, %v515, 0
        %v870 = vsel %vm559, %v516, 0
        %v873 = vsel %vm559, %v517, 0
        %v876 = vsel %vm559, %v518, 0
        %878 = vmatprep.subr.mxu0 0.0
        %879 = vmatpush1.msra.mxu0 %v492
        %880 = vmatprep.subr.mxu0 0.0
        %881 = vmatpush1.msra.mxu0 %v493
        %882 = vmatprep.subr.mxu0 0.0
        %883 = vmatpush1.msra.mxu0 %v494
        %884 = vmatprep.subr.mxu0 0.0
        %885 = vmatpush1.msra.mxu0 %v495
        %886 = vmatprep.subr.mxu0 0.0
        %887 = vmatpush1.msra.mxu0 0.0
        %888 = vmatprep.subr.mxu0 0.0
        %889 = vmatpush1.msra.mxu0 0.0
        %890 = vmatprep.subr.mxu0 0.0
        %891 = vmatpush1.msra.mxu0 0.0
        %892 = vmatprep.subr.mxu0 0.0
        %893 = vmatpush1.msra.mxu0 0.0
        %894 = vmatprep.subr.mxu0 0.0
        %895 = vmatpush1.msra.mxu0 0.0
        %896 = vmatprep.subr.mxu0 0.0
        %897 = vmatpush1.msra.mxu0 0.0
        %898 = vmatprep.subr.mxu0 0.0
        %899 = vmatpush1.msra.mxu0 0.0
        %900 = vmatprep.subr.mxu0 0.0
        %901 = vmatpush1.msra.mxu0 0.0
        %902 = vmatprep.subr.mxu0 0.0
        %903 = vmatpush1.msra.mxu0 0.0
        %904 = vmatprep.subr.mxu0 0.0
        %905 = vmatpush1.msra.mxu0 0.0
        %906 = vmatprep.subr.mxu0 0.0
        %907 = vmatpush1.msra.mxu0 0.0
        %908 = vmatprep.subr.mxu0 0.0
        %909 = vmatpush1.msra.mxu0 0.0
        %910 = vmatprep.subr.mxu0 0.0
        %911 = vmatpush1.msra.mxu0 0.0
        %912 = vmatprep.subr.mxu0 0.0
        %913 = vmatpush1.msra.mxu0 0.0
        %914 = vmatprep.subr.mxu0 0.0
        %915 = vmatpush1.msra.mxu0 0.0
        %916 = vmatprep.subr.mxu0 0.0
        %917 = vmatpush1.msra.mxu0 0.0
        %918 = vmatprep.subr.mxu0 0.0
        %919 = vmatpush1.msra.mxu0 0.0
        %920 = vmatprep.subr.mxu0 0.0
        %921 = vmatpush1.msra.mxu0 0.0
        %922 = vmatprep.subr.mxu0 0.0
        %923 = vmatpush1.msra.mxu0 0.0
        %924 = vmatprep.subr.mxu0 0.0
        %925 = vmatpush1.msra.mxu0 0.0
        %926 = vmatprep.subr.mxu0 0.0
        %927 = vmatpush1.msra.mxu0 0.0
        %928 = vmatprep.subr.mxu0 0.0
        %929 = vmatpush1.msra.mxu0 0.0
        %930 = vmatprep.subr.mxu0 0.0
        %931 = vmatpush1.msra.mxu0 0.0
        %932 = vmatprep.subr.mxu0 0.0
        %933 = vmatpush1.msra.mxu0 0.0
        %934 = vmatprep.subr.mxu0 0.0
        %935 = vmatpush1.msra.mxu0 0.0
        %936 = vmatprep.subr.mxu0 0.0
        %937 = vmatpush1.msra.mxu0 0.0
        %938 = vmatprep.subr.mxu0 0.0
        %939 = vmatpush1.msra.mxu0 0.0
        %940 = vmatprep.subr.mxu0 0.0
        %941 = vmatpush1.msra.mxu0 0.0
        %942 = vmatprep.mubr.f32.mxu0 0.0
        %943 = vmatmul.mubr.f32.gmra.mrb[0].mxu0 %v810
        %v944 = vpop.f32.mrb[0].mxu0
        %v945 = vadd.f32 %v696, %v944
        %v946 = vpop.f32.mrb[0].mxu0
        %947 = vmatprep.mubr.f32.mxu0 0.0
        %948 = vmatmul.mubr.f32.gmra.mrb[0].mxu0 %v813
        %v949 = vpop.f32.mrb[0].mxu0
        %v950 = vadd.f32 %v701, %v949
        %v951 = vpop.f32.mrb[0].mxu0
        %952 = vmatprep.mubr.f32.mxu0 0.0
        %953 = vmatmul.mubr.f32.gmra.mrb[0].mxu0 %v816
        %v954 = vpop.f32.mrb[0].mxu0
        %v955 = vadd.f32 %v706, %v954
        %v956 = vpop.f32.mrb[0].mxu0
        %957 = vmatprep.mubr.f32.mxu0 0.0
        %958 = vmatmul.mubr.f32.gmra.mrb[0].mxu0 %v819
        %v959 = vpop.f32.mrb[0].mxu0
        %v960 = vadd.f32 %v711, %v959
        %v961 = vpop.f32.mrb[0].mxu0
        %962 = vmatprep.mubr.f32.mxu0 0.0
        %963 = vmatmul.mubr.f32.gmra.mrb[0].mxu0 %v822
        %v964 = vpop.f32.mrb[0].mxu0
        %v965 = vadd.f32 %v716, %v964
        %v966 = vpop.f32.mrb[0].mxu0
        %967 = vmatprep.mubr.f32.mxu0 0.0
        %968 = vmatmul.mubr.f32.gmra.mrb[0].mxu0 %v825
        %v969 = vpop.f32.mrb[0].mxu0
        %v970 = vadd.f32 %v721, %v969
        %v971 = vpop.f32.mrb[0].mxu0
        %972 = vmatprep.mubr.f32.mxu0 0.0
        %973 = vmatmul.mubr.f32.gmra.mrb[0].mxu0 %v828
        %v974 = vpop.f32.mrb[0].mxu0
        %v975 = vadd.f32 %v726, %v974
        %v976 = vpop.f32.mrb[0].mxu0
        %977 = vmatprep.mubr.f32.mxu0 0.0
        %978 = vmatmul.mubr.f32.gmra.mrb[0].mxu0 %v831
        %v979 = vpop.f32.mrb[0].mxu0
        %v980 = vadd.f32 %v731, %v979
        %v981 = vpop.f32.mrb[0].mxu0
        %982 = vmatprep.mubr.f32.mxu0 0.0
        %983 = vmatmul.mubr.f32.gmra.mrb[0].mxu0 %v834
        %v984 = vpop.f32.mrb[0].mxu0
        %v985 = vadd.f32 %v736, %v984
        %v986 = vpop.f32.mrb[0].mxu0
        %987 = vmatprep.mubr.f32.mxu0 0.0
        %988 = vmatmul.mubr.f32.gmra.mrb[0].mxu0 %v837
        %v989 = vpop.f32.mrb[0].mxu0
        %v990 = vadd.f32 %v741, %v989
        %v991 = vpop.f32.mrb[0].mxu0
        %992 = vmatprep.mubr.f32.mxu0 0.0
        %993 = vmatmul.mubr.f32.gmra.mrb[0].mxu0 %v840
        %v994 = vpop.f32.mrb[0].mxu0
        %v995 = vadd.f32 %v746, %v994
        %v996 = vpop.f32.mrb[0].mxu0
        %997 = vmatprep.mubr.f32.mxu0 0.0
        %998 = vmatmul.mubr.f32.gmra.mrb[0].mxu0 %v843
        %v999 = vpop.f32.mrb[0].mxu0
        %v1000 = vadd.f32 %v751, %v999
        %v1001 = vpop.f32.mrb[0].mxu0
        %1002 = vmatprep.mubr.f32.mxu0 0.0
        %1003 = vmatmul.mubr.f32.gmra.mrb[0].mxu0 %v846
        %v1004 = vpop.f32.mrb[0].mxu0
        %v1005 = vadd.f32 %v756, %v1004
        %v1006 = vpop.f32.mrb[0].mxu0
        %1007 = vmatprep.mubr.f32.mxu0 0.0
        %1008 = vmatmul.mubr.f32.gmra.mrb[0].mxu0 %v849
        %v1009 = vpop.f32.mrb[0].mxu0
        %v1010 = vadd.f32 %v761, %v1009
        %v1011 = vpop.f32.mrb[0].mxu0
        %1012 = vmatprep.mubr.f32.mxu0 0.0
        %1013 = vmatmul.mubr.f32.gmra.mrb[0].mxu0 %v852
        %v1014 = vpop.f32.mrb[0].mxu0
        %v1015 = vadd.f32 %v766, %v1014
        %v1016 = vpop.f32.mrb[0].mxu0
        %1017 = vmatprep.mubr.f32.mxu0 0.0
        %1018 = vmatmul.mubr.f32.gmra.mrb[0].mxu0 %v855
        %v1019 = vpop.f32.mrb[0].mxu0
        %v1020 = vadd.f32 %v771, %v1019
        %v1021 = vpop.f32.mrb[0].mxu0
        %1022 = vmatprep.mubr.f32.mxu0 0.0
        %1023 = vmatmul.mubr.f32.gmra.mrb[0].mxu0 %v858
        %v1024 = vpop.f32.mrb[0].mxu0
        %v1025 = vadd.f32 %v776, %v1024
        %v1026 = vpop.f32.mrb[0].mxu0
        %1027 = vmatprep.mubr.f32.mxu0 0.0
        %1028 = vmatmul.mubr.f32.gmra.mrb[0].mxu0 %v861
        %v1029 = vpop.f32.mrb[0].mxu0
        %v1030 = vadd.f32 %v781, %v1029
        %v1031 = vpop.f32.mrb[0].mxu0
        %1032 = vmatprep.mubr.f32.mxu0 0.0
        %1033 = vmatmul.mubr.f32.gmra.mrb[0].mxu0 %v864
        %v1034 = vpop.f32.mrb[0].mxu0
        %v1035 = vadd.f32 %v786, %v1034
        %v1036 = vpop.f32.mrb[0].mxu0
        %1037 = vmatprep.mubr.f32.mxu0 0.0
        %1038 = vmatmul.mubr.f32.gmra.mrb[0].mxu0 %v867
        %v1039 = vpop.f32.mrb[0].mxu0
        %v1040 = vadd.f32 %v791, %v1039
        %v1041 = vpop.f32.mrb[0].mxu0
        %1042 = vmatprep.mubr.f32.mxu0 0.0
        %1043 = vmatmul.mubr.f32.gmra.mrb[0].mxu0 %v870
        %v1044 = vpop.f32.mrb[0].mxu0
        %v1045 = vadd.f32 %v796, %v1044
        %v1046 = vpop.f32.mrb[0].mxu0
        %1047 = vmatprep.mubr.f32.mxu0 0.0
        %1048 = vmatmul.mubr.f32.gmra.mrb[0].mxu0 %v873
        %v1049 = vpop.f32.mrb[0].mxu0
        %v1050 = vadd.f32 %v801, %v1049
        %v1051 = vpop.f32.mrb[0].mxu0
        %1052 = vmatprep.mubr.f32.mxu0 0.0
        %1053 = vmatmul.mubr.f32.gmra.mrb[0].mxu0 %v876
        %v1054 = vpop.f32.mrb[0].mxu0
        %v1055 = vadd.f32 %v806, %v1054
        %v1056 = vpop.f32.mrb[0].mxu0
        %1057 = vdwg.mxu0
        %s1058 = scalar_lea.vmem %s1, 368
        %v1059 = vld [vmem:[%s1058] sm:$0xff]
        %v1060 = vld [vmem:[%s1058 + $0x8] sm:$0xff]
        %v1061 = vld [vmem:[%s1058 + $0x10] sm:$0xff]
        %v1062 = vld [vmem:[%s1058 + $0x18] sm:$0xff]
        %v1063 = vld [vmem:[%s1058 + $0x20] sm:$0xff]
        %v1064 = vld [vmem:[%s1058 + $0x28] sm:$0xff]
        %v1065 = vld [vmem:[%s1058 + $0x30] sm:$0xff]
        %v1066 = vld [vmem:[%s1058 + $0x38] sm:$0xff]
        %v1067 = vld [vmem:[%s1058 + $0x40] sm:$0xff]
        %v1068 = vld [vmem:[%s1058 + $0x48] sm:$0xff]
        %v1069 = vld [vmem:[%s1058 + $0x50] sm:$0xff]
        %v1070 = vld [vmem:[%s1058 + $0x58] sm:$0xff]
        %v1071 = vld [vmem:[%s1058 + $0x60] sm:$0xff]
        %v1072 = vld [vmem:[%s1058 + $0x68] sm:$0xff]
        %v1073 = vld [vmem:[%s1058 + $0x70] sm:$0xff]
        %v1074 = vld [vmem:[%s1058 + $0x78] sm:$0xff]
        %v1075 = vld [vmem:[%s1058 + $0x80] sm:$0xff]
        %v1076 = vld [vmem:[%s1058 + $0x88] sm:$0xff]
        %v1077 = vld [vmem:[%s1058 + $0x90] sm:$0xff]
        %v1078 = vld [vmem:[%s1058 + $0x98] sm:$0xff]
        %v1079 = vld [vmem:[%s1058 + $0xa0] sm:$0xff]
        %v1080 = vld [vmem:[%s1058 + $0xa8] sm:$0xff]
        %v1081 = vld [vmem:[%s1058 + $0xb0] sm:$0xf]
        %1082 = vrot.lane.b32.xlu0 %v492, 126
        %v1083 = vpop.permute.xlu0 %1082
        %1084 = vrot.lane.b32.xlu0 %v493, 126
        %v1085 = vpop.permute.xlu0 %1084
        %1086 = vrot.lane.b32.xlu0 %v494, 126
        %v1087 = vpop.permute.xlu0 %1086
        %1088 = vrot.lane.b32.xlu0 %v495, 126
        %v1089 = vpop.permute.xlu0 %1088
        %v1095 = vsel %vm559, %v1059, 0
        %v1098 = vsel %vm559, %v1060, 0
        %v1101 = vsel %vm559, %v1061, 0
        %v1104 = vsel %vm559, %v1062, 0
        %v1107 = vsel %vm559, %v1063, 0
        %v1110 = vsel %vm559, %v1064, 0
        %v1113 = vsel %vm559, %v1065, 0
        %v1116 = vsel %vm559, %v1066, 0
        %v1119 = vsel %vm559, %v1067, 0
        %v1122 = vsel %vm559, %v1068, 0
        %v1125 = vsel %vm559, %v1069, 0
        %v1128 = vsel %vm559, %v1070, 0
        %v1131 = vsel %vm559, %v1071, 0
        %v1134 = vsel %vm559, %v1072, 0
        %v1137 = vsel %vm559, %v1073, 0
        %v1140 = vsel %vm559, %v1074, 0
        %v1143 = vsel %vm559, %v1075, 0
        %v1146 = vsel %vm559, %v1076, 0
        %v1149 = vsel %vm559, %v1077, 0
        %v1152 = vsel %vm559, %v1078, 0
        %v1155 = vsel %vm559, %v1079, 0
        %v1158 = vsel %vm559, %v1080, 0
        %v1161 = vsel %vm559, %v1081, 0
        %1163 = vmatprep.subr.mxu0 0.0
        %1164 = vmatpush1.msra.mxu0 %v1083
        %1165 = vmatprep.subr.mxu0 0.0
        %1166 = vmatpush1.msra.mxu0 %v1085
        %1167 = vmatprep.subr.mxu0 0.0
        %1168 = vmatpush1.msra.mxu0 %v1087
        %1169 = vmatprep.subr.mxu0 0.0
        %1170 = vmatpush1.msra.mxu0 %v1089
        %1171 = vmatprep.subr.mxu0 0.0
        %1172 = vmatpush1.msra.mxu0 0.0
        %1173 = vmatprep.subr.mxu0 0.0
        %1174 = vmatpush1.msra.mxu0 0.0
        %1175 = vmatprep.subr.mxu0 0.0
        %1176 = vmatpush1.msra.mxu0 0.0
        %1177 = vmatprep.subr.mxu0 0.0
        %1178 = vmatpush1.msra.mxu0 0.0
        %1179 = vmatprep.subr.mxu0 0.0
        %1180 = vmatpush1.msra.mxu0 0.0
        %1181 = vmatprep.subr.mxu0 0.0
        %1182 = vmatpush1.msra.mxu0 0.0
        %1183 = vmatprep.subr.mxu0 0.0
        %1184 = vmatpush1.msra.mxu0 0.0
        %1185 = vmatprep.subr.mxu0 0.0
        %1186 = vmatpush1.msra.mxu0 0.0
        %1187 = vmatprep.subr.mxu0 0.0
        %1188 = vmatpush1.msra.mxu0 0.0
        %1189 = vmatprep.subr.mxu0 0.0
        %1190 = vmatpush1.msra.mxu0 0.0
        %1191 = vmatprep.subr.mxu0 0.0
        %1192 = vmatpush1.msra.mxu0 0.0
        %1193 = vmatprep.subr.mxu0 0.0
        %1194 = vmatpush1.msra.mxu0 0.0
        %1195 = vmatprep.subr.mxu0 0.0
        %1196 = vmatpush1.msra.mxu0 0.0
        %1197 = vmatprep.subr.mxu0 0.0
        %1198 = vmatpush1.msra.mxu0 0.0
        %1199 = vmatprep.subr.mxu0 0.0
        %1200 = vmatpush1.msra.mxu0 0.0
        %1201 = vmatprep.subr.mxu0 0.0
        %1202 = vmatpush1.msra.mxu0 0.0
        %1203 = vmatprep.subr.mxu0 0.0
        %1204 = vmatpush1.msra.mxu0 0.0
        %1205 = vmatprep.subr.mxu0 0.0
        %1206 = vmatpush1.msra.mxu0 0.0
        %1207 = vmatprep.subr.mxu0 0.0
        %1208 = vmatpush1.msra.mxu0 0.0
        %1209 = vmatprep.subr.mxu0 0.0
        %1210 = vmatpush1.msra.mxu0 0.0
        %1211 = vmatprep.subr.mxu0 0.0
        %1212 = vmatpush1.msra.mxu0 0.0
        %1213 = vmatprep.subr.mxu0 0.0
        %1214 = vmatpush1.msra.mxu0 0.0
        %1215 = vmatprep.subr.mxu0 0.0
        %1216 = vmatpush1.msra.mxu0 0.0
        %1217 = vmatprep.subr.mxu0 0.0
        %1218 = vmatpush1.msra.mxu0 0.0
        %1219 = vmatprep.subr.mxu0 0.0
        %1220 = vmatpush1.msra.mxu0 0.0
        %1221 = vmatprep.subr.mxu0 0.0
        %1222 = vmatpush1.msra.mxu0 0.0
        %1223 = vmatprep.subr.mxu0 0.0
        %1224 = vmatpush1.msra.mxu0 0.0
        %1225 = vmatprep.subr.mxu0 0.0
        %1226 = vmatpush1.msra.mxu0 0.0
        %1227 = vmatprep.mubr.f32.mxu0 0.0
        %1228 = vmatmul.mubr.f32.gmra.mrb[0].mxu0 %v1095
        %v1229 = vpop.f32.mrb[0].mxu0
        %v1230 = vadd.f32 0.0, %v1229
        %v1231 = vpop.f32.mrb[0].mxu0
        %1232 = vmatprep.mubr.f32.mxu0 0.0
        %1233 = vmatmul.mubr.f32.gmra.mrb[0].mxu0 %v1098
        %v1234 = vpop.f32.mrb[0].mxu0
        %v1235 = vadd.f32 0.0, %v1234
        %v1236 = vpop.f32.mrb[0].mxu0
        %1237 = vmatprep.mubr.f32.mxu0 0.0
        %1238 = vmatmul.mubr.f32.gmra.mrb[0].mxu0 %v1101
        %v1239 = vpop.f32.mrb[0].mxu0
        %v1240 = vadd.f32 0.0, %v1239
        %v1241 = vpop.f32.mrb[0].mxu0
        %1242 = vmatprep.mubr.f32.mxu0 0.0
        %1243 = vmatmul.mubr.f32.gmra.mrb[0].mxu0 %v1104
        %v1244 = vpop.f32.mrb[0].mxu0
        %v1245 = vadd.f32 0.0, %v1244
        %v1246 = vpop.f32.mrb[0].mxu0
        %1247 = vmatprep.mubr.f32.mxu0 0.0
        %1248 = vmatmul.mubr.f32.gmra.mrb[0].mxu0 %v1107
        %v1249 = vpop.f32.mrb[0].mxu0
        %v1250 = vadd.f32 0.0, %v1249
        %v1251 = vpop.f32.mrb[0].mxu0
        %1252 = vmatprep.mubr.f32.mxu0 0.0
        %1253 = vmatmul.mubr.f32.gmra.mrb[0].mxu0 %v1110
        %v1254 = vpop.f32.mrb[0].mxu0
        %v1255 = vadd.f32 0.0, %v1254
        %v1256 = vpop.f32.mrb[0].mxu0
        %1257 = vmatprep.mubr.f32.mxu0 0.0
        %1258 = vmatmul.mubr.f32.gmra.mrb[0].mxu0 %v1113
        %v1259 = vpop.f32.mrb[0].mxu0
        %v1260 = vadd.f32 0.0, %v1259
        %v1261 = vpop.f32.mrb[0].mxu0
        %1262 = vmatprep.mubr.f32.mxu0 0.0
        %1263 = vmatmul.mubr.f32.gmra.mrb[0].mxu0 %v1116
        %v1264 = vpop.f32.mrb[0].mxu0
        %v1265 = vadd.f32 0.0, %v1264
        %v1266 = vpop.f32.mrb[0].mxu0
        %1267 = vmatprep.mubr.f32.mxu0 0.0
        %1268 = vmatmul.mubr.f32.gmra.mrb[0].mxu0 %v1119
        %v1269 = vpop.f32.mrb[0].mxu0
        %v1270 = vadd.f32 0.0, %v1269
        %v1271 = vpop.f32.mrb[0].mxu0
        %1272 = vmatprep.mubr.f32.mxu0 0.0
        %1273 = vmatmul.mubr.f32.gmra.mrb[0].mxu0 %v1122
        %v1274 = vpop.f32.mrb[0].mxu0
        %v1275 = vadd.f32 0.0, %v1274
        %v1276 = vpop.f32.mrb[0].mxu0
        %1277 = vmatprep.mubr.f32.mxu0 0.0
        %1278 = vmatmul.mubr.f32.gmra.mrb[0].mxu0 %v1125
        %v1279 = vpop.f32.mrb[0].mxu0
        %v1280 = vadd.f32 0.0, %v1279
        %v1281 = vpop.f32.mrb[0].mxu0
        %1282 = vmatprep.mubr.f32.mxu0 0.0
        %1283 = vmatmul.mubr.f32.gmra.mrb[0].mxu0 %v1128
        %v1284 = vpop.f32.mrb[0].mxu0
        %v1285 = vadd.f32 0.0, %v1284
        %v1286 = vpop.f32.mrb[0].mxu0
        %1287 = vmatprep.mubr.f32.mxu0 0.0
        %1288 = vmatmul.mubr.f32.gmra.mrb[0].mxu0 %v1131
        %v1289 = vpop.f32.mrb[0].mxu0
        %v1290 = vadd.f32 0.0, %v1289
        %v1291 = vpop.f32.mrb[0].mxu0
        %1292 = vmatprep.mubr.f32.mxu0 0.0
        %1293 = vmatmul.mubr.f32.gmra.mrb[0].mxu0 %v1134
        %v1294 = vpop.f32.mrb[0].mxu0
        %v1295 = vadd.f32 0.0, %v1294
        %v1296 = vpop.f32.mrb[0].mxu0
        %1297 = vmatprep.mubr.f32.mxu0 0.0
        %1298 = vmatmul.mubr.f32.gmra.mrb[0].mxu0 %v1137
        %v1299 = vpop.f32.mrb[0].mxu0
        %v1300 = vadd.f32 0.0, %v1299
        %v1301 = vpop.f32.mrb[0].mxu0
        %1302 = vmatprep.mubr.f32.mxu0 0.0
        %1303 = vmatmul.mubr.f32.gmra.mrb[0].mxu0 %v1140
        %v1304 = vpop.f32.mrb[0].mxu0
        %v1305 = vadd.f32 0.0, %v1304
        %v1306 = vpop.f32.mrb[0].mxu0
        %1307 = vmatprep.mubr.f32.mxu0 0.0
        %1308 = vmatmul.mubr.f32.gmra.mrb[0].mxu0 %v1143
        %v1309 = vpop.f32.mrb[0].mxu0
        %v1310 = vadd.f32 0.0, %v1309
        %v1311 = vpop.f32.mrb[0].mxu0
        %1312 = vmatprep.mubr.f32.mxu0 0.0
        %1313 = vmatmul.mubr.f32.gmra.mrb[0].mxu0 %v1146
        %v1314 = vpop.f32.mrb[0].mxu0
        %v1315 = vadd.f32 0.0, %v1314
        %v1316 = vpop.f32.mrb[0].mxu0
        %1317 = vmatprep.mubr.f32.mxu0 0.0
        %1318 = vmatmul.mubr.f32.gmra.mrb[0].mxu0 %v1149
        %v1319 = vpop.f32.mrb[0].mxu0
        %v1320 = vadd.f32 0.0, %v1319
        %v1321 = vpop.f32.mrb[0].mxu0
        %1322 = vmatprep.mubr.f32.mxu0 0.0
        %1323 = vmatmul.mubr.f32.gmra.mrb[0].mxu0 %v1152
        %v1324 = vpop.f32.mrb[0].mxu0
        %v1325 = vadd.f32 0.0, %v1324
        %v1326 = vpop.f32.mrb[0].mxu0
        %1327 = vmatprep.mubr.f32.mxu0 0.0
        %1328 = vmatmul.mubr.f32.gmra.mrb[0].mxu0 %v1155
        %v1329 = vpop.f32.mrb[0].mxu0
        %v1330 = vadd.f32 0.0, %v1329
        %v1331 = vpop.f32.mrb[0].mxu0
        %1332 = vmatprep.mubr.f32.mxu0 0.0
        %1333 = vmatmul.mubr.f32.gmra.mrb[0].mxu0 %v1158
        %v1334 = vpop.f32.mrb[0].mxu0
        %v1335 = vadd.f32 0.0, %v1334
        %v1336 = vpop.f32.mrb[0].mxu0
        %1337 = vmatprep.mubr.f32.mxu0 0.0
        %1338 = vmatmul.mubr.f32.gmra.mrb[0].mxu0 %v1161
        %v1339 = vpop.f32.mrb[0].mxu0
        %v1340 = vadd.f32 0.0, %v1339
        %v1341 = vpop.f32.mrb[0].mxu0
        %1342 = vdwg.mxu0
        %v1343 = vadd.f32 %v945, %v1230
        %v1344 = vadd.f32 %v950, %v1235
        %v1345 = vadd.f32 %v955, %v1240
        %v1346 = vadd.f32 %v960, %v1245
        %v1347 = vadd.f32 %v965, %v1250
        %v1348 = vadd.f32 %v970, %v1255
        %v1349 = vadd.f32 %v975, %v1260
        %v1350 = vadd.f32 %v980, %v1265
        %v1351 = vadd.f32 %v985, %v1270
        %v1352 = vadd.f32 %v990, %v1275
        %v1353 = vadd.f32 %v995, %v1280
        %v1354 = vadd.f32 %v1000, %v1285
        %v1355 = vadd.f32 %v1005, %v1290
        %v1356 = vadd.f32 %v1010, %v1295
        %v1357 = vadd.f32 %v1015, %v1300
        %v1358 = vadd.f32 %v1020, %v1305
        %v1359 = vadd.f32 %v1025, %v1310
        %v1360 = vadd.f32 %v1030, %v1315
        %v1361 = vadd.f32 %v1035, %v1320
        %v1362 = vadd.f32 %v1040, %v1325
        %v1363 = vadd.f32 %v1045, %v1330
        %v1364 = vadd.f32 %v1050, %v1335
        %v1365 = vadd.f32 %v1055, %v1340
        %v1366 = vld [vmem:[%s2] sm:$0xff]
        %v1367 = vld [vmem:[%s2 + $0x8] sm:$0xff]
        %v1368 = vld [vmem:[%s2 + $0x10] sm:$0xff]
        %v1369 = vld [vmem:[%s2 + $0x18] sm:$0xff]
        %v1370 = vld [vmem:[%s2 + $0x20] sm:$0xff]
        %v1371 = vld [vmem:[%s2 + $0x28] sm:$0xff]
        %v1372 = vld [vmem:[%s2 + $0x30] sm:$0xff]
        %v1373 = vld [vmem:[%s2 + $0x38] sm:$0xff]
        %v1374 = vld [vmem:[%s2 + $0x40] sm:$0xff]
        %v1375 = vld [vmem:[%s2 + $0x48] sm:$0xff]
        %v1376 = vld [vmem:[%s2 + $0x50] sm:$0xff]
        %v1377 = vld [vmem:[%s2 + $0x58] sm:$0xff]
        %v1378 = vld [vmem:[%s2 + $0x60] sm:$0xff]
        %v1379 = vld [vmem:[%s2 + $0x68] sm:$0xff]
        %v1380 = vld [vmem:[%s2 + $0x70] sm:$0xff]
        %v1381 = vld [vmem:[%s2 + $0x78] sm:$0xff]
        %v1382 = vld [vmem:[%s2 + $0x80] sm:$0xff]
        %v1383 = vld [vmem:[%s2 + $0x88] sm:$0xff]
        %v1384 = vld [vmem:[%s2 + $0x90] sm:$0xff]
        %v1385 = vld [vmem:[%s2 + $0x98] sm:$0xff]
        %v1386 = vld [vmem:[%s2 + $0xa0] sm:$0xff]
        %v1387 = vld [vmem:[%s2 + $0xa8] sm:$0xff]
        %v1388 = vld [vmem:[%s2 + $0xb0] sm:$0xf]
        %1390 = vset.pattern.permute.xlu0 0
        %1391 = vperm.xlu0 %1390, %v1366
        %v1392 = vpop.permute.xlu0 %1391
        %1395 = vset.pattern.permute.xlu0 0
        %1396 = vperm.xlu0 %1395, %v1367
        %v1397 = vpop.permute.xlu0 %1396
        %1400 = vset.pattern.permute.xlu0 0
        %1401 = vperm.xlu0 %1400, %v1368
        %v1402 = vpop.permute.xlu0 %1401
        %1405 = vset.pattern.permute.xlu0 0
        %1406 = vperm.xlu0 %1405, %v1369
        %v1407 = vpop.permute.xlu0 %1406
        %1410 = vset.pattern.permute.xlu0 0
        %1411 = vperm.xlu0 %1410, %v1370
        %v1412 = vpop.permute.xlu0 %1411
        %1415 = vset.pattern.permute.xlu0 0
        %1416 = vperm.xlu0 %1415, %v1371
        %v1417 = vpop.permute.xlu0 %1416
        %1420 = vset.pattern.permute.xlu0 0
        %1421 = vperm.xlu0 %1420, %v1372
        %v1422 = vpop.permute.xlu0 %1421
        %1425 = vset.pattern.permute.xlu0 0
        %1426 = vperm.xlu0 %1425, %v1373
        %v1427 = vpop.permute.xlu0 %1426
        %1430 = vset.pattern.permute.xlu0 0
        %1431 = vperm.xlu0 %1430, %v1374
        %v1432 = vpop.permute.xlu0 %1431
        %1435 = vset.pattern.permute.xlu0 0
        %1436 = vperm.xlu0 %1435, %v1375
        %v1437 = vpop.permute.xlu0 %1436
        %1440 = vset.pattern.permute.xlu0 0
        %1441 = vperm.xlu0 %1440, %v1376
        %v1442 = vpop.permute.xlu0 %1441
        %1445 = vset.pattern.permute.xlu0 0
        %1446 = vperm.xlu0 %1445, %v1377
        %v1447 = vpop.permute.xlu0 %1446
        %1450 = vset.pattern.permute.xlu0 0
        %1451 = vperm.xlu0 %1450, %v1378
        %v1452 = vpop.permute.xlu0 %1451
        %1455 = vset.pattern.permute.xlu0 0
        %1456 = vperm.xlu0 %1455, %v1379
        %v1457 = vpop.permute.xlu0 %1456
        %1460 = vset.pattern.permute.xlu0 0
        %1461 = vperm.xlu0 %1460, %v1380
        %v1462 = vpop.permute.xlu0 %1461
        %1465 = vset.pattern.permute.xlu0 0
        %1466 = vperm.xlu0 %1465, %v1381
        %v1467 = vpop.permute.xlu0 %1466
        %1470 = vset.pattern.permute.xlu0 0
        %1471 = vperm.xlu0 %1470, %v1382
        %v1472 = vpop.permute.xlu0 %1471
        %1475 = vset.pattern.permute.xlu0 0
        %1476 = vperm.xlu0 %1475, %v1383
        %v1477 = vpop.permute.xlu0 %1476
        %1480 = vset.pattern.permute.xlu0 0
        %1481 = vperm.xlu0 %1480, %v1384
        %v1482 = vpop.permute.xlu0 %1481
        %1485 = vset.pattern.permute.xlu0 0
        %1486 = vperm.xlu0 %1485, %v1385
        %v1487 = vpop.permute.xlu0 %1486
        %1490 = vset.pattern.permute.xlu0 0
        %1491 = vperm.xlu0 %1490, %v1386
        %v1492 = vpop.permute.xlu0 %1491
        %1495 = vset.pattern.permute.xlu0 0
        %1496 = vperm.xlu0 %1495, %v1387
        %v1497 = vpop.permute.xlu0 %1496
        %1500 = vset.pattern.permute.xlu0 0
        %1501 = vperm.xlu0 %1500, %v1388
        %v1502 = vpop.permute.xlu0 %1501
        %v1504 = vadd.f32 %v1343, %v1392
        %v1505 = vadd.f32 %v1344, %v1397
        %v1506 = vadd.f32 %v1345, %v1402
        %v1507 = vadd.f32 %v1346, %v1407
        %v1508 = vadd.f32 %v1347, %v1412
        %v1509 = vadd.f32 %v1348, %v1417
        %v1510 = vadd.f32 %v1349, %v1422
        %v1511 = vadd.f32 %v1350, %v1427
        %v1512 = vadd.f32 %v1351, %v1432
        %v1513 = vadd.f32 %v1352, %v1437
        %v1514 = vadd.f32 %v1353, %v1442
        %v1515 = vadd.f32 %v1354, %v1447
        %v1516 = vadd.f32 %v1355, %v1452
        %v1517 = vadd.f32 %v1356, %v1457
        %v1518 = vadd.f32 %v1357, %v1462
        %v1519 = vadd.f32 %v1358, %v1467
        %v1520 = vadd.f32 %v1359, %v1472
        %v1521 = vadd.f32 %v1360, %v1477
        %v1522 = vadd.f32 %v1361, %v1482
        %v1523 = vadd.f32 %v1362, %v1487
        %v1524 = vadd.f32 %v1363, %v1492
        %v1525 = vadd.f32 %v1364, %v1497
        %v1526 = vadd.f32 %v1365, %v1502
        %v1527 = vmax.f32 %v1504, 0.0
        %v1528 = vmax.f32 %v1505, 0.0
        %v1529 = vmax.f32 %v1506, 0.0
        %v1530 = vmax.f32 %v1507, 0.0
        %v1531 = vmax.f32 %v1508, 0.0
        %v1532 = vmax.f32 %v1509, 0.0
        %v1533 = vmax.f32 %v1510, 0.0
        %v1534 = vmax.f32 %v1511, 0.0
        %v1535 = vmax.f32 %v1512, 0.0
        %v1536 = vmax.f32 %v1513, 0.0
        %v1537 = vmax.f32 %v1514, 0.0
        %v1538 = vmax.f32 %v1515, 0.0
        %v1539 = vmax.f32 %v1516, 0.0
        %v1540 = vmax.f32 %v1517, 0.0
        %v1541 = vmax.f32 %v1518, 0.0
        %v1542 = vmax.f32 %v1519, 0.0
        %v1543 = vmax.f32 %v1520, 0.0
        %v1544 = vmax.f32 %v1521, 0.0
        %v1545 = vmax.f32 %v1522, 0.0
        %v1546 = vmax.f32 %v1523, 0.0
        %v1547 = vmax.f32 %v1524, 0.0
        %v1548 = vmax.f32 %v1525, 0.0
        %v1549 = vmax.f32 %v1526, 0.0
        %v1550 = vld [vmem:[%s3] sm:$0xff]
        %v1551 = vld [vmem:[%s3 + $0x8] sm:$0xff]
        %v1552 = vld [vmem:[%s3 + $0x10] sm:$0xff]
        %v1553 = vld [vmem:[%s3 + $0x18] sm:$0xff]
        %v1554 = vld [vmem:[%s3 + $0x20] sm:$0xff]
        %v1555 = vld [vmem:[%s3 + $0x28] sm:$0xff]
        %v1556 = vld [vmem:[%s3 + $0x30] sm:$0xff]
        %v1557 = vld [vmem:[%s3 + $0x38] sm:$0xff]
        %v1558 = vld [vmem:[%s3 + $0x40] sm:$0xff]
        %v1559 = vld [vmem:[%s3 + $0x48] sm:$0xff]
        %v1560 = vld [vmem:[%s3 + $0x50] sm:$0xff]
        %v1561 = vld [vmem:[%s3 + $0x58] sm:$0xff]
        %v1562 = vld [vmem:[%s3 + $0x60] sm:$0xff]
        %v1563 = vld [vmem:[%s3 + $0x68] sm:$0xff]
        %v1564 = vld [vmem:[%s3 + $0x70] sm:$0xff]
        %v1565 = vld [vmem:[%s3 + $0x78] sm:$0xff]
        %v1566 = vld [vmem:[%s3 + $0x80] sm:$0xff]
        %v1567 = vld [vmem:[%s3 + $0x88] sm:$0xff]
        %v1568 = vld [vmem:[%s3 + $0x90] sm:$0xff]
        %v1569 = vld [vmem:[%s3 + $0x98] sm:$0xff]
        %v1570 = vld [vmem:[%s3 + $0xa0] sm:$0xff]
        %v1571 = vld [vmem:[%s3 + $0xa8] sm:$0xff]
        %v1572 = vld [vmem:[%s3 + $0xb0] sm:$0x3]
        %v1573 = vld [vmem:[%s3 + $0xb8] sm:$0x3]
        %vm1574 = vcmask 424960
        %v1576 = vsel %vm1574, %v1551, 0
        %v1579 = vsel %vm1574, %v1553, 0
        %v1582 = vsel %vm1574, %v1555, 0
        %v1585 = vsel %vm1574, %v1557, 0
        %v1588 = vsel %vm1574, %v1559, 0
        %v1591 = vsel %vm1574, %v1561, 0
        %v1594 = vsel %vm1574, %v1563, 0
        %v1597 = vsel %vm1574, %v1565, 0
        %v1600 = vsel %vm1574, %v1567, 0
        %v1603 = vsel %vm1574, %v1569, 0
        %v1606 = vsel %vm1574, %v1571, 0
        %v1609 = vsel %vm1574, %v1573, 0
        %vm1611 = vcmask 1043456
        %v1613 = vsel %vm1611, %v1549, 0
        %1615 = vmatprep.subr.mxu0 0.0
        %1616 = vmatpush1.msra.mxu0 %v1527
        %1617 = vmatprep.subr.mxu0 0.0
        %1618 = vmatpush1.msra.mxu0 %v1528
        %1619 = vmatprep.subr.mxu0 0.0
        %1620 = vmatpush1.msra.mxu0 %v1529
        %1621 = vmatprep.subr.mxu0 0.0
        %1622 = vmatpush1.msra.mxu0 %v1530
        %1623 = vmatprep.subr.mxu0 0.0
        %1624 = vmatpush1.msra.mxu0 %v1531
        %1625 = vmatprep.subr.mxu0 0.0
        %1626 = vmatpush1.msra.mxu0 %v1532
        %1627 = vmatprep.subr.mxu0 0.0
        %1628 = vmatpush1.msra.mxu0 %v1533
        %1629 = vmatprep.subr.mxu0 0.0
        %1630 = vmatpush1.msra.mxu0 %v1534
        %1631 = vmatprep.subr.mxu0 0.0
        %1632 = vmatpush1.msra.mxu0 %v1535
        %1633 = vmatprep.subr.mxu0 0.0
        %1634 = vmatpush1.msra.mxu0 %v1536
        %1635 = vmatprep.subr.mxu0 0.0
        %1636 = vmatpush1.msra.mxu0 %v1537
        %1637 = vmatprep.subr.mxu0 0.0
        %1638 = vmatpush1.msra.mxu0 %v1538
        %1639 = vmatprep.subr.mxu0 0.0
        %1640 = vmatpush1.msra.mxu0 %v1539
        %1641 = vmatprep.subr.mxu0 0.0
        %1642 = vmatpush1.msra.mxu0 %v1540
        %1643 = vmatprep.subr.mxu0 0.0
        %1644 = vmatpush1.msra.mxu0 %v1541
        %1645 = vmatprep.subr.mxu0 0.0
        %1646 = vmatpush1.msra.mxu0 %v1542
        %1647 = vmatprep.subr.mxu0 0.0
        %1648 = vmatpush1.msra.mxu0 %v1543
        %1649 = vmatprep.subr.mxu0 0.0
        %1650 = vmatpush1.msra.mxu0 %v1544
        %1651 = vmatprep.subr.mxu0 0.0
        %1652 = vmatpush1.msra.mxu0 %v1545
        %1653 = vmatprep.subr.mxu0 0.0
        %1654 = vmatpush1.msra.mxu0 %v1546
        %1655 = vmatprep.subr.mxu0 0.0
        %1656 = vmatpush1.msra.mxu0 %v1547
        %1657 = vmatprep.subr.mxu0 0.0
        %1658 = vmatpush1.msra.mxu0 %v1548
        %1659 = vmatprep.subr.mxu0 0.0
        %1660 = vmatpush1.msra.mxu0 %v1613
        %1661 = vmatprep.subr.mxu0 0.0
        %1662 = vmatpush1.msra.mxu0 0.0
        %1663 = vmatprep.subr.mxu0 0.0
        %1664 = vmatpush1.msra.mxu0 0.0
        %1665 = vmatprep.subr.mxu0 0.0
        %1666 = vmatpush1.msra.mxu0 0.0
        %1667 = vmatprep.subr.mxu0 0.0
        %1668 = vmatpush1.msra.mxu0 0.0
        %1669 = vmatprep.subr.mxu0 0.0
        %1670 = vmatpush1.msra.mxu0 0.0
        %1671 = vmatprep.subr.mxu0 0.0
        %1672 = vmatpush1.msra.mxu0 0.0
        %1673 = vmatprep.subr.mxu0 0.0
        %1674 = vmatpush1.msra.mxu0 0.0
        %1675 = vmatprep.subr.mxu0 0.0
        %1676 = vmatpush1.msra.mxu0 0.0
        %1677 = vmatprep.subr.mxu0 0.0
        %1678 = vmatpush1.msra.mxu0 0.0
        %1679 = vmatprep.mubr.f32.mxu0 %v1576
        %1680 = vmatmul.mubr.f32.gmra.mrb[0].mxu0 %v1550
        %v1681 = vpop.f32.mrb[0].mxu0
        %v1682 = vadd.f32 0.0, %v1681
        %v1683 = vpop.f32.mrb[0].mxu0
        %1684 = vmatprep.mubr.f32.mxu0 %v1579
        %1685 = vmatmul.mubr.f32.gmra.mrb[0].mxu0 %v1552
        %v1686 = vpop.f32.mrb[0].mxu0
        %v1687 = vadd.f32 0.0, %v1686
        %v1688 = vpop.f32.mrb[0].mxu0
        %1689 = vmatprep.mubr.f32.mxu0 %v1582
        %1690 = vmatmul.mubr.f32.gmra.mrb[0].mxu0 %v1554
        %v1691 = vpop.f32.mrb[0].mxu0
        %v1692 = vadd.f32 0.0, %v1691
        %v1693 = vpop.f32.mrb[0].mxu0
        %1694 = vmatprep.mubr.f32.mxu0 %v1585
        %1695 = vmatmul.mubr.f32.gmra.mrb[0].mxu0 %v1556
        %v1696 = vpop.f32.mrb[0].mxu0
        %v1697 = vadd.f32 0.0, %v1696
        %v1698 = vpop.f32.mrb[0].mxu0
        %1699 = vmatprep.mubr.f32.mxu0 %v1588
        %1700 = vmatmul.mubr.f32.gmra.mrb[0].mxu0 %v1558
        %v1701 = vpop.f32.mrb[0].mxu0
        %v1702 = vadd.f32 0.0, %v1701
        %v1703 = vpop.f32.mrb[0].mxu0
        %1704 = vmatprep.mubr.f32.mxu0 %v1591
        %1705 = vmatmul.mubr.f32.gmra.mrb[0].mxu0 %v1560
        %v1706 = vpop.f32.mrb[0].mxu0
        %v1707 = vadd.f32 0.0, %v1706
        %v1708 = vpop.f32.mrb[0].mxu0
        %1709 = vmatprep.mubr.f32.mxu0 %v1594
        %1710 = vmatmul.mubr.f32.gmra.mrb[0].mxu0 %v1562
        %v1711 = vpop.f32.mrb[0].mxu0
        %v1712 = vadd.f32 0.0, %v1711
        %v1713 = vpop.f32.mrb[0].mxu0
        %1714 = vmatprep.mubr.f32.mxu0 %v1597
        %1715 = vmatmul.mubr.f32.gmra.mrb[0].mxu0 %v1564
        %v1716 = vpop.f32.mrb[0].mxu0
        %v1717 = vadd.f32 0.0, %v1716
        %v1718 = vpop.f32.mrb[0].mxu0
        %1719 = vmatprep.mubr.f32.mxu0 %v1600
        %1720 = vmatmul.mubr.f32.gmra.mrb[0].mxu0 %v1566
        %v1721 = vpop.f32.mrb[0].mxu0
        %v1722 = vadd.f32 0.0, %v1721
        %v1723 = vpop.f32.mrb[0].mxu0
        %1724 = vmatprep.mubr.f32.mxu0 %v1603
        %1725 = vmatmul.mubr.f32.gmra.mrb[0].mxu0 %v1568
        %v1726 = vpop.f32.mrb[0].mxu0
        %v1727 = vadd.f32 0.0, %v1726
        %v1728 = vpop.f32.mrb[0].mxu0
        %1729 = vmatprep.mubr.f32.mxu0 %v1606
        %1730 = vmatmul.mubr.f32.gmra.mrb[0].mxu0 %v1570
        %v1731 = vpop.f32.mrb[0].mxu0
        %v1732 = vadd.f32 0.0, %v1731
        %v1733 = vpop.f32.mrb[0].mxu0
        %1734 = vmatprep.mubr.f32.mxu0 %v1609
        %1735 = vmatmul.mubr.f32.gmra.mrb[0].mxu0 %v1572
        %v1736 = vpop.f32.mrb[0].mxu0
        %v1737 = vadd.f32 0.0, %v1736
        %v1738 = vpop.f32.mrb[0].mxu0
        %1739 = vdwg.mxu0
        %s1740 = scalar_lea.vmem %s3, 192
        %v1741 = vld [vmem:[%s1740] sm:$0xff]
        %v1742 = vld [vmem:[%s1740 + $0x8] sm:$0xff]
        %v1743 = vld [vmem:[%s1740 + $0x10] sm:$0xff]
        %v1744 = vld [vmem:[%s1740 + $0x18] sm:$0xff]
        %v1745 = vld [vmem:[%s1740 + $0x20] sm:$0xff]
        %v1746 = vld [vmem:[%s1740 + $0x28] sm:$0xff]
        %v1747 = vld [vmem:[%s1740 + $0x30] sm:$0xff]
        %v1748 = vld [vmem:[%s1740 + $0x38] sm:$0xff]
        %v1749 = vld [vmem:[%s1740 + $0x40] sm:$0xff]
        %v1750 = vld [vmem:[%s1740 + $0x48] sm:$0xff]
        %v1751 = vld [vmem:[%s1740 + $0x50] sm:$0xff]
        %v1752 = vld [vmem:[%s1740 + $0x58] sm:$0xff]
        %v1753 = vld [vmem:[%s1740 + $0x60] sm:$0xff]
        %v1754 = vld [vmem:[%s1740 + $0x68] sm:$0xff]
        %v1755 = vld [vmem:[%s1740 + $0x70] sm:$0xff]
        %v1756 = vld [vmem:[%s1740 + $0x78] sm:$0xff]
        %v1757 = vld [vmem:[%s1740 + $0x80] sm:$0xff]
        %v1758 = vld [vmem:[%s1740 + $0x88] sm:$0xff]
        %v1759 = vld [vmem:[%s1740 + $0x90] sm:$0xff]
        %v1760 = vld [vmem:[%s1740 + $0x98] sm:$0xff]
        %v1761 = vld [vmem:[%s1740 + $0xa0] sm:$0xff]
        %v1762 = vld [vmem:[%s1740 + $0xa8] sm:$0xff]
        %v1763 = vld [vmem:[%s1740 + $0xb0] sm:$0x3]
        %v1764 = vld [vmem:[%s1740 + $0xb8] sm:$0x3]
        %v1766 = vsel %vm1574, %v1742, 0
        %v1769 = vsel %vm1574, %v1744, 0
        %v1772 = vsel %vm1574, %v1746, 0
        %v1775 = vsel %vm1574, %v1748, 0
        %v1778 = vsel %vm1574, %v1750, 0
        %v1781 = vsel %vm1574, %v1752, 0
        %v1784 = vsel %vm1574, %v1754, 0
        %v1787 = vsel %vm1574, %v1756, 0
        %v1790 = vsel %vm1574, %v1758, 0
        %v1793 = vsel %vm1574, %v1760, 0
        %v1796 = vsel %vm1574, %v1762, 0
        %v1799 = vsel %vm1574, %v1764, 0
        %1801 = vmatprep.subr.mxu0 0.0
        %1802 = vmatpush1.msra.mxu0 %v1527
        %1803 = vmatprep.subr.mxu0 0.0
        %1804 = vmatpush1.msra.mxu0 %v1528
        %1805 = vmatprep.subr.mxu0 0.0
        %1806 = vmatpush1.msra.mxu0 %v1529
        %1807 = vmatprep.subr.mxu0 0.0
        %1808 = vmatpush1.msra.mxu0 %v1530
        %1809 = vmatprep.subr.mxu0 0.0
        %1810 = vmatpush1.msra.mxu0 %v1531
        %1811 = vmatprep.subr.mxu0 0.0
        %1812 = vmatpush1.msra.mxu0 %v1532
        %1813 = vmatprep.subr.mxu0 0.0
        %1814 = vmatpush1.msra.mxu0 %v1533
        %1815 = vmatprep.subr.mxu0 0.0
        %1816 = vmatpush1.msra.mxu0 %v1534
        %1817 = vmatprep.subr.mxu0 0.0
        %1818 = vmatpush1.msra.mxu0 %v1535
        %1819 = vmatprep.subr.mxu0 0.0
        %1820 = vmatpush1.msra.mxu0 %v1536
        %1821 = vmatprep.subr.mxu0 0.0
        %1822 = vmatpush1.msra.mxu0 %v1537
        %1823 = vmatprep.subr.mxu0 0.0
        %1824 = vmatpush1.msra.mxu0 %v1538
        %1825 = vmatprep.subr.mxu0 0.0
        %1826 = vmatpush1.msra.mxu0 %v1539
        %1827 = vmatprep.subr.mxu0 0.0
        %1828 = vmatpush1.msra.mxu0 %v1540
        %1829 = vmatprep.subr.mxu0 0.0
        %1830 = vmatpush1.msra.mxu0 %v1541
        %1831 = vmatprep.subr.mxu0 0.0
        %1832 = vmatpush1.msra.mxu0 %v1542
        %1833 = vmatprep.subr.mxu0 0.0
        %1834 = vmatpush1.msra.mxu0 %v1543
        %1835 = vmatprep.subr.mxu0 0.0
        %1836 = vmatpush1.msra.mxu0 %v1544
        %1837 = vmatprep.subr.mxu0 0.0
        %1838 = vmatpush1.msra.mxu0 %v1545
        %1839 = vmatprep.subr.mxu0 0.0
        %1840 = vmatpush1.msra.mxu0 %v1546
        %1841 = vmatprep.subr.mxu0 0.0
        %1842 = vmatpush1.msra.mxu0 %v1547
        %1843 = vmatprep.subr.mxu0 0.0
        %1844 = vmatpush1.msra.mxu0 %v1548
        %1845 = vmatprep.subr.mxu0 0.0
        %1846 = vmatpush1.msra.mxu0 %v1613
        %1847 = vmatprep.subr.mxu0 0.0
        %1848 = vmatpush1.msra.mxu0 0.0
        %1849 = vmatprep.subr.mxu0 0.0
        %1850 = vmatpush1.msra.mxu0 0.0
        %1851 = vmatprep.subr.mxu0 0.0
        %1852 = vmatpush1.msra.mxu0 0.0
        %1853 = vmatprep.subr.mxu0 0.0
        %1854 = vmatpush1.msra.mxu0 0.0
        %1855 = vmatprep.subr.mxu0 0.0
        %1856 = vmatpush1.msra.mxu0 0.0
        %1857 = vmatprep.subr.mxu0 0.0
        %1858 = vmatpush1.msra.mxu0 0.0
        %1859 = vmatprep.subr.mxu0 0.0
        %1860 = vmatpush1.msra.mxu0 0.0
        %1861 = vmatprep.subr.mxu0 0.0
        %1862 = vmatpush1.msra.mxu0 0.0
        %1863 = vmatprep.subr.mxu0 0.0
        %1864 = vmatpush1.msra.mxu0 0.0
        %1865 = vmatprep.mubr.f32.mxu0 %v1766
        %1866 = vmatmul.mubr.f32.gmra.mrb[0].mxu0 %v1741
        %v1867 = vpop.f32.mrb[0].mxu0
        %v1868 = vadd.f32 0.0, %v1867
        %v1869 = vpop.f32.mrb[0].mxu0
        %1870 = vmatprep.mubr.f32.mxu0 %v1769
        %1871 = vmatmul.mubr.f32.gmra.mrb[0].mxu0 %v1743
        %v1872 = vpop.f32.mrb[0].mxu0
        %v1873 = vadd.f32 0.0, %v1872
        %v1874 = vpop.f32.mrb[0].mxu0
        %1875 = vmatprep.mubr.f32.mxu0 %v1772
        %1876 = vmatmul.mubr.f32.gmra.mrb[0].mxu0 %v1745
        %v1877 = vpop.f32.mrb[0].mxu0
        %v1878 = vadd.f32 0.0, %v1877
        %v1879 = vpop.f32.mrb[0].mxu0
        %1880 = vmatprep.mubr.f32.mxu0 %v1775
        %1881 = vmatmul.mubr.f32.gmra.mrb[0].mxu0 %v1747
        %v1882 = vpop.f32.mrb[0].mxu0
        %v1883 = vadd.f32 0.0, %v1882
        %v1884 = vpop.f32.mrb[0].mxu0
        %1885 = vmatprep.mubr.f32.mxu0 %v1778
        %1886 = vmatmul.mubr.f32.gmra.mrb[0].mxu0 %v1749
        %v1887 = vpop.f32.mrb[0].mxu0
        %v1888 = vadd.f32 0.0, %v1887
        %v1889 = vpop.f32.mrb[0].mxu0
        %1890 = vmatprep.mubr.f32.mxu0 %v1781
        %1891 = vmatmul.mubr.f32.gmra.mrb[0].mxu0 %v1751
        %v1892 = vpop.f32.mrb[0].mxu0
        %v1893 = vadd.f32 0.0, %v1892
        %v1894 = vpop.f32.mrb[0].mxu0
        %1895 = vmatprep.mubr.f32.mxu0 %v1784
        %1896 = vmatmul.mubr.f32.gmra.mrb[0].mxu0 %v1753
        %v1897 = vpop.f32.mrb[0].mxu0
        %v1898 = vadd.f32 0.0, %v1897
        %v1899 = vpop.f32.mrb[0].mxu0
        %1900 = vmatprep.mubr.f32.mxu0 %v1787
        %1901 = vmatmul.mubr.f32.gmra.mrb[0].mxu0 %v1755
        %v1902 = vpop.f32.mrb[0].mxu0
        %v1903 = vadd.f32 0.0, %v1902
        %v1904 = vpop.f32.mrb[0].mxu0
        %1905 = vmatprep.mubr.f32.mxu0 %v1790
        %1906 = vmatmul.mubr.f32.gmra.mrb[0].mxu0 %v1757
        %v1907 = vpop.f32.mrb[0].mxu0
        %v1908 = vadd.f32 0.0, %v1907
        %v1909 = vpop.f32.mrb[0].mxu0
        %1910 = vmatprep.mubr.f32.mxu0 %v1793
        %1911 = vmatmul.mubr.f32.gmra.mrb[0].mxu0 %v1759
        %v1912 = vpop.f32.mrb[0].mxu0
        %v1913 = vadd.f32 0.0, %v1912
        %v1914 = vpop.f32.mrb[0].mxu0
        %1915 = vmatprep.mubr.f32.mxu0 %v1796
        %1916 = vmatmul.mubr.f32.gmra.mrb[0].mxu0 %v1761
        %v1917 = vpop.f32.mrb[0].mxu0
        %v1918 = vadd.f32 0.0, %v1917
        %v1919 = vpop.f32.mrb[0].mxu0
        %1920 = vmatprep.mubr.f32.mxu0 %v1799
        %1921 = vmatmul.mubr.f32.gmra.mrb[0].mxu0 %v1763
        %v1922 = vpop.f32.mrb[0].mxu0
        %v1923 = vadd.f32 0.0, %v1922
        %v1924 = vpop.f32.mrb[0].mxu0
        %1925 = vdwg.mxu0
        %v1926 = vmax.f32 %v1682, %v1868
        %v1927 = vmax.f32 %v1687, %v1873
        %v1928 = vmax.f32 %v1692, %v1878
        %v1929 = vmax.f32 %v1697, %v1883
        %v1930 = vmax.f32 %v1702, %v1888
        %v1931 = vmax.f32 %v1707, %v1893
        %v1932 = vmax.f32 %v1712, %v1898
        %v1933 = vmax.f32 %v1717, %v1903
        %v1934 = vmax.f32 %v1722, %v1908
        %v1935 = vmax.f32 %v1727, %v1913
        %v1936 = vmax.f32 %v1732, %v1918
        %v1937 = vmax.f32 %v1737, %v1923
        %v1938 = vld [vmem:[%s4] sm:$0xff]
        %v1939 = vld [vmem:[%s4 + $0x8] sm:$0xff]
        %v1940 = vld [vmem:[%s4 + $0x10] sm:$0xff]
        %v1941 = vld [vmem:[%s4 + $0x18] sm:$0x3f]
        %vm1942 = vcmask 244736
        %v1944 = vsel %vm1942, %v1926, 0
        %v1947 = vsel %vm1942, %v1927, 0
        %v1950 = vsel %vm1942, %v1928, 0
        %v1953 = vsel %vm1942, %v1929, 0
        %v1956 = vsel %vm1942, %v1930, 0
        %v1959 = vsel %vm1942, %v1931, 0
        %v1962 = vsel %vm1942, %v1932, 0
        %v1965 = vsel %vm1942, %v1933, 0
        %v1968 = vsel %vm1942, %v1934, 0
        %v1971 = vsel %vm1942, %v1935, 0
        %v1974 = vsel %vm1942, %v1936, 0
        %v1977 = vsel %vm1942, %v1937, 0
        %vm1979 = vcmask 1045504
        %v1981 = vsel %vm1979, %v1941, 0
        %1983 = vmatprep.subr.mxu0 0.0
        %1984 = vmatpush1.msra.mxu0 %v1938
        %1985 = vmatprep.subr.mxu0 0.0
        %1986 = vmatpush1.msra.mxu0 %v1939
        %1987 = vmatprep.subr.mxu0 0.0
        %1988 = vmatpush1.msra.mxu0 %v1940
        %1989 = vmatprep.subr.mxu0 0.0
        %1990 = vmatpush1.msra.mxu0 %v1981
        %1991 = vmatprep.subr.mxu0 0.0
        %1992 = vmatpush1.msra.mxu0 0.0
        %1993 = vmatprep.subr.mxu0 0.0
        %1994 = vmatpush1.msra.mxu0 0.0
        %1995 = vmatprep.subr.mxu0 0.0
        %1996 = vmatpush1.msra.mxu0 0.0
        %1997 = vmatprep.subr.mxu0 0.0
        %1998 = vmatpush1.msra.mxu0 0.0
        %1999 = vmatprep.subr.mxu0 0.0
        %2000 = vmatpush1.msra.mxu0 0.0
        %2001 = vmatprep.subr.mxu0 0.0
        %2002 = vmatpush1.msra.mxu0 0.0
        %2003 = vmatprep.subr.mxu0 0.0
        %2004 = vmatpush1.msra.mxu0 0.0
        %2005 = vmatprep.subr.mxu0 0.0
        %2006 = vmatpush1.msra.mxu0 0.0
        %2007 = vmatprep.subr.mxu0 0.0
        %2008 = vmatpush1.msra.mxu0 0.0
        %2009 = vmatprep.subr.mxu0 0.0
        %2010 = vmatpush1.msra.mxu0 0.0
        %2011 = vmatprep.subr.mxu0 0.0
        %2012 = vmatpush1.msra.mxu0 0.0
        %2013 = vmatprep.subr.mxu0 0.0
        %2014 = vmatpush1.msra.mxu0 0.0
        %2015 = vmatprep.subr.mxu0 0.0
        %2016 = vmatpush1.msra.mxu0 0.0
        %2017 = vmatprep.subr.mxu0 0.0
        %2018 = vmatpush1.msra.mxu0 0.0
        %2019 = vmatprep.subr.mxu0 0.0
        %2020 = vmatpush1.msra.mxu0 0.0
        %2021 = vmatprep.subr.mxu0 0.0
        %2022 = vmatpush1.msra.mxu0 0.0
        %2023 = vmatprep.subr.mxu0 0.0
        %2024 = vmatpush1.msra.mxu0 0.0
        %2025 = vmatprep.subr.mxu0 0.0
        %2026 = vmatpush1.msra.mxu0 0.0
        %2027 = vmatprep.subr.mxu0 0.0
        %2028 = vmatpush1.msra.mxu0 0.0
        %2029 = vmatprep.subr.mxu0 0.0
        %2030 = vmatpush1.msra.mxu0 0.0
        %2031 = vmatprep.subr.mxu0 0.0
        %2032 = vmatpush1.msra.mxu0 0.0
        %2033 = vmatprep.subr.mxu0 0.0
        %2034 = vmatpush1.msra.mxu0 0.0
        %2035 = vmatprep.subr.mxu0 0.0
        %2036 = vmatpush1.msra.mxu0 0.0
        %2037 = vmatprep.subr.mxu0 0.0
        %2038 = vmatpush1.msra.mxu0 0.0
        %2039 = vmatprep.subr.mxu0 0.0
        %2040 = vmatpush1.msra.mxu0 0.0
        %2041 = vmatprep.subr.mxu0 0.0
        %2042 = vmatpush1.msra.mxu0 0.0
        %2043 = vmatprep.subr.mxu0 0.0
        %2044 = vmatpush1.msra.mxu0 0.0
        %2045 = vmatprep.subr.mxu0 0.0
        %2046 = vmatpush1.msra.mxu0 0.0
        %2047 = vmatprep.mubr.f32.mxu0 0.0
        %2048 = vmatmul.mubr.f32.gmra.mrb[0].mxu0 %v1944
        %v2049 = vpop.f32.mrb[0].mxu0
        %v2050 = vadd.f32 0.0, %v2049
        %v2051 = vpop.f32.mrb[0].mxu0
        %2052 = vmatprep.mubr.f32.mxu0 0.0
        %2053 = vmatmul.mubr.f32.gmra.mrb[0].mxu0 %v1947
        %v2054 = vpop.f32.mrb[0].mxu0
        %v2055 = vadd.f32 0.0, %v2054
        %v2056 = vpop.f32.mrb[0].mxu0
        %2057 = vmatprep.mubr.f32.mxu0 0.0
        %2058 = vmatmul.mubr.f32.gmra.mrb[0].mxu0 %v1950
        %v2059 = vpop.f32.mrb[0].mxu0
        %v2060 = vadd.f32 0.0, %v2059
        %v2061 = vpop.f32.mrb[0].mxu0
        %2062 = vmatprep.mubr.f32.mxu0 0.0
        %2063 = vmatmul.mubr.f32.gmra.mrb[0].mxu0 %v1953
        %v2064 = vpop.f32.mrb[0].mxu0
        %v2065 = vadd.f32 0.0, %v2064
        %v2066 = vpop.f32.mrb[0].mxu0
        %2067 = vmatprep.mubr.f32.mxu0 0.0
        %2068 = vmatmul.mubr.f32.gmra.mrb[0].mxu0 %v1956
        %v2069 = vpop.f32.mrb[0].mxu0
        %v2070 = vadd.f32 0.0, %v2069
        %v2071 = vpop.f32.mrb[0].mxu0
        %2072 = vmatprep.mubr.f32.mxu0 0.0
        %2073 = vmatmul.mubr.f32.gmra.mrb[0].mxu0 %v1959
        %v2074 = vpop.f32.mrb[0].mxu0
        %v2075 = vadd.f32 0.0, %v2074
        %v2076 = vpop.f32.mrb[0].mxu0
        %2077 = vmatprep.mubr.f32.mxu0 0.0
        %2078 = vmatmul.mubr.f32.gmra.mrb[0].mxu0 %v1962
        %v2079 = vpop.f32.mrb[0].mxu0
        %v2080 = vadd.f32 0.0, %v2079
        %v2081 = vpop.f32.mrb[0].mxu0
        %2082 = vmatprep.mubr.f32.mxu0 0.0
        %2083 = vmatmul.mubr.f32.gmra.mrb[0].mxu0 %v1965
        %v2084 = vpop.f32.mrb[0].mxu0
        %v2085 = vadd.f32 0.0, %v2084
        %v2086 = vpop.f32.mrb[0].mxu0
        %2087 = vmatprep.mubr.f32.mxu0 0.0
        %2088 = vmatmul.mubr.f32.gmra.mrb[0].mxu0 %v1968
        %v2089 = vpop.f32.mrb[0].mxu0
        %v2090 = vadd.f32 0.0, %v2089
        %v2091 = vpop.f32.mrb[0].mxu0
        %2092 = vmatprep.mubr.f32.mxu0 0.0
        %2093 = vmatmul.mubr.f32.gmra.mrb[0].mxu0 %v1971
        %v2094 = vpop.f32.mrb[0].mxu0
        %v2095 = vadd.f32 0.0, %v2094
        %v2096 = vpop.f32.mrb[0].mxu0
        %2097 = vmatprep.mubr.f32.mxu0 0.0
        %2098 = vmatmul.mubr.f32.gmra.mrb[0].mxu0 %v1974
        %v2099 = vpop.f32.mrb[0].mxu0
        %v2100 = vadd.f32 0.0, %v2099
        %v2101 = vpop.f32.mrb[0].mxu0
        %2102 = vmatprep.mubr.f32.mxu0 0.0
        %2103 = vmatmul.mubr.f32.gmra.mrb[0].mxu0 %v1977
        %v2104 = vpop.f32.mrb[0].mxu0
        %v2105 = vadd.f32 0.0, %v2104
        %v2106 = vpop.f32.mrb[0].mxu0
        %2107 = vdwg.mxu0
        %s2108 = scalar_lea.vmem %s4, 32
        %v2109 = vld [vmem:[%s2108] sm:$0xff]
        %v2110 = vld [vmem:[%s2108 + $0x8] sm:$0xff]
        %v2111 = vld [vmem:[%s2108 + $0x10] sm:$0xff]
        %v2112 = vld [vmem:[%s2108 + $0x18] sm:$0x3f]
        %v2114 = vsel %vm1979, %v2112, 0
        %2116 = vmatprep.subr.mxu0 0.0
        %2117 = vmatpush1.msra.mxu0 %v2109
        %2118 = vmatprep.subr.mxu0 0.0
        %2119 = vmatpush1.msra.mxu0 %v2110
        %2120 = vmatprep.subr.mxu0 0.0
        %2121 = vmatpush1.msra.mxu0 %v2111
        %2122 = vmatprep.subr.mxu0 0.0
        %2123 = vmatpush1.msra.mxu0 %v2114
        %2124 = vmatprep.subr.mxu0 0.0
        %2125 = vmatpush1.msra.mxu0 0.0
        %2126 = vmatprep.subr.mxu0 0.0
        %2127 = vmatpush1.msra.mxu0 0.0
        %2128 = vmatprep.subr.mxu0 0.0
        %2129 = vmatpush1.msra.mxu0 0.0
        %2130 = vmatprep.subr.mxu0 0.0
        %2131 = vmatpush1.msra.mxu0 0.0
        %2132 = vmatprep.subr.mxu0 0.0
        %2133 = vmatpush1.msra.mxu0 0.0
        %2134 = vmatprep.subr.mxu0 0.0
        %2135 = vmatpush1.msra.mxu0 0.0
        %2136 = vmatprep.subr.mxu0 0.0
        %2137 = vmatpush1.msra.mxu0 0.0
        %2138 = vmatprep.subr.mxu0 0.0
        %2139 = vmatpush1.msra.mxu0 0.0
        %2140 = vmatprep.subr.mxu0 0.0
        %2141 = vmatpush1.msra.mxu0 0.0
        %2142 = vmatprep.subr.mxu0 0.0
        %2143 = vmatpush1.msra.mxu0 0.0
        %2144 = vmatprep.subr.mxu0 0.0
        %2145 = vmatpush1.msra.mxu0 0.0
        %2146 = vmatprep.subr.mxu0 0.0
        %2147 = vmatpush1.msra.mxu0 0.0
        %2148 = vmatprep.subr.mxu0 0.0
        %2149 = vmatpush1.msra.mxu0 0.0
        %2150 = vmatprep.subr.mxu0 0.0
        %2151 = vmatpush1.msra.mxu0 0.0
        %2152 = vmatprep.subr.mxu0 0.0
        %2153 = vmatpush1.msra.mxu0 0.0
        %2154 = vmatprep.subr.mxu0 0.0
        %2155 = vmatpush1.msra.mxu0 0.0
        %2156 = vmatprep.subr.mxu0 0.0
        %2157 = vmatpush1.msra.mxu0 0.0
        %2158 = vmatprep.subr.mxu0 0.0
        %2159 = vmatpush1.msra.mxu0 0.0
        %2160 = vmatprep.subr.mxu0 0.0
        %2161 = vmatpush1.msra.mxu0 0.0
        %2162 = vmatprep.subr.mxu0 0.0
        %2163 = vmatpush1.msra.mxu0 0.0
        %2164 = vmatprep.subr.mxu0 0.0
        %2165 = vmatpush1.msra.mxu0 0.0
        %2166 = vmatprep.subr.mxu0 0.0
        %2167 = vmatpush1.msra.mxu0 0.0
        %2168 = vmatprep.subr.mxu0 0.0
        %2169 = vmatpush1.msra.mxu0 0.0
        %2170 = vmatprep.subr.mxu0 0.0
        %2171 = vmatpush1.msra.mxu0 0.0
        %2172 = vmatprep.subr.mxu0 0.0
        %2173 = vmatpush1.msra.mxu0 0.0
        %2174 = vmatprep.subr.mxu0 0.0
        %2175 = vmatpush1.msra.mxu0 0.0
        %2176 = vmatprep.subr.mxu0 0.0
        %2177 = vmatpush1.msra.mxu0 0.0
        %2178 = vmatprep.subr.mxu0 0.0
        %2179 = vmatpush1.msra.mxu0 0.0
        %2180 = vmatprep.mubr.f32.mxu0 0.0
        %2181 = vmatmul.mubr.f32.gmra.mrb[0].mxu0 %v1944
        %v2182 = vpop.f32.mrb[0].mxu0
        %v2183 = vadd.f32 0.0, %v2182
        %v2184 = vpop.f32.mrb[0].mxu0
        %2185 = vmatprep.mubr.f32.mxu0 0.0
        %2186 = vmatmul.mubr.f32.gmra.mrb[0].mxu0 %v1947
        %v2187 = vpop.f32.mrb[0].mxu0
        %v2188 = vadd.f32 0.0, %v2187
        %v2189 = vpop.f32.mrb[0].mxu0
        %2190 = vmatprep.mubr.f32.mxu0 0.0
        %2191 = vmatmul.mubr.f32.gmra.mrb[0].mxu0 %v1950
        %v2192 = vpop.f32.mrb[0].mxu0
        %v2193 = vadd.f32 0.0, %v2192
        %v2194 = vpop.f32.mrb[0].mxu0
        %2195 = vmatprep.mubr.f32.mxu0 0.0
        %2196 = vmatmul.mubr.f32.gmra.mrb[0].mxu0 %v1953
        %v2197 = vpop.f32.mrb[0].mxu0
        %v2198 = vadd.f32 0.0, %v2197
        %v2199 = vpop.f32.mrb[0].mxu0
        %2200 = vmatprep.mubr.f32.mxu0 0.0
        %2201 = vmatmul.mubr.f32.gmra.mrb[0].mxu0 %v1956
        %v2202 = vpop.f32.mrb[0].mxu0
        %v2203 = vadd.f32 0.0, %v2202
        %v2204 = vpop.f32.mrb[0].mxu0
        %2205 = vmatprep.mubr.f32.mxu0 0.0
        %2206 = vmatmul.mubr.f32.gmra.mrb[0].mxu0 %v1959
        %v2207 = vpop.f32.mrb[0].mxu0
        %v2208 = vadd.f32 0.0, %v2207
        %v2209 = vpop.f32.mrb[0].mxu0
        %2210 = vmatprep.mubr.f32.mxu0 0.0
        %2211 = vmatmul.mubr.f32.gmra.mrb[0].mxu0 %v1962
        %v2212 = vpop.f32.mrb[0].mxu0
        %v2213 = vadd.f32 0.0, %v2212
        %v2214 = vpop.f32.mrb[0].mxu0
        %2215 = vmatprep.mubr.f32.mxu0 0.0
        %2216 = vmatmul.mubr.f32.gmra.mrb[0].mxu0 %v1965
        %v2217 = vpop.f32.mrb[0].mxu0
        %v2218 = vadd.f32 0.0, %v2217
        %v2219 = vpop.f32.mrb[0].mxu0
        %2220 = vmatprep.mubr.f32.mxu0 0.0
        %2221 = vmatmul.mubr.f32.gmra.mrb[0].mxu0 %v1968
        %v2222 = vpop.f32.mrb[0].mxu0
        %v2223 = vadd.f32 0.0, %v2222
        %v2224 = vpop.f32.mrb[0].mxu0
        %2225 = vmatprep.mubr.f32.mxu0 0.0
        %2226 = vmatmul.mubr.f32.gmra.mrb[0].mxu0 %v1971
        %v2227 = vpop.f32.mrb[0].mxu0
        %v2228 = vadd.f32 0.0, %v2227
        %v2229 = vpop.f32.mrb[0].mxu0
        %2230 = vmatprep.mubr.f32.mxu0 0.0
        %2231 = vmatmul.mubr.f32.gmra.mrb[0].mxu0 %v1974
        %v2232 = vpop.f32.mrb[0].mxu0
        %v2233 = vadd.f32 0.0, %v2232
        %v2234 = vpop.f32.mrb[0].mxu0
        %2235 = vmatprep.mubr.f32.mxu0 0.0
        %2236 = vmatmul.mubr.f32.gmra.mrb[0].mxu0 %v1977
        %v2237 = vpop.f32.mrb[0].mxu0
        %v2238 = vadd.f32 0.0, %v2237
        %v2239 = vpop.f32.mrb[0].mxu0
        %2240 = vdwg.mxu0
        %v2241 = vmax.f32 %v2050, %v2183
        %v2242 = vmax.f32 %v2055, %v2188
        %v2243 = vmax.f32 %v2060, %v2193
        %v2244 = vmax.f32 %v2065, %v2198
        %v2245 = vmax.f32 %v2070, %v2203
        %v2246 = vmax.f32 %v2075, %v2208
        %v2247 = vmax.f32 %v2080, %v2213
        %v2248 = vmax.f32 %v2085, %v2218
        %v2249 = vmax.f32 %v2090, %v2223
        %v2250 = vmax.f32 %v2095, %v2228
        %v2251 = vmax.f32 %v2100, %v2233
        %v2252 = vmax.f32 %v2105, %v2238
        %v2253 = vld [vmem:[%s5] sm:$0xff]
        %v2254 = vld [vmem:[%s5 + $0x8] sm:$0xff]
        %v2255 = vld [vmem:[%s5 + $0x10] sm:$0xff]
        %v2256 = vld [vmem:[%s5 + $0x18] sm:$0xff]
        %v2257 = vld [vmem:[%s5 + $0x20] sm:$0xff]
        %v2258 = vld [vmem:[%s5 + $0x28] sm:$0xff]
        %v2259 = vld [vmem:[%s5 + $0x30] sm:$0xff]
        %v2260 = vld [vmem:[%s5 + $0x38] sm:$0xff]
        %v2261 = vld [vmem:[%s5 + $0x40] sm:$0xff]
        %v2262 = vld [vmem:[%s5 + $0x48] sm:$0xff]
        %v2263 = vld [vmem:[%s5 + $0x50] sm:$0xff]
        %v2264 = vld [vmem:[%s5 + $0x58] sm:$0xff]
        %v2265 = vld [vmem:[%s5 + $0x60] sm:$0xff]
        %v2266 = vld [vmem:[%s5 + $0x68] sm:$0xff]
        %v2267 = vld [vmem:[%s5 + $0x70] sm:$0xff]
        %v2268 = vld [vmem:[%s5 + $0x78] sm:$0xff]
        %v2269 = vld [vmem:[%s5 + $0x80] sm:$0xff]
        %v2270 = vld [vmem:[%s5 + $0x88] sm:$0xff]
        %v2271 = vld [vmem:[%s5 + $0x90] sm:$0xff]
        %v2272 = vld [vmem:[%s5 + $0x98] sm:$0xff]
        %v2273 = vld [vmem:[%s5 + $0xa0] sm:$0xff]
        %v2274 = vld [vmem:[%s5 + $0xa8] sm:$0xff]
        %v2275 = vld [vmem:[%s5 + $0xb0] sm:$0xff]
        %v2276 = vld [vmem:[%s5 + $0xb8] sm:$0xff]
        %v2277 = vld [vmem:[%s5 + $0xc0] sm:$0xff]
        %v2278 = vld [vmem:[%s5 + $0xc8] sm:$0xff]
        %s2279 = scalar_lea.vmem %s5, 208
        %v2280 = vld [vmem:[%s2279] sm:$0xff]
        %v2281 = vld [vmem:[%s2279 + $0x8] sm:$0xff]
        %v2282 = vld [vmem:[%s2279 + $0x10] sm:$0xff]
        %v2283 = vld [vmem:[%s2279 + $0x18] sm:$0xff]
        %v2284 = vld [vmem:[%s2279 + $0x20] sm:$0xff]
        %v2285 = vld [vmem:[%s2279 + $0x28] sm:$0xff]
        %v2286 = vld [vmem:[%s2279 + $0x30] sm:$0xff]
        %v2287 = vld [vmem:[%s2279 + $0x38] sm:$0xff]
        %v2288 = vld [vmem:[%s2279 + $0x40] sm:$0xff]
        %v2289 = vld [vmem:[%s2279 + $0x48] sm:$0xff]
        %v2290 = vld [vmem:[%s2279 + $0x50] sm:$0xff]
        %v2291 = vld [vmem:[%s2279 + $0x58] sm:$0xff]
        %v2292 = vld [vmem:[%s2279 + $0x60] sm:$0xff]
        %v2293 = vld [vmem:[%s2279 + $0x68] sm:$0xff]
        %v2294 = vld [vmem:[%s2279 + $0x70] sm:$0xff]
        %v2295 = vld [vmem:[%s2279 + $0x78] sm:$0xff]
        %v2296 = vld [vmem:[%s2279 + $0x80] sm:$0xff]
        %v2297 = vld [vmem:[%s2279 + $0x88] sm:$0xff]
        %v2298 = vld [vmem:[%s2279 + $0x90] sm:$0xff]
        %v2299 = vld [vmem:[%s2279 + $0x98] sm:$0xff]
        %v2300 = vld [vmem:[%s2279 + $0xa0] sm:$0xff]
        %v2301 = vld [vmem:[%s2279 + $0xa8] sm:$0xff]
        %v2302 = vld [vmem:[%s2279 + $0xb0] sm:$0xff]
        %v2303 = vld [vmem:[%s2279 + $0xb8] sm:$0xff]
        %v2304 = vld [vmem:[%s2279 + $0xc0] sm:$0xff]
        %v2305 = vld [vmem:[%s2279 + $0xc8] sm:$0xff]
        %2318 = vrot.lane.b32.xlu0 %v2241, 127
        %v2319 = vpop.permute.xlu0 %2318
        %2320 = vrot.lane.b32.xlu0 %v2242, 127
        %v2321 = vpop.permute.xlu0 %2320
        %2322 = vrot.lane.b32.xlu0 %v2243, 127
        %v2323 = vpop.permute.xlu0 %2322
        %2324 = vrot.lane.b32.xlu0 %v2244, 127
        %v2325 = vpop.permute.xlu0 %2324
        %2326 = vrot.lane.b32.xlu0 %v2245, 127
        %v2327 = vpop.permute.xlu0 %2326
        %2328 = vrot.lane.b32.xlu0 %v2246, 127
        %v2329 = vpop.permute.xlu0 %2328
        %2330 = vrot.lane.b32.xlu0 %v2247, 127
        %v2331 = vpop.permute.xlu0 %2330
        %2332 = vrot.lane.b32.xlu0 %v2248, 127
        %v2333 = vpop.permute.xlu0 %2332
        %2334 = vrot.lane.b32.xlu0 %v2249, 127
        %v2335 = vpop.permute.xlu0 %2334
        %2336 = vrot.lane.b32.xlu0 %v2250, 127
        %v2337 = vpop.permute.xlu0 %2336
        %2338 = vrot.lane.b32.xlu0 %v2251, 127
        %v2339 = vpop.permute.xlu0 %2338
        %2340 = vrot.lane.b32.xlu0 %v2252, 127
        %v2341 = vpop.permute.xlu0 %2340
        %vm2353 = vcmask 736256
        %v2355 = vsel %vm2353, %v2280, 0
        %v2358 = vsel %vm2353, %v2281, 0
        %v2361 = vsel %vm2353, %v2282, 0
        %v2364 = vsel %vm2353, %v2283, 0
        %v2367 = vsel %vm2353, %v2284, 0
        %v2370 = vsel %vm2353, %v2285, 0
        %v2373 = vsel %vm2353, %v2286, 0
        %v2376 = vsel %vm2353, %v2287, 0
        %v2379 = vsel %vm2353, %v2288, 0
        %v2382 = vsel %vm2353, %v2289, 0
        %v2385 = vsel %vm2353, %v2290, 0
        %v2388 = vsel %vm2353, %v2291, 0
        %v2391 = vsel %vm2353, %v2292, 0
        %v2394 = vsel %vm2353, %v2293, 0
        %v2397 = vsel %vm2353, %v2294, 0
        %v2400 = vsel %vm2353, %v2295, 0
        %v2403 = vsel %vm2353, %v2296, 0
        %v2406 = vsel %vm2353, %v2297, 0
        %v2409 = vsel %vm2353, %v2298, 0
        %v2412 = vsel %vm2353, %v2299, 0
        %v2415 = vsel %vm2353, %v2300, 0
        %v2418 = vsel %vm2353, %v2301, 0
        %v2421 = vsel %vm2353, %v2302, 0
        %v2424 = vsel %vm2353, %v2303, 0
        %v2427 = vsel %vm2353, %v2304, 0
        %v2430 = vsel %vm2353, %v2305, 0
        %vm2432 = vcmask 1041408
        %v2433 = vsel %vm2432, %v2341, 0
        %2435 = vmatprep.subr.mxu0 0.0
        %2436 = vmatpush1.msra.mxu0 %v2319
        %2437 = vmatprep.subr.mxu0 0.0
        %2438 = vmatpush1.msra.mxu0 %v2321
        %2439 = vmatprep.subr.mxu0 0.0
        %2440 = vmatpush1.msra.mxu0 %v2323
        %2441 = vmatprep.subr.mxu0 0.0
        %2442 = vmatpush1.msra.mxu0 %v2325
        %2443 = vmatprep.subr.mxu0 0.0
        %2444 = vmatpush1.msra.mxu0 %v2327
        %2445 = vmatprep.subr.mxu0 0.0
        %2446 = vmatpush1.msra.mxu0 %v2329
        %2447 = vmatprep.subr.mxu0 0.0
        %2448 = vmatpush1.msra.mxu0 %v2331
        %2449 = vmatprep.subr.mxu0 0.0
        %2450 = vmatpush1.msra.mxu0 %v2333
        %2451 = vmatprep.subr.mxu0 0.0
        %2452 = vmatpush1.msra.mxu0 %v2335
        %2453 = vmatprep.subr.mxu0 0.0
        %2454 = vmatpush1.msra.mxu0 %v2337
        %2455 = vmatprep.subr.mxu0 0.0
        %2456 = vmatpush1.msra.mxu0 %v2339
        %2457 = vmatprep.subr.mxu0 0.0
        %2458 = vmatpush1.msra.mxu0 %v2433
        %2459 = vmatprep.subr.mxu0 0.0
        %2460 = vmatpush1.msra.mxu0 0.0
        %2461 = vmatprep.subr.mxu0 0.0
        %2462 = vmatpush1.msra.mxu0 0.0
        %2463 = vmatprep.subr.mxu0 0.0
        %2464 = vmatpush1.msra.mxu0 0.0
        %2465 = vmatprep.subr.mxu0 0.0
        %2466 = vmatpush1.msra.mxu0 0.0
        %2467 = vmatprep.subr.mxu0 0.0
        %2468 = vmatpush1.msra.mxu0 0.0
        %2469 = vmatprep.subr.mxu0 0.0
        %2470 = vmatpush1.msra.mxu0 0.0
        %2471 = vmatprep.subr.mxu0 0.0
        %2472 = vmatpush1.msra.mxu0 0.0
        %2473 = vmatprep.subr.mxu0 0.0
        %2474 = vmatpush1.msra.mxu0 0.0
        %2475 = vmatprep.subr.mxu0 0.0
        %2476 = vmatpush1.msra.mxu0 0.0
        %2477 = vmatprep.subr.mxu0 0.0
        %2478 = vmatpush1.msra.mxu0 0.0
        %2479 = vmatprep.subr.mxu0 0.0
        %2480 = vmatpush1.msra.mxu0 0.0
        %2481 = vmatprep.subr.mxu0 0.0
        %2482 = vmatpush1.msra.mxu0 0.0
        %2483 = vmatprep.subr.mxu0 0.0
        %2484 = vmatpush1.msra.mxu0 0.0
        %2485 = vmatprep.subr.mxu0 0.0
        %2486 = vmatpush1.msra.mxu0 0.0
        %2487 = vmatprep.subr.mxu0 0.0
        %2488 = vmatpush1.msra.mxu0 0.0
        %2489 = vmatprep.subr.mxu0 0.0
        %2490 = vmatpush1.msra.mxu0 0.0
        %2491 = vmatprep.subr.mxu0 0.0
        %2492 = vmatpush1.msra.mxu0 0.0
        %2493 = vmatprep.subr.mxu0 0.0
        %2494 = vmatpush1.msra.mxu0 0.0
        %2495 = vmatprep.subr.mxu0 0.0
        %2496 = vmatpush1.msra.mxu0 0.0
        %2497 = vmatprep.subr.mxu0 0.0
        %2498 = vmatpush1.msra.mxu0 0.0
        %2499 = vmatprep.mubr.f32.mxu0 0.0
        %2500 = vmatmul.mubr.f32.gmra.mrb[0].mxu0 %v2355
        %v2501 = vpop.f32.mrb[0].mxu0
        %v2502 = vadd.f32 0.0, %v2501
        %v2503 = vpop.f32.mrb[0].mxu0
        %2504 = vmatprep.mubr.f32.mxu0 0.0
        %2505 = vmatmul.mubr.f32.gmra.mrb[0].mxu0 %v2358
        %v2506 = vpop.f32.mrb[0].mxu0
        %v2507 = vadd.f32 0.0, %v2506
        %v2508 = vpop.f32.mrb[0].mxu0
        %2509 = vmatprep.mubr.f32.mxu0 0.0
        %2510 = vmatmul.mubr.f32.gmra.mrb[0].mxu0 %v2361
        %v2511 = vpop.f32.mrb[0].mxu0
        %v2512 = vadd.f32 0.0, %v2511
        %v2513 = vpop.f32.mrb[0].mxu0
        %2514 = vmatprep.mubr.f32.mxu0 0.0
        %2515 = vmatmul.mubr.f32.gmra.mrb[0].mxu0 %v2364
        %v2516 = vpop.f32.mrb[0].mxu0
        %v2517 = vadd.f32 0.0, %v2516
        %v2518 = vpop.f32.mrb[0].mxu0
        %2519 = vmatprep.mubr.f32.mxu0 0.0
        %2520 = vmatmul.mubr.f32.gmra.mrb[0].mxu0 %v2367
        %v2521 = vpop.f32.mrb[0].mxu0
        %v2522 = vadd.f32 0.0, %v2521
        %v2523 = vpop.f32.mrb[0].mxu0
        %2524 = vmatprep.mubr.f32.mxu0 0.0
        %2525 = vmatmul.mubr.f32.gmra.mrb[0].mxu0 %v2370
        %v2526 = vpop.f32.mrb[0].mxu0
        %v2527 = vadd.f32 0.0, %v2526
        %v2528 = vpop.f32.mrb[0].mxu0
        %2529 = vmatprep.mubr.f32.mxu0 0.0
        %2530 = vmatmul.mubr.f32.gmra.mrb[0].mxu0 %v2373
        %v2531 = vpop.f32.mrb[0].mxu0
        %v2532 = vadd.f32 0.0, %v2531
        %v2533 = vpop.f32.mrb[0].mxu0
        %2534 = vmatprep.mubr.f32.mxu0 0.0
        %2535 = vmatmul.mubr.f32.gmra.mrb[0].mxu0 %v2376
        %v2536 = vpop.f32.mrb[0].mxu0
        %v2537 = vadd.f32 0.0, %v2536
        %v2538 = vpop.f32.mrb[0].mxu0
        %2539 = vmatprep.mubr.f32.mxu0 0.0
        %2540 = vmatmul.mubr.f32.gmra.mrb[0].mxu0 %v2379
        %v2541 = vpop.f32.mrb[0].mxu0
        %v2542 = vadd.f32 0.0, %v2541
        %v2543 = vpop.f32.mrb[0].mxu0
        %2544 = vmatprep.mubr.f32.mxu0 0.0
        %2545 = vmatmul.mubr.f32.gmra.mrb[0].mxu0 %v2382
        %v2546 = vpop.f32.mrb[0].mxu0
        %v2547 = vadd.f32 0.0, %v2546
        %v2548 = vpop.f32.mrb[0].mxu0
        %2549 = vmatprep.mubr.f32.mxu0 0.0
        %2550 = vmatmul.mubr.f32.gmra.mrb[0].mxu0 %v2385
        %v2551 = vpop.f32.mrb[0].mxu0
        %v2552 = vadd.f32 0.0, %v2551
        %v2553 = vpop.f32.mrb[0].mxu0
        %2554 = vmatprep.mubr.f32.mxu0 0.0
        %2555 = vmatmul.mubr.f32.gmra.mrb[0].mxu0 %v2388
        %v2556 = vpop.f32.mrb[0].mxu0
        %v2557 = vadd.f32 0.0, %v2556
        %v2558 = vpop.f32.mrb[0].mxu0
        %2559 = vmatprep.mubr.f32.mxu0 0.0
        %2560 = vmatmul.mubr.f32.gmra.mrb[0].mxu0 %v2391
        %v2561 = vpop.f32.mrb[0].mxu0
        %v2562 = vadd.f32 0.0, %v2561
        %v2563 = vpop.f32.mrb[0].mxu0
        %2564 = vmatprep.mubr.f32.mxu0 0.0
        %2565 = vmatmul.mubr.f32.gmra.mrb[0].mxu0 %v2394
        %v2566 = vpop.f32.mrb[0].mxu0
        %v2567 = vadd.f32 0.0, %v2566
        %v2568 = vpop.f32.mrb[0].mxu0
        %2569 = vmatprep.mubr.f32.mxu0 0.0
        %2570 = vmatmul.mubr.f32.gmra.mrb[0].mxu0 %v2397
        %v2571 = vpop.f32.mrb[0].mxu0
        %v2572 = vadd.f32 0.0, %v2571
        %v2573 = vpop.f32.mrb[0].mxu0
        %2574 = vmatprep.mubr.f32.mxu0 0.0
        %2575 = vmatmul.mubr.f32.gmra.mrb[0].mxu0 %v2400
        %v2576 = vpop.f32.mrb[0].mxu0
        %v2577 = vadd.f32 0.0, %v2576
        %v2578 = vpop.f32.mrb[0].mxu0
        %2579 = vmatprep.mubr.f32.mxu0 0.0
        %2580 = vmatmul.mubr.f32.gmra.mrb[0].mxu0 %v2403
        %v2581 = vpop.f32.mrb[0].mxu0
        %v2582 = vadd.f32 0.0, %v2581
        %v2583 = vpop.f32.mrb[0].mxu0
        %2584 = vmatprep.mubr.f32.mxu0 0.0
        %2585 = vmatmul.mubr.f32.gmra.mrb[0].mxu0 %v2406
        %v2586 = vpop.f32.mrb[0].mxu0
        %v2587 = vadd.f32 0.0, %v2586
        %v2588 = vpop.f32.mrb[0].mxu0
        %2589 = vmatprep.mubr.f32.mxu0 0.0
        %2590 = vmatmul.mubr.f32.gmra.mrb[0].mxu0 %v2409
        %v2591 = vpop.f32.mrb[0].mxu0
        %v2592 = vadd.f32 0.0, %v2591
        %v2593 = vpop.f32.mrb[0].mxu0
        %2594 = vmatprep.mubr.f32.mxu0 0.0
        %2595 = vmatmul.mubr.f32.gmra.mrb[0].mxu0 %v2412
        %v2596 = vpop.f32.mrb[0].mxu0
        %v2597 = vadd.f32 0.0, %v2596
        %v2598 = vpop.f32.mrb[0].mxu0
        %2599 = vmatprep.mubr.f32.mxu0 0.0
        %2600 = vmatmul.mubr.f32.gmra.mrb[0].mxu0 %v2415
        %v2601 = vpop.f32.mrb[0].mxu0
        %v2602 = vadd.f32 0.0, %v2601
        %v2603 = vpop.f32.mrb[0].mxu0
        %2604 = vmatprep.mubr.f32.mxu0 0.0
        %2605 = vmatmul.mubr.f32.gmra.mrb[0].mxu0 %v2418
        %v2606 = vpop.f32.mrb[0].mxu0
        %v2607 = vadd.f32 0.0, %v2606
        %v2608 = vpop.f32.mrb[0].mxu0
        %2609 = vmatprep.mubr.f32.mxu0 0.0
        %2610 = vmatmul.mubr.f32.gmra.mrb[0].mxu0 %v2421
        %v2611 = vpop.f32.mrb[0].mxu0
        %v2612 = vadd.f32 0.0, %v2611
        %v2613 = vpop.f32.mrb[0].mxu0
        %2614 = vmatprep.mubr.f32.mxu0 0.0
        %2615 = vmatmul.mubr.f32.gmra.mrb[0].mxu0 %v2424
        %v2616 = vpop.f32.mrb[0].mxu0
        %v2617 = vadd.f32 0.0, %v2616
        %v2618 = vpop.f32.mrb[0].mxu0
        %2619 = vmatprep.mubr.f32.mxu0 0.0
        %2620 = vmatmul.mubr.f32.gmra.mrb[0].mxu0 %v2427
        %v2621 = vpop.f32.mrb[0].mxu0
        %v2622 = vadd.f32 0.0, %v2621
        %v2623 = vpop.f32.mrb[0].mxu0
        %2624 = vmatprep.mubr.f32.mxu0 0.0
        %2625 = vmatmul.mubr.f32.gmra.mrb[0].mxu0 %v2430
        %v2626 = vpop.f32.mrb[0].mxu0
        %v2627 = vadd.f32 0.0, %v2626
        %v2628 = vpop.f32.mrb[0].mxu0
        %2629 = vdwg.mxu0
        %v2631 = vsel %vm2353, %v2253, 0
        %v2634 = vsel %vm2353, %v2254, 0
        %v2637 = vsel %vm2353, %v2255, 0
        %v2640 = vsel %vm2353, %v2256, 0
        %v2643 = vsel %vm2353, %v2257, 0
        %v2646 = vsel %vm2353, %v2258, 0
        %v2649 = vsel %vm2353, %v2259, 0
        %v2652 = vsel %vm2353, %v2260, 0
        %v2655 = vsel %vm2353, %v2261, 0
        %v2658 = vsel %vm2353, %v2262, 0
        %v2661 = vsel %vm2353, %v2263, 0
        %v2664 = vsel %vm2353, %v2264, 0
        %v2667 = vsel %vm2353, %v2265, 0
        %v2670 = vsel %vm2353, %v2266, 0
        %v2673 = vsel %vm2353, %v2267, 0
        %v2676 = vsel %vm2353, %v2268, 0
        %v2679 = vsel %vm2353, %v2269, 0
        %v2682 = vsel %vm2353, %v2270, 0
        %v2685 = vsel %vm2353, %v2271, 0
        %v2688 = vsel %vm2353, %v2272, 0
        %v2691 = vsel %vm2353, %v2273, 0
        %v2694 = vsel %vm2353, %v2274, 0
        %v2697 = vsel %vm2353, %v2275, 0
        %v2700 = vsel %vm2353, %v2276, 0
        %v2703 = vsel %vm2353, %v2277, 0
        %v2706 = vsel %vm2353, %v2278, 0
        %v2708 = vsel %vm2432, %v2252, 0
        %2710 = vmatprep.subr.mxu0 0.0
        %2711 = vmatpush1.msra.mxu0 %v2241
        %2712 = vmatprep.subr.mxu0 0.0
        %2713 = vmatpush1.msra.mxu0 %v2242
        %2714 = vmatprep.subr.mxu0 0.0
        %2715 = vmatpush1.msra.mxu0 %v2243
        %2716 = vmatprep.subr.mxu0 0.0
        %2717 = vmatpush1.msra.mxu0 %v2244
        %2718 = vmatprep.subr.mxu0 0.0
        %2719 = vmatpush1.msra.mxu0 %v2245
        %2720 = vmatprep.subr.mxu0 0.0
        %2721 = vmatpush1.msra.mxu0 %v2246
        %2722 = vmatprep.subr.mxu0 0.0
        %2723 = vmatpush1.msra.mxu0 %v2247
        %2724 = vmatprep.subr.mxu0 0.0
        %2725 = vmatpush1.msra.mxu0 %v2248
        %2726 = vmatprep.subr.mxu0 0.0
        %2727 = vmatpush1.msra.mxu0 %v2249
        %2728 = vmatprep.subr.mxu0 0.0
        %2729 = vmatpush1.msra.mxu0 %v2250
        %2730 = vmatprep.subr.mxu0 0.0
        %2731 = vmatpush1.msra.mxu0 %v2251
        %2732 = vmatprep.subr.mxu0 0.0
        %2733 = vmatpush1.msra.mxu0 %v2708
        %2734 = vmatprep.subr.mxu0 0.0
        %2735 = vmatpush1.msra.mxu0 0.0
        %2736 = vmatprep.subr.mxu0 0.0
        %2737 = vmatpush1.msra.mxu0 0.0
        %2738 = vmatprep.subr.mxu0 0.0
        %2739 = vmatpush1.msra.mxu0 0.0
        %2740 = vmatprep.subr.mxu0 0.0
        %2741 = vmatpush1.msra.mxu0 0.0
        %2742 = vmatprep.subr.mxu0 0.0
        %2743 = vmatpush1.msra.mxu0 0.0
        %2744 = vmatprep.subr.mxu0 0.0
        %2745 = vmatpush1.msra.mxu0 0.0
        %2746 = vmatprep.subr.mxu0 0.0
        %2747 = vmatpush1.msra.mxu0 0.0
        %2748 = vmatprep.subr.mxu0 0.0
        %2749 = vmatpush1.msra.mxu0 0.0
        %2750 = vmatprep.subr.mxu0 0.0
        %2751 = vmatpush1.msra.mxu0 0.0
        %2752 = vmatprep.subr.mxu0 0.0
        %2753 = vmatpush1.msra.mxu0 0.0
        %2754 = vmatprep.subr.mxu0 0.0
        %2755 = vmatpush1.msra.mxu0 0.0
        %2756 = vmatprep.subr.mxu0 0.0
        %2757 = vmatpush1.msra.mxu0 0.0
        %2758 = vmatprep.subr.mxu0 0.0
        %2759 = vmatpush1.msra.mxu0 0.0
        %2760 = vmatprep.subr.mxu0 0.0
        %2761 = vmatpush1.msra.mxu0 0.0
        %2762 = vmatprep.subr.mxu0 0.0
        %2763 = vmatpush1.msra.mxu0 0.0
        %2764 = vmatprep.subr.mxu0 0.0
        %2765 = vmatpush1.msra.mxu0 0.0
        %2766 = vmatprep.subr.mxu0 0.0
        %2767 = vmatpush1.msra.mxu0 0.0
        %2768 = vmatprep.subr.mxu0 0.0
        %2769 = vmatpush1.msra.mxu0 0.0
        %2770 = vmatprep.subr.mxu0 0.0
        %2771 = vmatpush1.msra.mxu0 0.0
        %2772 = vmatprep.subr.mxu0 0.0
        %2773 = vmatpush1.msra.mxu0 0.0
        %2774 = vmatprep.mubr.f32.mxu0 0.0
        %2775 = vmatmul.mubr.f32.gmra.mrb[0].mxu0 %v2631
        %v2776 = vpop.f32.mrb[0].mxu0
        %v2777 = vadd.f32 %v2502, %v2776
        %v2778 = vpop.f32.mrb[0].mxu0
        %2779 = vmatprep.mubr.f32.mxu0 0.0
        %2780 = vmatmul.mubr.f32.gmra.mrb[0].mxu0 %v2634
        %v2781 = vpop.f32.mrb[0].mxu0
        %v2782 = vadd.f32 %v2507, %v2781
        %v2783 = vpop.f32.mrb[0].mxu0
        %2784 = vmatprep.mubr.f32.mxu0 0.0
        %2785 = vmatmul.mubr.f32.gmra.mrb[0].mxu0 %v2637
        %v2786 = vpop.f32.mrb[0].mxu0
        %v2787 = vadd.f32 %v2512, %v2786
        %v2788 = vpop.f32.mrb[0].mxu0
        %2789 = vmatprep.mubr.f32.mxu0 0.0
        %2790 = vmatmul.mubr.f32.gmra.mrb[0].mxu0 %v2640
        %v2791 = vpop.f32.mrb[0].mxu0
        %v2792 = vadd.f32 %v2517, %v2791
        %v2793 = vpop.f32.mrb[0].mxu0
        %2794 = vmatprep.mubr.f32.mxu0 0.0
        %2795 = vmatmul.mubr.f32.gmra.mrb[0].mxu0 %v2643
        %v2796 = vpop.f32.mrb[0].mxu0
        %v2797 = vadd.f32 %v2522, %v2796
        %v2798 = vpop.f32.mrb[0].mxu0
        %2799 = vmatprep.mubr.f32.mxu0 0.0
        %2800 = vmatmul.mubr.f32.gmra.mrb[0].mxu0 %v2646
        %v2801 = vpop.f32.mrb[0].mxu0
        %v2802 = vadd.f32 %v2527, %v2801
        %v2803 = vpop.f32.mrb[0].mxu0
        %2804 = vmatprep.mubr.f32.mxu0 0.0
        %2805 = vmatmul.mubr.f32.gmra.mrb[0].mxu0 %v2649
        %v2806 = vpop.f32.mrb[0].mxu0
        %v2807 = vadd.f32 %v2532, %v2806
        %v2808 = vpop.f32.mrb[0].mxu0
        %2809 = vmatprep.mubr.f32.mxu0 0.0
        %2810 = vmatmul.mubr.f32.gmra.mrb[0].mxu0 %v2652
        %v2811 = vpop.f32.mrb[0].mxu0
        %v2812 = vadd.f32 %v2537, %v2811
        %v2813 = vpop.f32.mrb[0].mxu0
        %2814 = vmatprep.mubr.f32.mxu0 0.0
        %2815 = vmatmul.mubr.f32.gmra.mrb[0].mxu0 %v2655
        %v2816 = vpop.f32.mrb[0].mxu0
        %v2817 = vadd.f32 %v2542, %v2816
        %v2818 = vpop.f32.mrb[0].mxu0
        %2819 = vmatprep.mubr.f32.mxu0 0.0
        %2820 = vmatmul.mubr.f32.gmra.mrb[0].mxu0 %v2658
        %v2821 = vpop.f32.mrb[0].mxu0
        %v2822 = vadd.f32 %v2547, %v2821
        %v2823 = vpop.f32.mrb[0].mxu0
        %2824 = vmatprep.mubr.f32.mxu0 0.0
        %2825 = vmatmul.mubr.f32.gmra.mrb[0].mxu0 %v2661
        %v2826 = vpop.f32.mrb[0].mxu0
        %v2827 = vadd.f32 %v2552, %v2826
        %v2828 = vpop.f32.mrb[0].mxu0
        %2829 = vmatprep.mubr.f32.mxu0 0.0
        %2830 = vmatmul.mubr.f32.gmra.mrb[0].mxu0 %v2664
        %v2831 = vpop.f32.mrb[0].mxu0
        %v2832 = vadd.f32 %v2557, %v2831
        %v2833 = vpop.f32.mrb[0].mxu0
        %2834 = vmatprep.mubr.f32.mxu0 0.0
        %2835 = vmatmul.mubr.f32.gmra.mrb[0].mxu0 %v2667
        %v2836 = vpop.f32.mrb[0].mxu0
        %v2837 = vadd.f32 %v2562, %v2836
        %v2838 = vpop.f32.mrb[0].mxu0
        %2839 = vmatprep.mubr.f32.mxu0 0.0
        %2840 = vmatmul.mubr.f32.gmra.mrb[0].mxu0 %v2670
        %v2841 = vpop.f32.mrb[0].mxu0
        %v2842 = vadd.f32 %v2567, %v2841
        %v2843 = vpop.f32.mrb[0].mxu0
        %2844 = vmatprep.mubr.f32.mxu0 0.0
        %2845 = vmatmul.mubr.f32.gmra.mrb[0].mxu0 %v2673
        %v2846 = vpop.f32.mrb[0].mxu0
        %v2847 = vadd.f32 %v2572, %v2846
        %v2848 = vpop.f32.mrb[0].mxu0
        %2849 = vmatprep.mubr.f32.mxu0 0.0
        %2850 = vmatmul.mubr.f32.gmra.mrb[0].mxu0 %v2676
        %v2851 = vpop.f32.mrb[0].mxu0
        %v2852 = vadd.f32 %v2577, %v2851
        %v2853 = vpop.f32.mrb[0].mxu0
        %2854 = vmatprep.mubr.f32.mxu0 0.0
        %2855 = vmatmul.mubr.f32.gmra.mrb[0].mxu0 %v2679
        %v2856 = vpop.f32.mrb[0].mxu0
        %v2857 = vadd.f32 %v2582, %v2856
        %v2858 = vpop.f32.mrb[0].mxu0
        %2859 = vmatprep.mubr.f32.mxu0 0.0
        %2860 = vmatmul.mubr.f32.gmra.mrb[0].mxu0 %v2682
        %v2861 = vpop.f32.mrb[0].mxu0
        %v2862 = vadd.f32 %v2587, %v2861
        %v2863 = vpop.f32.mrb[0].mxu0
        %2864 = vmatprep.mubr.f32.mxu0 0.0
        %2865 = vmatmul.mubr.f32.gmra.mrb[0].mxu0 %v2685
        %v2866 = vpop.f32.mrb[0].mxu0
        %v2867 = vadd.f32 %v2592, %v2866
        %v2868 = vpop.f32.mrb[0].mxu0
        %2869 = vmatprep.mubr.f32.mxu0 0.0
        %2870 = vmatmul.mubr.f32.gmra.mrb[0].mxu0 %v2688
        %v2871 = vpop.f32.mrb[0].mxu0
        %v2872 = vadd.f32 %v2597, %v2871
        %v2873 = vpop.f32.mrb[0].mxu0
        %2874 = vmatprep.mubr.f32.mxu0 0.0
        %2875 = vmatmul.mubr.f32.gmra.mrb[0].mxu0 %v2691
        %v2876 = vpop.f32.mrb[0].mxu0
        %v2877 = vadd.f32 %v2602, %v2876
        %v2878 = vpop.f32.mrb[0].mxu0
        %2879 = vmatprep.mubr.f32.mxu0 0.0
        %2880 = vmatmul.mubr.f32.gmra.mrb[0].mxu0 %v2694
        %v2881 = vpop.f32.mrb[0].mxu0
        %v2882 = vadd.f32 %v2607, %v2881
        %v2883 = vpop.f32.mrb[0].mxu0
        %2884 = vmatprep.mubr.f32.mxu0 0.0
        %2885 = vmatmul.mubr.f32.gmra.mrb[0].mxu0 %v2697
        %v2886 = vpop.f32.mrb[0].mxu0
        %v2887 = vadd.f32 %v2612, %v2886
        %v2888 = vpop.f32.mrb[0].mxu0
        %2889 = vmatprep.mubr.f32.mxu0 0.0
        %2890 = vmatmul.mubr.f32.gmra.mrb[0].mxu0 %v2700
        %v2891 = vpop.f32.mrb[0].mxu0
        %v2892 = vadd.f32 %v2617, %v2891
        %v2893 = vpop.f32.mrb[0].mxu0
        %2894 = vmatprep.mubr.f32.mxu0 0.0
        %2895 = vmatmul.mubr.f32.gmra.mrb[0].mxu0 %v2703
        %v2896 = vpop.f32.mrb[0].mxu0
        %v2897 = vadd.f32 %v2622, %v2896
        %v2898 = vpop.f32.mrb[0].mxu0
        %2899 = vmatprep.mubr.f32.mxu0 0.0
        %2900 = vmatmul.mubr.f32.gmra.mrb[0].mxu0 %v2706
        %v2901 = vpop.f32.mrb[0].mxu0
        %v2902 = vadd.f32 %v2627, %v2901
        %v2903 = vpop.f32.mrb[0].mxu0
        %2904 = vdwg.mxu0
        %s2905 = scalar_lea.vmem %s5, 416
        %v2906 = vld [vmem:[%s2905] sm:$0xff]
        %v2907 = vld [vmem:[%s2905 + $0x8] sm:$0xff]
        %v2908 = vld [vmem:[%s2905 + $0x10] sm:$0xff]
        %v2909 = vld [vmem:[%s2905 + $0x18] sm:$0xff]
        %v2910 = vld [vmem:[%s2905 + $0x20] sm:$0xff]
        %v2911 = vld [vmem:[%s2905 + $0x28] sm:$0xff]
        %v2912 = vld [vmem:[%s2905 + $0x30] sm:$0xff]
        %v2913 = vld [vmem:[%s2905 + $0x38] sm:$0xff]
        %v2914 = vld [vmem:[%s2905 + $0x40] sm:$0xff]
        %v2915 = vld [vmem:[%s2905 + $0x48] sm:$0xff]
        %v2916 = vld [vmem:[%s2905 + $0x50] sm:$0xff]
        %v2917 = vld [vmem:[%s2905 + $0x58] sm:$0xff]
        %v2918 = vld [vmem:[%s2905 + $0x60] sm:$0xff]
        %v2919 = vld [vmem:[%s2905 + $0x68] sm:$0xff]
        %v2920 = vld [vmem:[%s2905 + $0x70] sm:$0xff]
        %v2921 = vld [vmem:[%s2905 + $0x78] sm:$0xff]
        %v2922 = vld [vmem:[%s2905 + $0x80] sm:$0xff]
        %v2923 = vld [vmem:[%s2905 + $0x88] sm:$0xff]
        %v2924 = vld [vmem:[%s2905 + $0x90] sm:$0xff]
        %v2925 = vld [vmem:[%s2905 + $0x98] sm:$0xff]
        %v2926 = vld [vmem:[%s2905 + $0xa0] sm:$0xff]
        %v2927 = vld [vmem:[%s2905 + $0xa8] sm:$0xff]
        %v2928 = vld [vmem:[%s2905 + $0xb0] sm:$0xff]
        %v2929 = vld [vmem:[%s2905 + $0xb8] sm:$0xff]
        %v2930 = vld [vmem:[%s2905 + $0xc0] sm:$0xff]
        %v2931 = vld [vmem:[%s2905 + $0xc8] sm:$0xff]
        %2932 = vrot.lane.b32.xlu0 %v2241, 126
        %v2933 = vpop.permute.xlu0 %2932
        %2934 = vrot.lane.b32.xlu0 %v2242, 126
        %v2935 = vpop.permute.xlu0 %2934
        %2936 = vrot.lane.b32.xlu0 %v2243, 126
        %v2937 = vpop.permute.xlu0 %2936
        %2938 = vrot.lane.b32.xlu0 %v2244, 126
        %v2939 = vpop.permute.xlu0 %2938
        %2940 = vrot.lane.b32.xlu0 %v2245, 126
        %v2941 = vpop.permute.xlu0 %2940
        %2942 = vrot.lane.b32.xlu0 %v2246, 126
        %v2943 = vpop.permute.xlu0 %2942
        %2944 = vrot.lane.b32.xlu0 %v2247, 126
        %v2945 = vpop.permute.xlu0 %2944
        %2946 = vrot.lane.b32.xlu0 %v2248, 126
        %v2947 = vpop.permute.xlu0 %2946
        %2948 = vrot.lane.b32.xlu0 %v2249, 126
        %v2949 = vpop.permute.xlu0 %2948
        %2950 = vrot.lane.b32.xlu0 %v2250, 126
        %v2951 = vpop.permute.xlu0 %2950
        %2952 = vrot.lane.b32.xlu0 %v2251, 126
        %v2953 = vpop.permute.xlu0 %2952
        %2954 = vrot.lane.b32.xlu0 %v2252, 126
        %v2955 = vpop.permute.xlu0 %2954
        %v2968 = vsel %vm2353, %v2906, 0
        %v2971 = vsel %vm2353, %v2907, 0
        %v2974 = vsel %vm2353, %v2908, 0
        %v2977 = vsel %vm2353, %v2909, 0
        %v2980 = vsel %vm2353, %v2910, 0
        %v2983 = vsel %vm2353, %v2911, 0
        %v2986 = vsel %vm2353, %v2912, 0
        %v2989 = vsel %vm2353, %v2913, 0
        %v2992 = vsel %vm2353, %v2914, 0
        %v2995 = vsel %vm2353, %v2915, 0
        %v2998 = vsel %vm2353, %v2916, 0
        %v3001 = vsel %vm2353, %v2917, 0
        %v3004 = vsel %vm2353, %v2918, 0
        %v3007 = vsel %vm2353, %v2919, 0
        %v3010 = vsel %vm2353, %v2920, 0
        %v3013 = vsel %vm2353, %v2921, 0
        %v3016 = vsel %vm2353, %v2922, 0
        %v3019 = vsel %vm2353, %v2923, 0
        %v3022 = vsel %vm2353, %v2924, 0
        %v3025 = vsel %vm2353, %v2925, 0
        %v3028 = vsel %vm2353, %v2926, 0
        %v3031 = vsel %vm2353, %v2927, 0
        %v3034 = vsel %vm2353, %v2928, 0
        %v3037 = vsel %vm2353, %v2929, 0
        %v3040 = vsel %vm2353, %v2930, 0
        %v3043 = vsel %vm2353, %v2931, 0
        %v3045 = vsel %vm2432, %v2955, 0
        %3047 = vmatprep.subr.mxu0 0.0
        %3048 = vmatpush1.msra.mxu0 %v2933
        %3049 = vmatprep.subr.mxu0 0.0
        %3050 = vmatpush1.msra.mxu0 %v2935
        %3051 = vmatprep.subr.mxu0 0.0
        %3052 = vmatpush1.msra.mxu0 %v2937
        %3053 = vmatprep.subr.mxu0 0.0
        %3054 = vmatpush1.msra.mxu0 %v2939
        %3055 = vmatprep.subr.mxu0 0.0
        %3056 = vmatpush1.msra.mxu0 %v2941
        %3057 = vmatprep.subr.mxu0 0.0
        %3058 = vmatpush1.msra.mxu0 %v2943
        %3059 = vmatprep.subr.mxu0 0.0
        %3060 = vmatpush1.msra.mxu0 %v2945
        %3061 = vmatprep.subr.mxu0 0.0
        %3062 = vmatpush1.msra.mxu0 %v2947
        %3063 = vmatprep.subr.mxu0 0.0
        %3064 = vmatpush1.msra.mxu0 %v2949
        %3065 = vmatprep.subr.mxu0 0.0
        %3066 = vmatpush1.msra.mxu0 %v2951
        %3067 = vmatprep.subr.mxu0 0.0
        %3068 = vmatpush1.msra.mxu0 %v2953
        %3069 = vmatprep.subr.mxu0 0.0
        %3070 = vmatpush1.msra.mxu0 %v3045
        %3071 = vmatprep.subr.mxu0 0.0
        %3072 = vmatpush1.msra.mxu0 0.0
        %3073 = vmatprep.subr.mxu0 0.0
        %3074 = vmatpush1.msra.mxu0 0.0
        %3075 = vmatprep.subr.mxu0 0.0
        %3076 = vmatpush1.msra.mxu0 0.0
        %3077 = vmatprep.subr.mxu0 0.0
        %3078 = vmatpush1.msra.mxu0 0.0
        %3079 = vmatprep.subr.mxu0 0.0
        %3080 = vmatpush1.msra.mxu0 0.0
        %3081 = vmatprep.subr.mxu0 0.0
        %3082 = vmatpush1.msra.mxu0 0.0
        %3083 = vmatprep.subr.mxu0 0.0
        %3084 = vmatpush1.msra.mxu0 0.0
        %3085 = vmatprep.subr.mxu0 0.0
        %3086 = vmatpush1.msra.mxu0 0.0
        %3087 = vmatprep.subr.mxu0 0.0
        %3088 = vmatpush1.msra.mxu0 0.0
        %3089 = vmatprep.subr.mxu0 0.0
        %3090 = vmatpush1.msra.mxu0 0.0
        %3091 = vmatprep.subr.mxu0 0.0
        %3092 = vmatpush1.msra.mxu0 0.0
        %3093 = vmatprep.subr.mxu0 0.0
        %3094 = vmatpush1.msra.mxu0 0.0
        %3095 = vmatprep.subr.mxu0 0.0
        %3096 = vmatpush1.msra.mxu0 0.0
        %3097 = vmatprep.subr.mxu0 0.0
        %3098 = vmatpush1.msra.mxu0 0.0
        %3099 = vmatprep.subr.mxu0 0.0
        %3100 = vmatpush1.msra.mxu0 0.0
        %3101 = vmatprep.subr.mxu0 0.0
        %3102 = vmatpush1.msra.mxu0 0.0
        %3103 = vmatprep.subr.mxu0 0.0
        %3104 = vmatpush1.msra.mxu0 0.0
        %3105 = vmatprep.subr.mxu0 0.0
        %3106 = vmatpush1.msra.mxu0 0.0
        %3107 = vmatprep.subr.mxu0 0.0
        %3108 = vmatpush1.msra.mxu0 0.0
        %3109 = vmatprep.subr.mxu0 0.0
        %3110 = vmatpush1.msra.mxu0 0.0
        %3111 = vmatprep.mubr.f32.mxu0 0.0
        %3112 = vmatmul.mubr.f32.gmra.mrb[0].mxu0 %v2968
        %v3113 = vpop.f32.mrb[0].mxu0
        %v3114 = vadd.f32 0.0, %v3113
        %v3115 = vpop.f32.mrb[0].mxu0
        %3116 = vmatprep.mubr.f32.mxu0 0.0
        %3117 = vmatmul.mubr.f32.gmra.mrb[0].mxu0 %v2971
        %v3118 = vpop.f32.mrb[0].mxu0
        %v3119 = vadd.f32 0.0, %v3118
        %v3120 = vpop.f32.mrb[0].mxu0
        %3121 = vmatprep.mubr.f32.mxu0 0.0
        %3122 = vmatmul.mubr.f32.gmra.mrb[0].mxu0 %v2974
        %v3123 = vpop.f32.mrb[0].mxu0
        %v3124 = vadd.f32 0.0, %v3123
        %v3125 = vpop.f32.mrb[0].mxu0
        %3126 = vmatprep.mubr.f32.mxu0 0.0
        %3127 = vmatmul.mubr.f32.gmra.mrb[0].mxu0 %v2977
        %v3128 = vpop.f32.mrb[0].mxu0
        %v3129 = vadd.f32 0.0, %v3128
        %v3130 = vpop.f32.mrb[0].mxu0
        %3131 = vmatprep.mubr.f32.mxu0 0.0
        %3132 = vmatmul.mubr.f32.gmra.mrb[0].mxu0 %v2980
        %v3133 = vpop.f32.mrb[0].mxu0
        %v3134 = vadd.f32 0.0, %v3133
        %v3135 = vpop.f32.mrb[0].mxu0
        %3136 = vmatprep.mubr.f32.mxu0 0.0
        %3137 = vmatmul.mubr.f32.gmra.mrb[0].mxu0 %v2983
        %v3138 = vpop.f32.mrb[0].mxu0
        %v3139 = vadd.f32 0.0, %v3138
        %v3140 = vpop.f32.mrb[0].mxu0
        %3141 = vmatprep.mubr.f32.mxu0 0.0
        %3142 = vmatmul.mubr.f32.gmra.mrb[0].mxu0 %v2986
        %v3143 = vpop.f32.mrb[0].mxu0
        %v3144 = vadd.f32 0.0, %v3143
        %v3145 = vpop.f32.mrb[0].mxu0
        %3146 = vmatprep.mubr.f32.mxu0 0.0
        %3147 = vmatmul.mubr.f32.gmra.mrb[0].mxu0 %v2989
        %v3148 = vpop.f32.mrb[0].mxu0
        %v3149 = vadd.f32 0.0, %v3148
        %v3150 = vpop.f32.mrb[0].mxu0
        %3151 = vmatprep.mubr.f32.mxu0 0.0
        %3152 = vmatmul.mubr.f32.gmra.mrb[0].mxu0 %v2992
        %v3153 = vpop.f32.mrb[0].mxu0
        %v3154 = vadd.f32 0.0, %v3153
        %v3155 = vpop.f32.mrb[0].mxu0
        %3156 = vmatprep.mubr.f32.mxu0 0.0
        %3157 = vmatmul.mubr.f32.gmra.mrb[0].mxu0 %v2995
        %v3158 = vpop.f32.mrb[0].mxu0
        %v3159 = vadd.f32 0.0, %v3158
        %v3160 = vpop.f32.mrb[0].mxu0
        %3161 = vmatprep.mubr.f32.mxu0 0.0
        %3162 = vmatmul.mubr.f32.gmra.mrb[0].mxu0 %v2998
        %v3163 = vpop.f32.mrb[0].mxu0
        %v3164 = vadd.f32 0.0, %v3163
        %v3165 = vpop.f32.mrb[0].mxu0
        %3166 = vmatprep.mubr.f32.mxu0 0.0
        %3167 = vmatmul.mubr.f32.gmra.mrb[0].mxu0 %v3001
        %v3168 = vpop.f32.mrb[0].mxu0
        %v3169 = vadd.f32 0.0, %v3168
        %v3170 = vpop.f32.mrb[0].mxu0
        %3171 = vmatprep.mubr.f32.mxu0 0.0
        %3172 = vmatmul.mubr.f32.gmra.mrb[0].mxu0 %v3004
        %v3173 = vpop.f32.mrb[0].mxu0
        %v3174 = vadd.f32 0.0, %v3173
        %v3175 = vpop.f32.mrb[0].mxu0
        %3176 = vmatprep.mubr.f32.mxu0 0.0
        %3177 = vmatmul.mubr.f32.gmra.mrb[0].mxu0 %v3007
        %v3178 = vpop.f32.mrb[0].mxu0
        %v3179 = vadd.f32 0.0, %v3178
        %v3180 = vpop.f32.mrb[0].mxu0
        %3181 = vmatprep.mubr.f32.mxu0 0.0
        %3182 = vmatmul.mubr.f32.gmra.mrb[0].mxu0 %v3010
        %v3183 = vpop.f32.mrb[0].mxu0
        %v3184 = vadd.f32 0.0, %v3183
        %v3185 = vpop.f32.mrb[0].mxu0
        %3186 = vmatprep.mubr.f32.mxu0 0.0
        %3187 = vmatmul.mubr.f32.gmra.mrb[0].mxu0 %v3013
        %v3188 = vpop.f32.mrb[0].mxu0
        %v3189 = vadd.f32 0.0, %v3188
        %v3190 = vpop.f32.mrb[0].mxu0
        %3191 = vmatprep.mubr.f32.mxu0 0.0
        %3192 = vmatmul.mubr.f32.gmra.mrb[0].mxu0 %v3016
        %v3193 = vpop.f32.mrb[0].mxu0
        %v3194 = vadd.f32 0.0, %v3193
        %v3195 = vpop.f32.mrb[0].mxu0
        %3196 = vmatprep.mubr.f32.mxu0 0.0
        %3197 = vmatmul.mubr.f32.gmra.mrb[0].mxu0 %v3019
        %v3198 = vpop.f32.mrb[0].mxu0
        %v3199 = vadd.f32 0.0, %v3198
        %v3200 = vpop.f32.mrb[0].mxu0
        %3201 = vmatprep.mubr.f32.mxu0 0.0
        %3202 = vmatmul.mubr.f32.gmra.mrb[0].mxu0 %v3022
        %v3203 = vpop.f32.mrb[0].mxu0
        %v3204 = vadd.f32 0.0, %v3203
        %v3205 = vpop.f32.mrb[0].mxu0
        %3206 = vmatprep.mubr.f32.mxu0 0.0
        %3207 = vmatmul.mubr.f32.gmra.mrb[0].mxu0 %v3025
        %v3208 = vpop.f32.mrb[0].mxu0
        %v3209 = vadd.f32 0.0, %v3208
        %v3210 = vpop.f32.mrb[0].mxu0
        %3211 = vmatprep.mubr.f32.mxu0 0.0
        %3212 = vmatmul.mubr.f32.gmra.mrb[0].mxu0 %v3028
        %v3213 = vpop.f32.mrb[0].mxu0
        %v3214 = vadd.f32 0.0, %v3213
        %v3215 = vpop.f32.mrb[0].mxu0
        %3216 = vmatprep.mubr.f32.mxu0 0.0
        %3217 = vmatmul.mubr.f32.gmra.mrb[0].mxu0 %v3031
        %v3218 = vpop.f32.mrb[0].mxu0
        %v3219 = vadd.f32 0.0, %v3218
        %v3220 = vpop.f32.mrb[0].mxu0
        %3221 = vmatprep.mubr.f32.mxu0 0.0
        %3222 = vmatmul.mubr.f32.gmra.mrb[0].mxu0 %v3034
        %v3223 = vpop.f32.mrb[0].mxu0
        %v3224 = vadd.f32 0.0, %v3223
        %v3225 = vpop.f32.mrb[0].mxu0
        %3226 = vmatprep.mubr.f32.mxu0 0.0
        %3227 = vmatmul.mubr.f32.gmra.mrb[0].mxu0 %v3037
        %v3228 = vpop.f32.mrb[0].mxu0
        %v3229 = vadd.f32 0.0, %v3228
        %v3230 = vpop.f32.mrb[0].mxu0
        %3231 = vmatprep.mubr.f32.mxu0 0.0
        %3232 = vmatmul.mubr.f32.gmra.mrb[0].mxu0 %v3040
        %v3233 = vpop.f32.mrb[0].mxu0
        %v3234 = vadd.f32 0.0, %v3233
        %v3235 = vpop.f32.mrb[0].mxu0
        %3236 = vmatprep.mubr.f32.mxu0 0.0
        %3237 = vmatmul.mubr.f32.gmra.mrb[0].mxu0 %v3043
        %v3238 = vpop.f32.mrb[0].mxu0
        %v3239 = vadd.f32 0.0, %v3238
        %v3240 = vpop.f32.mrb[0].mxu0
        %3241 = vdwg.mxu0
        %v3242 = vadd.f32 %v2777, %v3114
        %v3243 = vadd.f32 %v2782, %v3119
        %v3244 = vadd.f32 %v2787, %v3124
        %v3245 = vadd.f32 %v2792, %v3129
        %v3246 = vadd.f32 %v2797, %v3134
        %v3247 = vadd.f32 %v2802, %v3139
        %v3248 = vadd.f32 %v2807, %v3144
        %v3249 = vadd.f32 %v2812, %v3149
        %v3250 = vadd.f32 %v2817, %v3154
        %v3251 = vadd.f32 %v2822, %v3159
        %v3252 = vadd.f32 %v2827, %v3164
        %v3253 = vadd.f32 %v2832, %v3169
        %v3254 = vadd.f32 %v2837, %v3174
        %v3255 = vadd.f32 %v2842, %v3179
        %v3256 = vadd.f32 %v2847, %v3184
        %v3257 = vadd.f32 %v2852, %v3189
        %v3258 = vadd.f32 %v2857, %v3194
        %v3259 = vadd.f32 %v2862, %v3199
        %v3260 = vadd.f32 %v2867, %v3204
        %v3261 = vadd.f32 %v2872, %v3209
        %v3262 = vadd.f32 %v2877, %v3214
        %v3263 = vadd.f32 %v2882, %v3219
        %v3264 = vadd.f32 %v2887, %v3224
        %v3265 = vadd.f32 %v2892, %v3229
        %v3266 = vadd.f32 %v2897, %v3234
        %v3267 = vadd.f32 %v2902, %v3239
        %v3268 = vld [vmem:[%s6] sm:$0xff]
        %v3269 = vld [vmem:[%s6 + $0x8] sm:$0xff]
        %v3270 = vld [vmem:[%s6 + $0x10] sm:$0xff]
        %v3271 = vld [vmem:[%s6 + $0x18] sm:$0xff]
        %v3272 = vld [vmem:[%s6 + $0x20] sm:$0xff]
        %v3273 = vld [vmem:[%s6 + $0x28] sm:$0xff]
        %v3274 = vld [vmem:[%s6 + $0x30] sm:$0xff]
        %v3275 = vld [vmem:[%s6 + $0x38] sm:$0xff]
        %v3276 = vld [vmem:[%s6 + $0x40] sm:$0xff]
        %v3277 = vld [vmem:[%s6 + $0x48] sm:$0xff]
        %v3278 = vld [vmem:[%s6 + $0x50] sm:$0xff]
        %v3279 = vld [vmem:[%s6 + $0x58] sm:$0xff]
        %v3280 = vld [vmem:[%s6 + $0x60] sm:$0xff]
        %v3281 = vld [vmem:[%s6 + $0x68] sm:$0xff]
        %v3282 = vld [vmem:[%s6 + $0x70] sm:$0xff]
        %v3283 = vld [vmem:[%s6 + $0x78] sm:$0xff]
        %v3284 = vld [vmem:[%s6 + $0x80] sm:$0xff]
        %v3285 = vld [vmem:[%s6 + $0x88] sm:$0xff]
        %v3286 = vld [vmem:[%s6 + $0x90] sm:$0xff]
        %v3287 = vld [vmem:[%s6 + $0x98] sm:$0xff]
        %v3288 = vld [vmem:[%s6 + $0xa0] sm:$0xff]
        %v3289 = vld [vmem:[%s6 + $0xa8] sm:$0xff]
        %v3290 = vld [vmem:[%s6 + $0xb0] sm:$0xff]
        %v3291 = vld [vmem:[%s6 + $0xb8] sm:$0xff]
        %v3292 = vld [vmem:[%s6 + $0xc0] sm:$0xff]
        %v3293 = vld [vmem:[%s6 + $0xc8] sm:$0xff]
        %3295 = vset.pattern.permute.xlu0 0
        %3296 = vperm.xlu0 %3295, %v3268
        %v3297 = vpop.permute.xlu0 %3296
        %3300 = vset.pattern.permute.xlu0 0
        %3301 = vperm.xlu0 %3300, %v3269
        %v3302 = vpop.permute.xlu0 %3301
        %3305 = vset.pattern.permute.xlu0 0
        %3306 = vperm.xlu0 %3305, %v3270
        %v3307 = vpop.permute.xlu0 %3306
        %3310 = vset.pattern.permute.xlu0 0
        %3311 = vperm.xlu0 %3310, %v3271
        %v3312 = vpop.permute.xlu0 %3311
        %3315 = vset.pattern.permute.xlu0 0
        %3316 = vperm.xlu0 %3315, %v3272
        %v3317 = vpop.permute.xlu0 %3316
        %3320 = vset.pattern.permute.xlu0 0
        %3321 = vperm.xlu0 %3320, %v3273
        %v3322 = vpop.permute.xlu0 %3321
        %3325 = vset.pattern.permute.xlu0 0
        %3326 = vperm.xlu0 %3325, %v3274
        %v3327 = vpop.permute.xlu0 %3326
        %3330 = vset.pattern.permute.xlu0 0
        %3331 = vperm.xlu0 %3330, %v3275
        %v3332 = vpop.permute.xlu0 %3331
        %3335 = vset.pattern.permute.xlu0 0
        %3336 = vperm.xlu0 %3335, %v3276
        %v3337 = vpop.permute.xlu0 %3336
        %3340 = vset.pattern.permute.xlu0 0
        %3341 = vperm.xlu0 %3340, %v3277
        %v3342 = vpop.permute.xlu0 %3341
        %3345 = vset.pattern.permute.xlu0 0
        %3346 = vperm.xlu0 %3345, %v3278
        %v3347 = vpop.permute.xlu0 %3346
        %3350 = vset.pattern.permute.xlu0 0
        %3351 = vperm.xlu0 %3350, %v3279
        %v3352 = vpop.permute.xlu0 %3351
        %3355 = vset.pattern.permute.xlu0 0
        %3356 = vperm.xlu0 %3355, %v3280
        %v3357 = vpop.permute.xlu0 %3356
        %3360 = vset.pattern.permute.xlu0 0
        %3361 = vperm.xlu0 %3360, %v3281
        %v3362 = vpop.permute.xlu0 %3361
        %3365 = vset.pattern.permute.xlu0 0
        %3366 = vperm.xlu0 %3365, %v3282
        %v3367 = vpop.permute.xlu0 %3366
        %3370 = vset.pattern.permute.xlu0 0
        %3371 = vperm.xlu0 %3370, %v3283
        %v3372 = vpop.permute.xlu0 %3371
        %3375 = vset.pattern.permute.xlu0 0
        %3376 = vperm.xlu0 %3375, %v3284
        %v3377 = vpop.permute.xlu0 %3376
        %3380 = vset.pattern.permute.xlu0 0
        %3381 = vperm.xlu0 %3380, %v3285
        %v3382 = vpop.permute.xlu0 %3381
        %3385 = vset.pattern.permute.xlu0 0
        %3386 = vperm.xlu0 %3385, %v3286
        %v3387 = vpop.permute.xlu0 %3386
        %3390 = vset.pattern.permute.xlu0 0
        %3391 = vperm.xlu0 %3390, %v3287
        %v3392 = vpop.permute.xlu0 %3391
        %3395 = vset.pattern.permute.xlu0 0
        %3396 = vperm.xlu0 %3395, %v3288
        %v3397 = vpop.permute.xlu0 %3396
        %3400 = vset.pattern.permute.xlu0 0
        %3401 = vperm.xlu0 %3400, %v3289
        %v3402 = vpop.permute.xlu0 %3401
        %3405 = vset.pattern.permute.xlu0 0
        %3406 = vperm.xlu0 %3405, %v3290
        %v3407 = vpop.permute.xlu0 %3406
        %3410 = vset.pattern.permute.xlu0 0
        %3411 = vperm.xlu0 %3410, %v3291
        %v3412 = vpop.permute.xlu0 %3411
        %3415 = vset.pattern.permute.xlu0 0
        %3416 = vperm.xlu0 %3415, %v3292
        %v3417 = vpop.permute.xlu0 %3416
        %3420 = vset.pattern.permute.xlu0 0
        %3421 = vperm.xlu0 %3420, %v3293
        %v3422 = vpop.permute.xlu0 %3421
        %v3424 = vadd.f32 %v3242, %v3297
        %v3425 = vadd.f32 %v3243, %v3302
        %v3426 = vadd.f32 %v3244, %v3307
        %v3427 = vadd.f32 %v3245, %v3312
        %v3428 = vadd.f32 %v3246, %v3317
        %v3429 = vadd.f32 %v3247, %v3322
        %v3430 = vadd.f32 %v3248, %v3327
        %v3431 = vadd.f32 %v3249, %v3332
        %v3432 = vadd.f32 %v3250, %v3337
        %v3433 = vadd.f32 %v3251, %v3342
        %v3434 = vadd.f32 %v3252, %v3347
        %v3435 = vadd.f32 %v3253, %v3352
        %v3436 = vadd.f32 %v3254, %v3357
        %v3437 = vadd.f32 %v3255, %v3362
        %v3438 = vadd.f32 %v3256, %v3367
        %v3439 = vadd.f32 %v3257, %v3372
        %v3440 = vadd.f32 %v3258, %v3377
        %v3441 = vadd.f32 %v3259, %v3382
        %v3442 = vadd.f32 %v3260, %v3387
        %v3443 = vadd.f32 %v3261, %v3392
        %v3444 = vadd.f32 %v3262, %v3397
        %v3445 = vadd.f32 %v3263, %v3402
        %v3446 = vadd.f32 %v3264, %v3407
        %v3447 = vadd.f32 %v3265, %v3412
        %v3448 = vadd.f32 %v3266, %v3417
        %v3449 = vadd.f32 %v3267, %v3422
        %v3450 = vmax.f32 %v3424, 0.0
        %v3451 = vmax.f32 %v3425, 0.0
        %v3452 = vmax.f32 %v3426, 0.0
        %v3453 = vmax.f32 %v3427, 0.0
        %v3454 = vmax.f32 %v3428, 0.0
        %v3455 = vmax.f32 %v3429, 0.0
        %v3456 = vmax.f32 %v3430, 0.0
        %v3457 = vmax.f32 %v3431, 0.0
        %v3458 = vmax.f32 %v3432, 0.0
        %v3459 = vmax.f32 %v3433, 0.0
        %v3460 = vmax.f32 %v3434, 0.0
        %v3461 = vmax.f32 %v3435, 0.0
        %v3462 = vmax.f32 %v3436, 0.0
        %v3463 = vmax.f32 %v3437, 0.0
        %v3464 = vmax.f32 %v3438, 0.0
        %v3465 = vmax.f32 %v3439, 0.0
        %v3466 = vmax.f32 %v3440, 0.0
        %v3467 = vmax.f32 %v3441, 0.0
        %v3468 = vmax.f32 %v3442, 0.0
        %v3469 = vmax.f32 %v3443, 0.0
        %v3470 = vmax.f32 %v3444, 0.0
        %v3471 = vmax.f32 %v3445, 0.0
        %v3472 = vmax.f32 %v3446, 0.0
        %v3473 = vmax.f32 %v3447, 0.0
        %v3474 = vmax.f32 %v3448, 0.0
        %v3475 = vmax.f32 %v3449, 0.0
        %v3476 = vld [vmem:[%s7] sm:$0xff]
        %v3477 = vld [vmem:[%s7 + $0x8] sm:$0xff]
        %v3478 = vld [vmem:[%s7 + $0x10] sm:$0xff]
        %v3479 = vld [vmem:[%s7 + $0x18] sm:$0xff]
        %v3480 = vld [vmem:[%s7 + $0x20] sm:$0xff]
        %v3481 = vld [vmem:[%s7 + $0x28] sm:$0xff]
        %v3482 = vld [vmem:[%s7 + $0x30] sm:$0xff]
        %v3483 = vld [vmem:[%s7 + $0x38] sm:$0xff]
        %v3484 = vld [vmem:[%s7 + $0x40] sm:$0xff]
        %v3485 = vld [vmem:[%s7 + $0x48] sm:$0xff]
        %v3486 = vld [vmem:[%s7 + $0x50] sm:$0xff]
        %v3487 = vld [vmem:[%s7 + $0x58] sm:$0xff]
        %v3488 = vld [vmem:[%s7 + $0x60] sm:$0xff]
        %v3489 = vld [vmem:[%s7 + $0x68] sm:$0xff]
        %v3490 = vld [vmem:[%s7 + $0x70] sm:$0xff]
        %v3491 = vld [vmem:[%s7 + $0x78] sm:$0xff]
        %v3492 = vld [vmem:[%s7 + $0x80] sm:$0xff]
        %v3493 = vld [vmem:[%s7 + $0x88] sm:$0xff]
        %v3494 = vld [vmem:[%s7 + $0x90] sm:$0xff]
        %v3495 = vld [vmem:[%s7 + $0x98] sm:$0xff]
        %v3496 = vld [vmem:[%s7 + $0xa0] sm:$0xff]
        %v3497 = vld [vmem:[%s7 + $0xa8] sm:$0xff]
        %v3498 = vld [vmem:[%s7 + $0xb0] sm:$0xff]
        %v3499 = vld [vmem:[%s7 + $0xb8] sm:$0xff]
        %vm3500 = vcmask 654336
        %v3502 = vsel %vm3500, %v3477, 0
        %v3505 = vsel %vm3500, %v3479, 0
        %v3508 = vsel %vm3500, %v3481, 0
        %v3511 = vsel %vm3500, %v3483, 0
        %v3514 = vsel %vm3500, %v3485, 0
        %v3517 = vsel %vm3500, %v3487, 0
        %v3520 = vsel %vm3500, %v3489, 0
        %v3523 = vsel %vm3500, %v3491, 0
        %v3526 = vsel %vm3500, %v3493, 0
        %v3529 = vsel %vm3500, %v3495, 0
        %v3532 = vsel %vm3500, %v3497, 0
        %v3535 = vsel %vm3500, %v3499, 0
        %3537 = vmatprep.subr.mxu0 0.0
        %3538 = vmatpush1.msra.mxu0 %v3450
        %3539 = vmatprep.subr.mxu0 0.0
        %3540 = vmatpush1.msra.mxu0 %v3451
        %3541 = vmatprep.subr.mxu0 0.0
        %3542 = vmatpush1.msra.mxu0 %v3452
        %3543 = vmatprep.subr.mxu0 0.0
        %3544 = vmatpush1.msra.mxu0 %v3453
        %3545 = vmatprep.subr.mxu0 0.0
        %3546 = vmatpush1.msra.mxu0 %v3454
        %3547 = vmatprep.subr.mxu0 0.0
        %3548 = vmatpush1.msra.mxu0 %v3455
        %3549 = vmatprep.subr.mxu0 0.0
        %3550 = vmatpush1.msra.mxu0 %v3456
        %3551 = vmatprep.subr.mxu0 0.0
        %3552 = vmatpush1.msra.mxu0 %v3457
        %3553 = vmatprep.subr.mxu0 0.0
        %3554 = vmatpush1.msra.mxu0 %v3458
        %3555 = vmatprep.subr.mxu0 0.0
        %3556 = vmatpush1.msra.mxu0 %v3459
        %3557 = vmatprep.subr.mxu0 0.0
        %3558 = vmatpush1.msra.mxu0 %v3460
        %3559 = vmatprep.subr.mxu0 0.0
        %3560 = vmatpush1.msra.mxu0 %v3461
        %3561 = vmatprep.subr.mxu0 0.0
        %3562 = vmatpush1.msra.mxu0 %v3462
        %3563 = vmatprep.subr.mxu0 0.0
        %3564 = vmatpush1.msra.mxu0 %v3463
        %3565 = vmatprep.subr.mxu0 0.0
        %3566 = vmatpush1.msra.mxu0 %v3464
        %3567 = vmatprep.subr.mxu0 0.0
        %3568 = vmatpush1.msra.mxu0 %v3465
        %3569 = vmatprep.subr.mxu0 0.0
        %3570 = vmatpush1.msra.mxu0 %v3466
        %3571 = vmatprep.subr.mxu0 0.0
        %3572 = vmatpush1.msra.mxu0 %v3467
        %3573 = vmatprep.subr.mxu0 0.0
        %3574 = vmatpush1.msra.mxu0 %v3468
        %3575 = vmatprep.subr.mxu0 0.0
        %3576 = vmatpush1.msra.mxu0 %v3469
        %3577 = vmatprep.subr.mxu0 0.0
        %3578 = vmatpush1.msra.mxu0 %v3470
        %3579 = vmatprep.subr.mxu0 0.0
        %3580 = vmatpush1.msra.mxu0 %v3471
        %3581 = vmatprep.subr.mxu0 0.0
        %3582 = vmatpush1.msra.mxu0 %v3472
        %3583 = vmatprep.subr.mxu0 0.0
        %3584 = vmatpush1.msra.mxu0 %v3473
        %3585 = vmatprep.subr.mxu0 0.0
        %3586 = vmatpush1.msra.mxu0 %v3474
        %3587 = vmatprep.subr.mxu0 0.0
        %3588 = vmatpush1.msra.mxu0 %v3475
        %3589 = vmatprep.subr.mxu0 0.0
        %3590 = vmatpush1.msra.mxu0 0.0
        %3591 = vmatprep.subr.mxu0 0.0
        %3592 = vmatpush1.msra.mxu0 0.0
        %3593 = vmatprep.subr.mxu0 0.0
        %3594 = vmatpush1.msra.mxu0 0.0
        %3595 = vmatprep.subr.mxu0 0.0
        %3596 = vmatpush1.msra.mxu0 0.0
        %3597 = vmatprep.subr.mxu0 0.0
        %3598 = vmatpush1.msra.mxu0 0.0
        %3599 = vmatprep.subr.mxu0 0.0
        %3600 = vmatpush1.msra.mxu0 0.0
        %3601 = vmatprep.mubr.f32.mxu0 %v3502
        %3602 = vmatmul.mubr.f32.gmra.mrb[0].mxu0 %v3476
        %v3603 = vpop.f32.mrb[0].mxu0
        %v3604 = vadd.f32 0.0, %v3603
        %v3605 = vpop.f32.mrb[0].mxu0
        %3606 = vmatprep.mubr.f32.mxu0 %v3505
        %3607 = vmatmul.mubr.f32.gmra.mrb[0].mxu0 %v3478
        %v3608 = vpop.f32.mrb[0].mxu0
        %v3609 = vadd.f32 0.0, %v3608
        %v3610 = vpop.f32.mrb[0].mxu0
        %3611 = vmatprep.mubr.f32.mxu0 %v3508
        %3612 = vmatmul.mubr.f32.gmra.mrb[0].mxu0 %v3480
        %v3613 = vpop.f32.mrb[0].mxu0
        %v3614 = vadd.f32 0.0, %v3613
        %v3615 = vpop.f32.mrb[0].mxu0
        %3616 = vmatprep.mubr.f32.mxu0 %v3511
        %3617 = vmatmul.mubr.f32.gmra.mrb[0].mxu0 %v3482
        %v3618 = vpop.f32.mrb[0].mxu0
        %v3619 = vadd.f32 0.0, %v3618
        %v3620 = vpop.f32.mrb[0].mxu0
        %3621 = vmatprep.mubr.f32.mxu0 %v3514
        %3622 = vmatmul.mubr.f32.gmra.mrb[0].mxu0 %v3484
        %v3623 = vpop.f32.mrb[0].mxu0
        %v3624 = vadd.f32 0.0, %v3623
        %v3625 = vpop.f32.mrb[0].mxu0
        %3626 = vmatprep.mubr.f32.mxu0 %v3517
        %3627 = vmatmul.mubr.f32.gmra.mrb[0].mxu0 %v3486
        %v3628 = vpop.f32.mrb[0].mxu0
        %v3629 = vadd.f32 0.0, %v3628
        %v3630 = vpop.f32.mrb[0].mxu0
        %3631 = vmatprep.mubr.f32.mxu0 %v3520
        %3632 = vmatmul.mubr.f32.gmra.mrb[0].mxu0 %v3488
        %v3633 = vpop.f32.mrb[0].mxu0
        %v3634 = vadd.f32 0.0, %v3633
        %v3635 = vpop.f32.mrb[0].mxu0
        %3636 = vmatprep.mubr.f32.mxu0 %v3523
        %3637 = vmatmul.mubr.f32.gmra.mrb[0].mxu0 %v3490
        %v3638 = vpop.f32.mrb[0].mxu0
        %v3639 = vadd.f32 0.0, %v3638
        %v3640 = vpop.f32.mrb[0].mxu0
        %3641 = vmatprep.mubr.f32.mxu0 %v3526
        %3642 = vmatmul.mubr.f32.gmra.mrb[0].mxu0 %v3492
        %v3643 = vpop.f32.mrb[0].mxu0
        %v3644 = vadd.f32 0.0, %v3643
        %v3645 = vpop.f32.mrb[0].mxu0
        %3646 = vmatprep.mubr.f32.mxu0 %v3529
        %3647 = vmatmul.mubr.f32.gmra.mrb[0].mxu0 %v3494
        %v3648 = vpop.f32.mrb[0].mxu0
        %v3649 = vadd.f32 0.0, %v3648
        %v3650 = vpop.f32.mrb[0].mxu0
        %3651 = vmatprep.mubr.f32.mxu0 %v3532
        %3652 = vmatmul.mubr.f32.gmra.mrb[0].mxu0 %v3496
        %v3653 = vpop.f32.mrb[0].mxu0
        %v3654 = vadd.f32 0.0, %v3653
        %v3655 = vpop.f32.mrb[0].mxu0
        %3656 = vmatprep.mubr.f32.mxu0 %v3535
        %3657 = vmatmul.mubr.f32.gmra.mrb[0].mxu0 %v3498
        %v3658 = vpop.f32.mrb[0].mxu0
        %v3659 = vadd.f32 0.0, %v3658
        %v3660 = vpop.f32.mrb[0].mxu0
        %3661 = vdwg.mxu0
        %s3662 = scalar_lea.vmem %s7, 192
        %v3663 = vld [vmem:[%s3662] sm:$0xff]
        %v3664 = vld [vmem:[%s3662 + $0x8] sm:$0xff]
        %v3665 = vld [vmem:[%s3662 + $0x10] sm:$0xff]
        %v3666 = vld [vmem:[%s3662 + $0x18] sm:$0xff]
        %v3667 = vld [vmem:[%s3662 + $0x20] sm:$0xff]
        %v3668 = vld [vmem:[%s3662 + $0x28] sm:$0xff]
        %v3669 = vld [vmem:[%s3662 + $0x30] sm:$0xff]
        %v3670 = vld [vmem:[%s3662 + $0x38] sm:$0xff]
        %v3671 = vld [vmem:[%s3662 + $0x40] sm:$0xff]
        %v3672 = vld [vmem:[%s3662 + $0x48] sm:$0xff]
        %v3673 = vld [vmem:[%s3662 + $0x50] sm:$0xff]
        %v3674 = vld [vmem:[%s3662 + $0x58] sm:$0xff]
        %v3675 = vld [vmem:[%s3662 + $0x60] sm:$0xff]
        %v3676 = vld [vmem:[%s3662 + $0x68] sm:$0xff]
        %v3677 = vld [vmem:[%s3662 + $0x70] sm:$0xff]
        %v3678 = vld [vmem:[%s3662 + $0x78] sm:$0xff]
        %v3679 = vld [vmem:[%s3662 + $0x80] sm:$0xff]
        %v3680 = vld [vmem:[%s3662 + $0x88] sm:$0xff]
        %v3681 = vld [vmem:[%s3662 + $0x90] sm:$0xff]
        %v3682 = vld [vmem:[%s3662 + $0x98] sm:$0xff]
        %v3683 = vld [vmem:[%s3662 + $0xa0] sm:$0xff]
        %v3684 = vld [vmem:[%s3662 + $0xa8] sm:$0xff]
        %v3685 = vld [vmem:[%s3662 + $0xb0] sm:$0xff]
        %v3686 = vld [vmem:[%s3662 + $0xb8] sm:$0xff]
        %v3688 = vsel %vm3500, %v3664, 0
        %v3691 = vsel %vm3500, %v3666, 0
        %v3694 = vsel %vm3500, %v3668, 0
        %v3697 = vsel %vm3500, %v3670, 0
        %v3700 = vsel %vm3500, %v3672, 0
        %v3703 = vsel %vm3500, %v3674, 0
        %v3706 = vsel %vm3500, %v3676, 0
        %v3709 = vsel %vm3500, %v3678, 0
        %v3712 = vsel %vm3500, %v3680, 0
        %v3715 = vsel %vm3500, %v3682, 0
        %v3718 = vsel %vm3500, %v3684, 0
        %v3721 = vsel %vm3500, %v3686, 0
        %3723 = vmatprep.subr.mxu0 0.0
        %3724 = vmatpush1.msra.mxu0 %v3450
        %3725 = vmatprep.subr.mxu0 0.0
        %3726 = vmatpush1.msra.mxu0 %v3451
        %3727 = vmatprep.subr.mxu0 0.0
        %3728 = vmatpush1.msra.mxu0 %v3452
        %3729 = vmatprep.subr.mxu0 0.0
        %3730 = vmatpush1.msra.mxu0 %v3453
        %3731 = vmatprep.subr.mxu0 0.0
        %3732 = vmatpush1.msra.mxu0 %v3454
        %3733 = vmatprep.subr.mxu0 0.0
        %3734 = vmatpush1.msra.mxu0 %v3455
        %3735 = vmatprep.subr.mxu0 0.0
        %3736 = vmatpush1.msra.mxu0 %v3456
        %3737 = vmatprep.subr.mxu0 0.0
        %3738 = vmatpush1.msra.mxu0 %v3457
        %3739 = vmatprep.subr.mxu0 0.0
        %3740 = vmatpush1.msra.mxu0 %v3458
        %3741 = vmatprep.subr.mxu0 0.0
        %3742 = vmatpush1.msra.mxu0 %v3459
        %3743 = vmatprep.subr.mxu0 0.0
        %3744 = vmatpush1.msra.mxu0 %v3460
        %3745 = vmatprep.subr.mxu0 0.0
        %3746 = vmatpush1.msra.mxu0 %v3461
        %3747 = vmatprep.subr.mxu0 0.0
        %3748 = vmatpush1.msra.mxu0 %v3462
        %3749 = vmatprep.subr.mxu0 0.0
        %3750 = vmatpush1.msra.mxu0 %v3463
        %3751 = vmatprep.subr.mxu0 0.0
        %3752 = vmatpush1.msra.mxu0 %v3464
        %3753 = vmatprep.subr.mxu0 0.0
        %3754 = vmatpush1.msra.mxu0 %v3465
        %3755 = vmatprep.subr.mxu0 0.0
        %3756 = vmatpush1.msra.mxu0 %v3466
        %3757 = vmatprep.subr.mxu0 0.0
        %3758 = vmatpush1.msra.mxu0 %v3467
        %3759 = vmatprep.subr.mxu0 0.0
        %3760 = vmatpush1.msra.mxu0 %v3468
        %3761 = vmatprep.subr.mxu0 0.0
        %3762 = vmatpush1.msra.mxu0 %v3469
        %3763 = vmatprep.subr.mxu0 0.0
        %3764 = vmatpush1.msra.mxu0 %v3470
        %3765 = vmatprep.subr.mxu0 0.0
        %3766 = vmatpush1.msra.mxu0 %v3471
        %3767 = vmatprep.subr.mxu0 0.0
        %3768 = vmatpush1.msra.mxu0 %v3472
        %3769 = vmatprep.subr.mxu0 0.0
        %3770 = vmatpush1.msra.mxu0 %v3473
        %3771 = vmatprep.subr.mxu0 0.0
        %3772 = vmatpush1.msra.mxu0 %v3474
        %3773 = vmatprep.subr.mxu0 0.0
        %3774 = vmatpush1.msra.mxu0 %v3475
        %3775 = vmatprep.subr.mxu0 0.0
        %3776 = vmatpush1.msra.mxu0 0.0
        %3777 = vmatprep.subr.mxu0 0.0
        %3778 = vmatpush1.msra.mxu0 0.0
        %3779 = vmatprep.subr.mxu0 0.0
        %3780 = vmatpush1.msra.mxu0 0.0
        %3781 = vmatprep.subr.mxu0 0.0
        %3782 = vmatpush1.msra.mxu0 0.0
        %3783 = vmatprep.subr.mxu0 0.0
        %3784 = vmatpush1.msra.mxu0 0.0
        %3785 = vmatprep.subr.mxu0 0.0
        %3786 = vmatpush1.msra.mxu0 0.0
        %3787 = vmatprep.mubr.f32.mxu0 %v3688
        %3788 = vmatmul.mubr.f32.gmra.mrb[0].mxu0 %v3663
        %v3789 = vpop.f32.mrb[0].mxu0
        %v3790 = vadd.f32 0.0, %v3789
        %v3791 = vpop.f32.mrb[0].mxu0
        %3792 = vmatprep.mubr.f32.mxu0 %v3691
        %3793 = vmatmul.mubr.f32.gmra.mrb[0].mxu0 %v3665
        %v3794 = vpop.f32.mrb[0].mxu0
        %v3795 = vadd.f32 0.0, %v3794
        %v3796 = vpop.f32.mrb[0].mxu0
        %3797 = vmatprep.mubr.f32.mxu0 %v3694
        %3798 = vmatmul.mubr.f32.gmra.mrb[0].mxu0 %v3667
        %v3799 = vpop.f32.mrb[0].mxu0
        %v3800 = vadd.f32 0.0, %v3799
        %v3801 = vpop.f32.mrb[0].mxu0
        %3802 = vmatprep.mubr.f32.mxu0 %v3697
        %3803 = vmatmul.mubr.f32.gmra.mrb[0].mxu0 %v3669
        %v3804 = vpop.f32.mrb[0].mxu0
        %v3805 = vadd.f32 0.0, %v3804
        %v3806 = vpop.f32.mrb[0].mxu0
        %3807 = vmatprep.mubr.f32.mxu0 %v3700
        %3808 = vmatmul.mubr.f32.gmra.mrb[0].mxu0 %v3671
        %v3809 = vpop.f32.mrb[0].mxu0
        %v3810 = vadd.f32 0.0, %v3809
        %v3811 = vpop.f32.mrb[0].mxu0
        %3812 = vmatprep.mubr.f32.mxu0 %v3703
        %3813 = vmatmul.mubr.f32.gmra.mrb[0].mxu0 %v3673
        %v3814 = vpop.f32.mrb[0].mxu0
        %v3815 = vadd.f32 0.0, %v3814
        %v3816 = vpop.f32.mrb[0].mxu0
        %3817 = vmatprep.mubr.f32.mxu0 %v3706
        %3818 = vmatmul.mubr.f32.gmra.mrb[0].mxu0 %v3675
        %v3819 = vpop.f32.mrb[0].mxu0
        %v3820 = vadd.f32 0.0, %v3819
        %v3821 = vpop.f32.mrb[0].mxu0
        %3822 = vmatprep.mubr.f32.mxu0 %v3709
        %3823 = vmatmul.mubr.f32.gmra.mrb[0].mxu0 %v3677
        %v3824 = vpop.f32.mrb[0].mxu0
        %v3825 = vadd.f32 0.0, %v3824
        %v3826 = vpop.f32.mrb[0].mxu0
        %3827 = vmatprep.mubr.f32.mxu0 %v3712
        %3828 = vmatmul.mubr.f32.gmra.mrb[0].mxu0 %v3679
        %v3829 = vpop.f32.mrb[0].mxu0
        %v3830 = vadd.f32 0.0, %v3829
        %v3831 = vpop.f32.mrb[0].mxu0
        %3832 = vmatprep.mubr.f32.mxu0 %v3715
        %3833 = vmatmul.mubr.f32.gmra.mrb[0].mxu0 %v3681
        %v3834 = vpop.f32.mrb[0].mxu0
        %v3835 = vadd.f32 0.0, %v3834
        %v3836 = vpop.f32.mrb[0].mxu0
        %3837 = vmatprep.mubr.f32.mxu0 %v3718
        %3838 = vmatmul.mubr.f32.gmra.mrb[0].mxu0 %v3683
        %v3839 = vpop.f32.mrb[0].mxu0
        %v3840 = vadd.f32 0.0, %v3839
        %v3841 = vpop.f32.mrb[0].mxu0
        %3842 = vmatprep.mubr.f32.mxu0 %v3721
        %3843 = vmatmul.mubr.f32.gmra.mrb[0].mxu0 %v3685
        %v3844 = vpop.f32.mrb[0].mxu0
        %v3845 = vadd.f32 0.0, %v3844
        %v3846 = vpop.f32.mrb[0].mxu0
        %3847 = vdwg.mxu0
        %v3848 = vmax.f32 %v3604, %v3790
        %v3849 = vmax.f32 %v3609, %v3795
        %v3850 = vmax.f32 %v3614, %v3800
        %v3851 = vmax.f32 %v3619, %v3805
        %v3852 = vmax.f32 %v3624, %v3810
        %v3853 = vmax.f32 %v3629, %v3815
        %v3854 = vmax.f32 %v3634, %v3820
        %v3855 = vmax.f32 %v3639, %v3825
        %v3856 = vmax.f32 %v3644, %v3830
        %v3857 = vmax.f32 %v3649, %v3835
        %v3858 = vmax.f32 %v3654, %v3840
        %v3859 = vmax.f32 %v3659, %v3845
        %v3860 = vld [vmem:[%s8] sm:$0xff]
        %v3861 = vld [vmem:[%s8 + $0x8] sm:$0x1f]
        %vm3862 = vcmask 105472
        %v3864 = vsel %vm3862, %v3848, 0
        %v3867 = vsel %vm3862, %v3849, 0
        %v3870 = vsel %vm3862, %v3850, 0
        %v3873 = vsel %vm3862, %v3851, 0
        %v3876 = vsel %vm3862, %v3852, 0
        %v3879 = vsel %vm3862, %v3853, 0
        %v3882 = vsel %vm3862, %v3854, 0
        %v3885 = vsel %vm3862, %v3855, 0
        %v3888 = vsel %vm3862, %v3856, 0
        %v3891 = vsel %vm3862, %v3857, 0
        %v3894 = vsel %vm3862, %v3858, 0
        %v3897 = vsel %vm3862, %v3859, 0
        %vm3899 = vcmask 1044480
        %v3901 = vsel %vm3899, %v3861, 0
        %3903 = vmatprep.subr.mxu0 0.0
        %3904 = vmatpush1.msra.mxu0 %v3860
        %3905 = vmatprep.subr.mxu0 0.0
        %3906 = vmatpush1.msra.mxu0 %v3901
        %3907 = vmatprep.subr.mxu0 0.0
        %3908 = vmatpush1.msra.mxu0 0.0
        %3909 = vmatprep.subr.mxu0 0.0
        %3910 = vmatpush1.msra.mxu0 0.0
        %3911 = vmatprep.subr.mxu0 0.0
        %3912 = vmatpush1.msra.mxu0 0.0
        %3913 = vmatprep.subr.mxu0 0.0
        %3914 = vmatpush1.msra.mxu0 0.0
        %3915 = vmatprep.subr.mxu0 0.0
        %3916 = vmatpush1.msra.mxu0 0.0
        %3917 = vmatprep.subr.mxu0 0.0
        %3918 = vmatpush1.msra.mxu0 0.0
        %3919 = vmatprep.subr.mxu0 0.0
        %3920 = vmatpush1.msra.mxu0 0.0
        %3921 = vmatprep.subr.mxu0 0.0
        %3922 = vmatpush1.msra.mxu0 0.0
        %3923 = vmatprep.subr.mxu0 0.0
        %3924 = vmatpush1.msra.mxu0 0.0
        %3925 = vmatprep.subr.mxu0 0.0
        %3926 = vmatpush1.msra.mxu0 0.0
        %3927 = vmatprep.subr.mxu0 0.0
        %3928 = vmatpush1.msra.mxu0 0.0
        %3929 = vmatprep.subr.mxu0 0.0
        %3930 = vmatpush1.msra.mxu0 0.0
        %3931 = vmatprep.subr.mxu0 0.0
        %3932 = vmatpush1.msra.mxu0 0.0
        %3933 = vmatprep.subr.mxu0 0.0
        %3934 = vmatpush1.msra.mxu0 0.0
        %3935 = vmatprep.subr.mxu0 0.0
        %3936 = vmatpush1.msra.mxu0 0.0
        %3937 = vmatprep.subr.mxu0 0.0
        %3938 = vmatpush1.msra.mxu0 0.0
        %3939 = vmatprep.subr.mxu0 0.0
        %3940 = vmatpush1.msra.mxu0 0.0
        %3941 = vmatprep.subr.mxu0 0.0
        %3942 = vmatpush1.msra.mxu0 0.0
        %3943 = vmatprep.subr.mxu0 0.0
        %3944 = vmatpush1.msra.mxu0 0.0
        %3945 = vmatprep.subr.mxu0 0.0
        %3946 = vmatpush1.msra.mxu0 0.0
        %3947 = vmatprep.subr.mxu0 0.0
        %3948 = vmatpush1.msra.mxu0 0.0
        %3949 = vmatprep.subr.mxu0 0.0
        %3950 = vmatpush1.msra.mxu0 0.0
        %3951 = vmatprep.subr.mxu0 0.0
        %3952 = vmatpush1.msra.mxu0 0.0
        %3953 = vmatprep.subr.mxu0 0.0
        %3954 = vmatpush1.msra.mxu0 0.0
        %3955 = vmatprep.subr.mxu0 0.0
        %3956 = vmatpush1.msra.mxu0 0.0
        %3957 = vmatprep.subr.mxu0 0.0
        %3958 = vmatpush1.msra.mxu0 0.0
        %3959 = vmatprep.subr.mxu0 0.0
        %3960 = vmatpush1.msra.mxu0 0.0
        %3961 = vmatprep.subr.mxu0 0.0
        %3962 = vmatpush1.msra.mxu0 0.0
        %3963 = vmatprep.subr.mxu0 0.0
        %3964 = vmatpush1.msra.mxu0 0.0
        %3965 = vmatprep.subr.mxu0 0.0
        %3966 = vmatpush1.msra.mxu0 0.0
        %3967 = vmatprep.mubr.f32.mxu0 0.0
        %3968 = vmatmul.mubr.f32.gmra.mrb[0].mxu0 %v3864
        %v3969 = vpop.f32.mrb[0].mxu0
        %v3970 = vadd.f32 0.0, %v3969
        %v3971 = vpop.f32.mrb[0].mxu0
        %3972 = vmatprep.mubr.f32.mxu0 0.0
        %3973 = vmatmul.mubr.f32.gmra.mrb[0].mxu0 %v3867
        %v3974 = vpop.f32.mrb[0].mxu0
        %v3975 = vadd.f32 0.0, %v3974
        %v3976 = vpop.f32.mrb[0].mxu0
        %3977 = vmatprep.mubr.f32.mxu0 0.0
        %3978 = vmatmul.mubr.f32.gmra.mrb[0].mxu0 %v3870
        %v3979 = vpop.f32.mrb[0].mxu0
        %v3980 = vadd.f32 0.0, %v3979
        %v3981 = vpop.f32.mrb[0].mxu0
        %3982 = vmatprep.mubr.f32.mxu0 0.0
        %3983 = vmatmul.mubr.f32.gmra.mrb[0].mxu0 %v3873
        %v3984 = vpop.f32.mrb[0].mxu0
        %v3985 = vadd.f32 0.0, %v3984
        %v3986 = vpop.f32.mrb[0].mxu0
        %3987 = vmatprep.mubr.f32.mxu0 0.0
        %3988 = vmatmul.mubr.f32.gmra.mrb[0].mxu0 %v3876
        %v3989 = vpop.f32.mrb[0].mxu0
        %v3990 = vadd.f32 0.0, %v3989
        %v3991 = vpop.f32.mrb[0].mxu0
        %3992 = vmatprep.mubr.f32.mxu0 0.0
        %3993 = vmatmul.mubr.f32.gmra.mrb[0].mxu0 %v3879
        %v3994 = vpop.f32.mrb[0].mxu0
        %v3995 = vadd.f32 0.0, %v3994
        %v3996 = vpop.f32.mrb[0].mxu0
        %3997 = vmatprep.mubr.f32.mxu0 0.0
        %3998 = vmatmul.mubr.f32.gmra.mrb[0].mxu0 %v3882
        %v3999 = vpop.f32.mrb[0].mxu0
        %v4000 = vadd.f32 0.0, %v3999
        %v4001 = vpop.f32.mrb[0].mxu0
        %4002 = vmatprep.mubr.f32.mxu0 0.0
        %4003 = vmatmul.mubr.f32.gmra.mrb[0].mxu0 %v3885
        %v4004 = vpop.f32.mrb[0].mxu0
        %v4005 = vadd.f32 0.0, %v4004
        %v4006 = vpop.f32.mrb[0].mxu0
        %4007 = vmatprep.mubr.f32.mxu0 0.0
        %4008 = vmatmul.mubr.f32.gmra.mrb[0].mxu0 %v3888
        %v4009 = vpop.f32.mrb[0].mxu0
        %v4010 = vadd.f32 0.0, %v4009
        %v4011 = vpop.f32.mrb[0].mxu0
        %4012 = vmatprep.mubr.f32.mxu0 0.0
        %4013 = vmatmul.mubr.f32.gmra.mrb[0].mxu0 %v3891
        %v4014 = vpop.f32.mrb[0].mxu0
        %v4015 = vadd.f32 0.0, %v4014
        %v4016 = vpop.f32.mrb[0].mxu0
        %4017 = vmatprep.mubr.f32.mxu0 0.0
        %4018 = vmatmul.mubr.f32.gmra.mrb[0].mxu0 %v3894
        %v4019 = vpop.f32.mrb[0].mxu0
        %v4020 = vadd.f32 0.0, %v4019
        %v4021 = vpop.f32.mrb[0].mxu0
        %4022 = vmatprep.mubr.f32.mxu0 0.0
        %4023 = vmatmul.mubr.f32.gmra.mrb[0].mxu0 %v3897
        %v4024 = vpop.f32.mrb[0].mxu0
        %v4025 = vadd.f32 0.0, %v4024
        %v4026 = vpop.f32.mrb[0].mxu0
        %4027 = vdwg.mxu0
        %s4028 = scalar_lea.vmem %s8, 16
        %v4029 = vld [vmem:[%s4028] sm:$0xff]
        %v4030 = vld [vmem:[%s4028 + $0x8] sm:$0x1f]
        %v4032 = vsel %vm3899, %v4030, 0
        %4034 = vmatprep.subr.mxu0 0.0
        %4035 = vmatpush1.msra.mxu0 %v4029
        %4036 = vmatprep.subr.mxu0 0.0
        %4037 = vmatpush1.msra.mxu0 %v4032
        %4038 = vmatprep.subr.mxu0 0.0
        %4039 = vmatpush1.msra.mxu0 0.0
        %4040 = vmatprep.subr.mxu0 0.0
        %4041 = vmatpush1.msra.mxu0 0.0
        %4042 = vmatprep.subr.mxu0 0.0
        %4043 = vmatpush1.msra.mxu0 0.0
        %4044 = vmatprep.subr.mxu0 0.0
        %4045 = vmatpush1.msra.mxu0 0.0
        %4046 = vmatprep.subr.mxu0 0.0
        %4047 = vmatpush1.msra.mxu0 0.0
        %4048 = vmatprep.subr.mxu0 0.0
        %4049 = vmatpush1.msra.mxu0 0.0
        %4050 = vmatprep.subr.mxu0 0.0
        %4051 = vmatpush1.msra.mxu0 0.0
        %4052 = vmatprep.subr.mxu0 0.0
        %4053 = vmatpush1.msra.mxu0 0.0
        %4054 = vmatprep.subr.mxu0 0.0
        %4055 = vmatpush1.msra.mxu0 0.0
        %4056 = vmatprep.subr.mxu0 0.0
        %4057 = vmatpush1.msra.mxu0 0.0
        %4058 = vmatprep.subr.mxu0 0.0
        %4059 = vmatpush1.msra.mxu0 0.0
        %4060 = vmatprep.subr.mxu0 0.0
        %4061 = vmatpush1.msra.mxu0 0.0
        %4062 = vmatprep.subr.mxu0 0.0
        %4063 = vmatpush1.msra.mxu0 0.0
        %4064 = vmatprep.subr.mxu0 0.0
        %4065 = vmatpush1.msra.mxu0 0.0
        %4066 = vmatprep.subr.mxu0 0.0
        %4067 = vmatpush1.msra.mxu0 0.0
        %4068 = vmatprep.subr.mxu0 0.0
        %4069 = vmatpush1.msra.mxu0 0.0
        %4070 = vmatprep.subr.mxu0 0.0
        %4071 = vmatpush1.msra.mxu0 0.0
        %4072 = vmatprep.subr.mxu0 0.0
        %4073 = vmatpush1.msra.mxu0 0.0
        %4074 = vmatprep.subr.mxu0 0.0
        %4075 = vmatpush1.msra.mxu0 0.0
        %4076 = vmatprep.subr.mxu0 0.0
        %4077 = vmatpush1.msra.mxu0 0.0
        %4078 = vmatprep.subr.mxu0 0.0
        %4079 = vmatpush1.msra.mxu0 0.0
        %4080 = vmatprep.subr.mxu0 0.0
        %4081 = vmatpush1.msra.mxu0 0.0
        %4082 = vmatprep.subr.mxu0 0.0
        %4083 = vmatpush1.msra.mxu0 0.0
        %4084 = vmatprep.subr.mxu0 0.0
        %4085 = vmatpush1.msra.mxu0 0.0
        %4086 = vmatprep.subr.mxu0 0.0
        %4087 = vmatpush1.msra.mxu0 0.0
        %4088 = vmatprep.subr.mxu0 0.0
        %4089 = vmatpush1.msra.mxu0 0.0
        %4090 = vmatprep.subr.mxu0 0.0
        %4091 = vmatpush1.msra.mxu0 0.0
        %4092 = vmatprep.subr.mxu0 0.0
        %4093 = vmatpush1.msra.mxu0 0.0
        %4094 = vmatprep.subr.mxu0 0.0
        %4095 = vmatpush1.msra.mxu0 0.0
        %4096 = vmatprep.subr.mxu0 0.0
        %4097 = vmatpush1.msra.mxu0 0.0
        %4098 = vmatprep.mubr.f32.mxu0 0.0
        %4099 = vmatmul.mubr.f32.gmra.mrb[0].mxu0 %v3864
        %v4100 = vpop.f32.mrb[0].mxu0
        %v4101 = vadd.f32 0.0, %v4100
        %v4102 = vpop.f32.mrb[0].mxu0
        %4103 = vmatprep.mubr.f32.mxu0 0.0
        %4104 = vmatmul.mubr.f32.gmra.mrb[0].mxu0 %v3867
        %v4105 = vpop.f32.mrb[0].mxu0
        %v4106 = vadd.f32 0.0, %v4105
        %v4107 = vpop.f32.mrb[0].mxu0
        %4108 = vmatprep.mubr.f32.mxu0 0.0
        %4109 = vmatmul.mubr.f32.gmra.mrb[0].mxu0 %v3870
        %v4110 = vpop.f32.mrb[0].mxu0
        %v4111 = vadd.f32 0.0, %v4110
        %v4112 = vpop.f32.mrb[0].mxu0
        %4113 = vmatprep.mubr.f32.mxu0 0.0
        %4114 = vmatmul.mubr.f32.gmra.mrb[0].mxu0 %v3873
        %v4115 = vpop.f32.mrb[0].mxu0
        %v4116 = vadd.f32 0.0, %v4115
        %v4117 = vpop.f32.mrb[0].mxu0
        %4118 = vmatprep.mubr.f32.mxu0 0.0
        %4119 = vmatmul.mubr.f32.gmra.mrb[0].mxu0 %v3876
        %v4120 = vpop.f32.mrb[0].mxu0
        %v4121 = vadd.f32 0.0, %v4120
        %v4122 = vpop.f32.mrb[0].mxu0
        %4123 = vmatprep.mubr.f32.mxu0 0.0
        %4124 = vmatmul.mubr.f32.gmra.mrb[0].mxu0 %v3879
        %v4125 = vpop.f32.mrb[0].mxu0
        %v4126 = vadd.f32 0.0, %v4125
        %v4127 = vpop.f32.mrb[0].mxu0
        %4128 = vmatprep.mubr.f32.mxu0 0.0
        %4129 = vmatmul.mubr.f32.gmra.mrb[0].mxu0 %v3882
        %v4130 = vpop.f32.mrb[0].mxu0
        %v4131 = vadd.f32 0.0, %v4130
        %v4132 = vpop.f32.mrb[0].mxu0
        %4133 = vmatprep.mubr.f32.mxu0 0.0
        %4134 = vmatmul.mubr.f32.gmra.mrb[0].mxu0 %v3885
        %v4135 = vpop.f32.mrb[0].mxu0
        %v4136 = vadd.f32 0.0, %v4135
        %v4137 = vpop.f32.mrb[0].mxu0
        %4138 = vmatprep.mubr.f32.mxu0 0.0
        %4139 = vmatmul.mubr.f32.gmra.mrb[0].mxu0 %v3888
        %v4140 = vpop.f32.mrb[0].mxu0
        %v4141 = vadd.f32 0.0, %v4140
        %v4142 = vpop.f32.mrb[0].mxu0
        %4143 = vmatprep.mubr.f32.mxu0 0.0
        %4144 = vmatmul.mubr.f32.gmra.mrb[0].mxu0 %v3891
        %v4145 = vpop.f32.mrb[0].mxu0
        %v4146 = vadd.f32 0.0, %v4145
        %v4147 = vpop.f32.mrb[0].mxu0
        %4148 = vmatprep.mubr.f32.mxu0 0.0
        %4149 = vmatmul.mubr.f32.gmra.mrb[0].mxu0 %v3894
        %v4150 = vpop.f32.mrb[0].mxu0
        %v4151 = vadd.f32 0.0, %v4150
        %v4152 = vpop.f32.mrb[0].mxu0
        %4153 = vmatprep.mubr.f32.mxu0 0.0
        %4154 = vmatmul.mubr.f32.gmra.mrb[0].mxu0 %v3897
        %v4155 = vpop.f32.mrb[0].mxu0
        %v4156 = vadd.f32 0.0, %v4155
        %v4157 = vpop.f32.mrb[0].mxu0
        %4158 = vdwg.mxu0
        %v4159 = vmax.f32 %v3970, %v4101
        %v4160 = vmax.f32 %v3975, %v4106
        %v4161 = vmax.f32 %v3980, %v4111
        %v4162 = vmax.f32 %v3985, %v4116
        %v4163 = vmax.f32 %v3990, %v4121
        %v4164 = vmax.f32 %v3995, %v4126
        %v4165 = vmax.f32 %v4000, %v4131
        %v4166 = vmax.f32 %v4005, %v4136
        %v4167 = vmax.f32 %v4010, %v4141
        %v4168 = vmax.f32 %v4015, %v4146
        %v4169 = vmax.f32 %v4020, %v4151
        %v4170 = vmax.f32 %v4025, %v4156
        %v4171 = vld [vmem:[%s9] sm:$0xff]
        %v4172 = vld [vmem:[%s9 + $0x8] sm:$0xff]
        %v4173 = vld [vmem:[%s9 + $0x10] sm:$0xff]
        %v4174 = vld [vmem:[%s9 + $0x18] sm:$0xff]
        %v4175 = vld [vmem:[%s9 + $0x20] sm:$0xff]
        %v4176 = vld [vmem:[%s9 + $0x28] sm:$0xff]
        %v4177 = vld [vmem:[%s9 + $0x30] sm:$0xff]
        %v4178 = vld [vmem:[%s9 + $0x38] sm:$0xff]
        %v4179 = vld [vmem:[%s9 + $0x40] sm:$0xff]
        %v4180 = vld [vmem:[%s9 + $0x48] sm:$0xff]
        %v4181 = vld [vmem:[%s9 + $0x50] sm:$0xff]
        %v4182 = vld [vmem:[%s9 + $0x58] sm:$0xff]
        %4184 = vset.pattern.permute.xlu0 0
        %4185 = vperm.xlu0 %4184, %v4159
        %v4186 = vpop.permute.xlu0 %4185
        %4189 = vset.pattern.permute.xlu0 0
        %4190 = vperm.xlu0 %4189, %v4160
        %v4191 = vpop.permute.xlu0 %4190
        %4194 = vset.pattern.permute.xlu0 0
        %4195 = vperm.xlu0 %4194, %v4161
        %v4196 = vpop.permute.xlu0 %4195
        %4199 = vset.pattern.permute.xlu0 0
        %4200 = vperm.xlu0 %4199, %v4162
        %v4201 = vpop.permute.xlu0 %4200
        %4204 = vset.pattern.permute.xlu0 0
        %4205 = vperm.xlu0 %4204, %v4163
        %v4206 = vpop.permute.xlu0 %4205
        %4209 = vset.pattern.permute.xlu0 0
        %4210 = vperm.xlu0 %4209, %v4164
        %v4211 = vpop.permute.xlu0 %4210
        %4214 = vset.pattern.permute.xlu0 0
        %4215 = vperm.xlu0 %4214, %v4165
        %v4216 = vpop.permute.xlu0 %4215
        %4219 = vset.pattern.permute.xlu0 0
        %4220 = vperm.xlu0 %4219, %v4166
        %v4221 = vpop.permute.xlu0 %4220
        %4224 = vset.pattern.permute.xlu0 0
        %4225 = vperm.xlu0 %4224, %v4167
        %v4226 = vpop.permute.xlu0 %4225
        %4229 = vset.pattern.permute.xlu0 0
        %4230 = vperm.xlu0 %4229, %v4168
        %v4231 = vpop.permute.xlu0 %4230
        %4234 = vset.pattern.permute.xlu0 0
        %4235 = vperm.xlu0 %4234, %v4169
        %v4236 = vpop.permute.xlu0 %4235
        %4239 = vset.pattern.permute.xlu0 0
        %4240 = vperm.xlu0 %4239, %v4170
        %v4241 = vpop.permute.xlu0 %4240
        %v4243 = vmul.f32 %v4186, %v4171
        %v4244 = vmul.f32 %v4191, %v4172
        %v4245 = vmul.f32 %v4196, %v4173
        %v4246 = vmul.f32 %v4201, %v4174
        %v4247 = vmul.f32 %v4206, %v4175
        %v4248 = vmul.f32 %v4211, %v4176
        %v4249 = vmul.f32 %v4216, %v4177
        %v4250 = vmul.f32 %v4221, %v4178
        %v4251 = vmul.f32 %v4226, %v4179
        %v4252 = vmul.f32 %v4231, %v4180
        %v4253 = vmul.f32 %v4236, %v4181
        %v4254 = vmul.f32 %v4241, %v4182
        %s4255 = scalar_lea.vmem %s9, 96
        %v4256 = vld [vmem:[%s4255] sm:$0xff]
        %v4257 = vld [vmem:[%s4255 + $0x8] sm:$0xff]
        %v4258 = vld [vmem:[%s4255 + $0x10] sm:$0xff]
        %v4259 = vld [vmem:[%s4255 + $0x18] sm:$0xff]
        %v4260 = vld [vmem:[%s4255 + $0x20] sm:$0xff]
        %v4261 = vld [vmem:[%s4255 + $0x28] sm:$0xff]
        %v4262 = vld [vmem:[%s4255 + $0x30] sm:$0xff]
        %v4263 = vld [vmem:[%s4255 + $0x38] sm:$0xff]
        %v4264 = vld [vmem:[%s4255 + $0x40] sm:$0xff]
        %v4265 = vld [vmem:[%s4255 + $0x48] sm:$0xff]
        %v4266 = vld [vmem:[%s4255 + $0x50] sm:$0xff]
        %v4267 = vld [vmem:[%s4255 + $0x58] sm:$0xff]
        %4268 = vset.pattern.permute.xlu0 1
        %4269 = vperm.xlu0 %4268, %v4159
        %v4270 = vpop.permute.xlu0 %4269
        %4272 = vset.pattern.permute.xlu0 1
        %4273 = vperm.xlu0 %4272, %v4160
        %v4274 = vpop.permute.xlu0 %4273
        %4276 = vset.pattern.permute.xlu0 1
        %4277 = vperm.xlu0 %4276, %v4161
        %v4278 = vpop.permute.xlu0 %4277
        %4280 = vset.pattern.permute.xlu0 1
        %4281 = vperm.xlu0 %4280, %v4162
        %v4282 = vpop.permute.xlu0 %4281
        %4284 = vset.pattern.permute.xlu0 1
        %4285 = vperm.xlu0 %4284, %v4163
        %v4286 = vpop.permute.xlu0 %4285
        %4288 = vset.pattern.permute.xlu0 1
        %4289 = vperm.xlu0 %4288, %v4164
        %v4290 = vpop.permute.xlu0 %4289
        %4292 = vset.pattern.permute.xlu0 1
        %4293 = vperm.xlu0 %4292, %v4165
        %v4294 = vpop.permute.xlu0 %4293
        %4296 = vset.pattern.permute.xlu0 1
        %4297 = vperm.xlu0 %4296, %v4166
        %v4298 = vpop.permute.xlu0 %4297
        %4300 = vset.pattern.permute.xlu0 1
        %4301 = vperm.xlu0 %4300, %v4167
        %v4302 = vpop.permute.xlu0 %4301
        %4304 = vset.pattern.permute.xlu0 1
        %4305 = vperm.xlu0 %4304, %v4168
        %v4306 = vpop.permute.xlu0 %4305
        %4308 = vset.pattern.permute.xlu0 1
        %4309 = vperm.xlu0 %4308, %v4169
        %v4310 = vpop.permute.xlu0 %4309
        %4312 = vset.pattern.permute.xlu0 1
        %4313 = vperm.xlu0 %4312, %v4170
        %v4314 = vpop.permute.xlu0 %4313
        %v4316 = vmul.f32 %v4270, %v4256
        %v4317 = vmul.f32 %v4274, %v4257
        %v4318 = vmul.f32 %v4278, %v4258
        %v4319 = vmul.f32 %v4282, %v4259
        %v4320 = vmul.f32 %v4286, %v4260
        %v4321 = vmul.f32 %v4290, %v4261
        %v4322 = vmul.f32 %v4294, %v4262
        %v4323 = vmul.f32 %v4298, %v4263
        %v4324 = vmul.f32 %v4302, %v4264
        %v4325 = vmul.f32 %v4306, %v4265
        %v4326 = vmul.f32 %v4310, %v4266
        %v4327 = vmul.f32 %v4314, %v4267
        %v4328 = vadd.f32 %v4243, %v4316
        %v4329 = vadd.f32 %v4244, %v4317
        %v4330 = vadd.f32 %v4245, %v4318
        %v4331 = vadd.f32 %v4246, %v4319
        %v4332 = vadd.f32 %v4247, %v4320
        %v4333 = vadd.f32 %v4248, %v4321
        %v4334 = vadd.f32 %v4249, %v4322
        %v4335 = vadd.f32 %v4250, %v4323
        %v4336 = vadd.f32 %v4251, %v4324
        %v4337 = vadd.f32 %v4252, %v4325
        %v4338 = vadd.f32 %v4253, %v4326
        %v4339 = vadd.f32 %v4254, %v4327
        %s4340 = scalar_lea.vmem %s9, 192
        %v4341 = vld [vmem:[%s4340] sm:$0xff]
        %v4342 = vld [vmem:[%s4340 + $0x8] sm:$0xff]
        %v4343 = vld [vmem:[%s4340 + $0x10] sm:$0xff]
        %v4344 = vld [vmem:[%s4340 + $0x18] sm:$0xff]
        %v4345 = vld [vmem:[%s4340 + $0x20] sm:$0xff]
        %v4346 = vld [vmem:[%s4340 + $0x28] sm:$0xff]
        %v4347 = vld [vmem:[%s4340 + $0x30] sm:$0xff]
        %v4348 = vld [vmem:[%s4340 + $0x38] sm:$0xff]
        %v4349 = vld [vmem:[%s4340 + $0x40] sm:$0xff]
        %v4350 = vld [vmem:[%s4340 + $0x48] sm:$0xff]
        %v4351 = vld [vmem:[%s4340 + $0x50] sm:$0xff]
        %v4352 = vld [vmem:[%s4340 + $0x58] sm:$0xff]
        %4353 = vset.pattern.permute.xlu0 2
        %4354 = vperm.xlu0 %4353, %v4159
        %v4355 = vpop.permute.xlu0 %4354
        %4357 = vset.pattern.permute.xlu0 2
        %4358 = vperm.xlu0 %4357, %v4160
        %v4359 = vpop.permute.xlu0 %4358
        %4361 = vset.pattern.permute.xlu0 2
        %4362 = vperm.xlu0 %4361, %v4161
        %v4363 = vpop.permute.xlu0 %4362
        %4365 = vset.pattern.permute.xlu0 2
        %4366 = vperm.xlu0 %4365, %v4162
        %v4367 = vpop.permute.xlu0 %4366
        %4369 = vset.pattern.permute.xlu0 2
        %4370 = vperm.xlu0 %4369, %v4163
        %v4371 = vpop.permute.xlu0 %4370
        %4373 = vset.pattern.permute.xlu0 2
        %4374 = vperm.xlu0 %4373, %v4164
        %v4375 = vpop.permute.xlu0 %4374
        %4377 = vset.pattern.permute.xlu0 2
        %4378 = vperm.xlu0 %4377, %v4165
        %v4379 = vpop.permute.xlu0 %4378
        %4381 = vset.pattern.permute.xlu0 2
        %4382 = vperm.xlu0 %4381, %v4166
        %v4383 = vpop.permute.xlu0 %4382
        %4385 = vset.pattern.permute.xlu0 2
        %4386 = vperm.xlu0 %4385, %v4167
        %v4387 = vpop.permute.xlu0 %4386
        %4389 = vset.pattern.permute.xlu0 2
        %4390 = vperm.xlu0 %4389, %v4168
        %v4391 = vpop.permute.xlu0 %4390
        %4393 = vset.pattern.permute.xlu0 2
        %4394 = vperm.xlu0 %4393, %v4169
        %v4395 = vpop.permute.xlu0 %4394
        %4397 = vset.pattern.permute.xlu0 2
        %4398 = vperm.xlu0 %4397, %v4170
        %v4399 = vpop.permute.xlu0 %4398
        %v4401 = vmul.f32 %v4355, %v4341
        %v4402 = vmul.f32 %v4359, %v4342
        %v4403 = vmul.f32 %v4363, %v4343
        %v4404 = vmul.f32 %v4367, %v4344
        %v4405 = vmul.f32 %v4371, %v4345
        %v4406 = vmul.f32 %v4375, %v4346
        %v4407 = vmul.f32 %v4379, %v4347
        %v4408 = vmul.f32 %v4383, %v4348
        %v4409 = vmul.f32 %v4387, %v4349
        %v4410 = vmul.f32 %v4391, %v4350
        %v4411 = vmul.f32 %v4395, %v4351
        %v4412 = vmul.f32 %v4399, %v4352
        %v4413 = vadd.f32 %v4328, %v4401
        %v4414 = vadd.f32 %v4329, %v4402
        %v4415 = vadd.f32 %v4330, %v4403
        %v4416 = vadd.f32 %v4331, %v4404
        %v4417 = vadd.f32 %v4332, %v4405
        %v4418 = vadd.f32 %v4333, %v4406
        %v4419 = vadd.f32 %v4334, %v4407
        %v4420 = vadd.f32 %v4335, %v4408
        %v4421 = vadd.f32 %v4336, %v4409
        %v4422 = vadd.f32 %v4337, %v4410
        %v4423 = vadd.f32 %v4338, %v4411
        %v4424 = vadd.f32 %v4339, %v4412
        %s4425 = scalar_lea.vmem %s9, 288
        %v4426 = vld [vmem:[%s4425] sm:$0xff]
        %v4427 = vld [vmem:[%s4425 + $0x8] sm:$0xff]
        %v4428 = vld [vmem:[%s4425 + $0x10] sm:$0xff]
        %v4429 = vld [vmem:[%s4425 + $0x18] sm:$0xff]
        %v4430 = vld [vmem:[%s4425 + $0x20] sm:$0xff]
        %v4431 = vld [vmem:[%s4425 + $0x28] sm:$0xff]
        %v4432 = vld [vmem:[%s4425 + $0x30] sm:$0xff]
        %v4433 = vld [vmem:[%s4425 + $0x38] sm:$0xff]
        %v4434 = vld [vmem:[%s4425 + $0x40] sm:$0xff]
        %v4435 = vld [vmem:[%s4425 + $0x48] sm:$0xff]
        %v4436 = vld [vmem:[%s4425 + $0x50] sm:$0xff]
        %v4437 = vld [vmem:[%s4425 + $0x58] sm:$0xff]
        %4438 = vset.pattern.permute.xlu0 3
        %4439 = vperm.xlu0 %4438, %v4159
        %v4440 = vpop.permute.xlu0 %4439
        %4442 = vset.pattern.permute.xlu0 3
        %4443 = vperm.xlu0 %4442, %v4160
        %v4444 = vpop.permute.xlu0 %4443
        %4446 = vset.pattern.permute.xlu0 3
        %4447 = vperm.xlu0 %4446, %v4161
        %v4448 = vpop.permute.xlu0 %4447
        %4450 = vset.pattern.permute.xlu0 3
        %4451 = vperm.xlu0 %4450, %v4162
        %v4452 = vpop.permute.xlu0 %4451
        %4454 = vset.pattern.permute.xlu0 3
        %4455 = vperm.xlu0 %4454, %v4163
        %v4456 = vpop.permute.xlu0 %4455
        %4458 = vset.pattern.permute.xlu0 3
        %4459 = vperm.xlu0 %4458, %v4164
        %v4460 = vpop.permute.xlu0 %4459
        %4462 = vset.pattern.permute.xlu0 3
        %4463 = vperm.xlu0 %4462, %v4165
        %v4464 = vpop.permute.xlu0 %4463
        %4466 = vset.pattern.permute.xlu0 3
        %4467 = vperm.xlu0 %4466, %v4166
        %v4468 = vpop.permute.xlu0 %4467
        %4470 = vset.pattern.permute.xlu0 3
        %4471 = vperm.xlu0 %4470, %v4167
        %v4472 = vpop.permute.xlu0 %4471
        %4474 = vset.pattern.permute.xlu0 3
        %4475 = vperm.xlu0 %4474, %v4168
        %v4476 = vpop.permute.xlu0 %4475
        %4478 = vset.pattern.permute.xlu0 3
        %4479 = vperm.xlu0 %4478, %v4169
        %v4480 = vpop.permute.xlu0 %4479
        %4482 = vset.pattern.permute.xlu0 3
        %4483 = vperm.xlu0 %4482, %v4170
        %v4484 = vpop.permute.xlu0 %4483
        %v4486 = vmul.f32 %v4440, %v4426
        %v4487 = vmul.f32 %v4444, %v4427
        %v4488 = vmul.f32 %v4448, %v4428
        %v4489 = vmul.f32 %v4452, %v4429
        %v4490 = vmul.f32 %v4456, %v4430
        %v4491 = vmul.f32 %v4460, %v4431
        %v4492 = vmul.f32 %v4464, %v4432
        %v4493 = vmul.f32 %v4468, %v4433
        %v4494 = vmul.f32 %v4472, %v4434
        %v4495 = vmul.f32 %v4476, %v4435
        %v4496 = vmul.f32 %v4480, %v4436
        %v4497 = vmul.f32 %v4484, %v4437
        %v4498 = vadd.f32 %v4413, %v4486
        %v4499 = vadd.f32 %v4414, %v4487
        %v4500 = vadd.f32 %v4415, %v4488
        %v4501 = vadd.f32 %v4416, %v4489
        %v4502 = vadd.f32 %v4417, %v4490
        %v4503 = vadd.f32 %v4418, %v4491
        %v4504 = vadd.f32 %v4419, %v4492
        %v4505 = vadd.f32 %v4420, %v4493
        %v4506 = vadd.f32 %v4421, %v4494
        %v4507 = vadd.f32 %v4422, %v4495
        %v4508 = vadd.f32 %v4423, %v4496
        %v4509 = vadd.f32 %v4424, %v4497
        %s4510 = scalar_lea.vmem %s9, 384
        %v4511 = vld [vmem:[%s4510] sm:$0xff]
        %v4512 = vld [vmem:[%s4510 + $0x8] sm:$0xff]
        %v4513 = vld [vmem:[%s4510 + $0x10] sm:$0xff]
        %v4514 = vld [vmem:[%s4510 + $0x18] sm:$0xff]
        %v4515 = vld [vmem:[%s4510 + $0x20] sm:$0xff]
        %v4516 = vld [vmem:[%s4510 + $0x28] sm:$0xff]
        %v4517 = vld [vmem:[%s4510 + $0x30] sm:$0xff]
        %v4518 = vld [vmem:[%s4510 + $0x38] sm:$0xff]
        %v4519 = vld [vmem:[%s4510 + $0x40] sm:$0xff]
        %v4520 = vld [vmem:[%s4510 + $0x48] sm:$0xff]
        %v4521 = vld [vmem:[%s4510 + $0x50] sm:$0xff]
        %v4522 = vld [vmem:[%s4510 + $0x58] sm:$0xff]
        %4523 = vset.pattern.permute.xlu0 4
        %4524 = vperm.xlu0 %4523, %v4159
        %v4525 = vpop.permute.xlu0 %4524
        %4527 = vset.pattern.permute.xlu0 4
        %4528 = vperm.xlu0 %4527, %v4160
        %v4529 = vpop.permute.xlu0 %4528
        %4531 = vset.pattern.permute.xlu0 4
        %4532 = vperm.xlu0 %4531, %v4161
        %v4533 = vpop.permute.xlu0 %4532
        %4535 = vset.pattern.permute.xlu0 4
        %4536 = vperm.xlu0 %4535, %v4162
        %v4537 = vpop.permute.xlu0 %4536
        %4539 = vset.pattern.permute.xlu0 4
        %4540 = vperm.xlu0 %4539, %v4163
        %v4541 = vpop.permute.xlu0 %4540
        %4543 = vset.pattern.permute.xlu0 4
        %4544 = vperm.xlu0 %4543, %v4164
        %v4545 = vpop.permute.xlu0 %4544
        %4547 = vset.pattern.permute.xlu0 4
        %4548 = vperm.xlu0 %4547, %v4165
        %v4549 = vpop.permute.xlu0 %4548
        %4551 = vset.pattern.permute.xlu0 4
        %4552 = vperm.xlu0 %4551, %v4166
        %v4553 = vpop.permute.xlu0 %4552
        %4555 = vset.pattern.permute.xlu0 4
        %4556 = vperm.xlu0 %4555, %v4167
        %v4557 = vpop.permute.xlu0 %4556
        %4559 = vset.pattern.permute.xlu0 4
        %4560 = vperm.xlu0 %4559, %v4168
        %v4561 = vpop.permute.xlu0 %4560
        %4563 = vset.pattern.permute.xlu0 4
        %4564 = vperm.xlu0 %4563, %v4169
        %v4565 = vpop.permute.xlu0 %4564
        %4567 = vset.pattern.permute.xlu0 4
        %4568 = vperm.xlu0 %4567, %v4170
        %v4569 = vpop.permute.xlu0 %4568
        %v4571 = vmul.f32 %v4525, %v4511
        %v4572 = vmul.f32 %v4529, %v4512
        %v4573 = vmul.f32 %v4533, %v4513
        %v4574 = vmul.f32 %v4537, %v4514
        %v4575 = vmul.f32 %v4541, %v4515
        %v4576 = vmul.f32 %v4545, %v4516
        %v4577 = vmul.f32 %v4549, %v4517
        %v4578 = vmul.f32 %v4553, %v4518
        %v4579 = vmul.f32 %v4557, %v4519
        %v4580 = vmul.f32 %v4561, %v4520
        %v4581 = vmul.f32 %v4565, %v4521
        %v4582 = vmul.f32 %v4569, %v4522
        %v4583 = vadd.f32 %v4498, %v4571
        %v4584 = vadd.f32 %v4499, %v4572
        %v4585 = vadd.f32 %v4500, %v4573
        %v4586 = vadd.f32 %v4501, %v4574
        %v4587 = vadd.f32 %v4502, %v4575
        %v4588 = vadd.f32 %v4503, %v4576
        %v4589 = vadd.f32 %v4504, %v4577
        %v4590 = vadd.f32 %v4505, %v4578
        %v4591 = vadd.f32 %v4506, %v4579
        %v4592 = vadd.f32 %v4507, %v4580
        %v4593 = vadd.f32 %v4508, %v4581
        %v4594 = vadd.f32 %v4509, %v4582
        %s4595 = scalar_lea.vmem %s9, 480
        %v4596 = vld [vmem:[%s4595] sm:$0xff]
        %v4597 = vld [vmem:[%s4595 + $0x8] sm:$0xff]
        %v4598 = vld [vmem:[%s4595 + $0x10] sm:$0xff]
        %v4599 = vld [vmem:[%s4595 + $0x18] sm:$0xff]
        %v4600 = vld [vmem:[%s4595 + $0x20] sm:$0xff]
        %v4601 = vld [vmem:[%s4595 + $0x28] sm:$0xff]
        %v4602 = vld [vmem:[%s4595 + $0x30] sm:$0xff]
        %v4603 = vld [vmem:[%s4595 + $0x38] sm:$0xff]
        %v4604 = vld [vmem:[%s4595 + $0x40] sm:$0xff]
        %v4605 = vld [vmem:[%s4595 + $0x48] sm:$0xff]
        %v4606 = vld [vmem:[%s4595 + $0x50] sm:$0xff]
        %v4607 = vld [vmem:[%s4595 + $0x58] sm:$0xff]
        %4608 = vset.pattern.permute.xlu0 5
        %4609 = vperm.xlu0 %4608, %v4159
        %v4610 = vpop.permute.xlu0 %4609
        %4612 = vset.pattern.permute.xlu0 5
        %4613 = vperm.xlu0 %4612, %v4160
        %v4614 = vpop.permute.xlu0 %4613
        %4616 = vset.pattern.permute.xlu0 5
        %4617 = vperm.xlu0 %4616, %v4161
        %v4618 = vpop.permute.xlu0 %4617
        %4620 = vset.pattern.permute.xlu0 5
        %4621 = vperm.xlu0 %4620, %v4162
        %v4622 = vpop.permute.xlu0 %4621
        %4624 = vset.pattern.permute.xlu0 5
        %4625 = vperm.xlu0 %4624, %v4163
        %v4626 = vpop.permute.xlu0 %4625
        %4628 = vset.pattern.permute.xlu0 5
        %4629 = vperm.xlu0 %4628, %v4164
        %v4630 = vpop.permute.xlu0 %4629
        %4632 = vset.pattern.permute.xlu0 5
        %4633 = vperm.xlu0 %4632, %v4165
        %v4634 = vpop.permute.xlu0 %4633
        %4636 = vset.pattern.permute.xlu0 5
        %4637 = vperm.xlu0 %4636, %v4166
        %v4638 = vpop.permute.xlu0 %4637
        %4640 = vset.pattern.permute.xlu0 5
        %4641 = vperm.xlu0 %4640, %v4167
        %v4642 = vpop.permute.xlu0 %4641
        %4644 = vset.pattern.permute.xlu0 5
        %4645 = vperm.xlu0 %4644, %v4168
        %v4646 = vpop.permute.xlu0 %4645
        %4648 = vset.pattern.permute.xlu0 5
        %4649 = vperm.xlu0 %4648, %v4169
        %v4650 = vpop.permute.xlu0 %4649
        %4652 = vset.pattern.permute.xlu0 5
        %4653 = vperm.xlu0 %4652, %v4170
        %v4654 = vpop.permute.xlu0 %4653
        %v4656 = vmul.f32 %v4610, %v4596
        %v4657 = vmul.f32 %v4614, %v4597
        %v4658 = vmul.f32 %v4618, %v4598
        %v4659 = vmul.f32 %v4622, %v4599
        %v4660 = vmul.f32 %v4626, %v4600
        %v4661 = vmul.f32 %v4630, %v4601
        %v4662 = vmul.f32 %v4634, %v4602
        %v4663 = vmul.f32 %v4638, %v4603
        %v4664 = vmul.f32 %v4642, %v4604
        %v4665 = vmul.f32 %v4646, %v4605
        %v4666 = vmul.f32 %v4650, %v4606
        %v4667 = vmul.f32 %v4654, %v4607
        %v4668 = vadd.f32 %v4583, %v4656
        %v4669 = vadd.f32 %v4584, %v4657
        %v4670 = vadd.f32 %v4585, %v4658
        %v4671 = vadd.f32 %v4586, %v4659
        %v4672 = vadd.f32 %v4587, %v4660
        %v4673 = vadd.f32 %v4588, %v4661
        %v4674 = vadd.f32 %v4589, %v4662
        %v4675 = vadd.f32 %v4590, %v4663
        %v4676 = vadd.f32 %v4591, %v4664
        %v4677 = vadd.f32 %v4592, %v4665
        %v4678 = vadd.f32 %v4593, %v4666
        %v4679 = vadd.f32 %v4594, %v4667
        %v4680 = vld [vmem:[%s10] sm:$0x1]
        %v4682 = vlaneseq
        %v4683 = vshrl.u32 %v4682, 7
        %v4684 = vsub.s32 0, %v4683
        %v4685 = vrot.slane %v4680, %v4684
        %vm4687 = vcmask 785408
        %v4689 = vsel %vm4687, 1.0, 0
        %4691 = vmatprep.subr.mxu0 0.0
        %4692 = vmatpush1.msra.mxu0 %v4668
        %4693 = vmatprep.subr.mxu0 0.0
        %4694 = vmatpush1.msra.mxu0 %v4669
        %4695 = vmatprep.subr.mxu0 0.0
        %4696 = vmatpush1.msra.mxu0 %v4670
        %4697 = vmatprep.subr.mxu0 0.0
        %4698 = vmatpush1.msra.mxu0 %v4671
        %4699 = vmatprep.subr.mxu0 0.0
        %4700 = vmatpush1.msra.mxu0 %v4672
        %4701 = vmatprep.subr.mxu0 0.0
        %4702 = vmatpush1.msra.mxu0 %v4673
        %4703 = vmatprep.subr.mxu0 0.0
        %4704 = vmatpush1.msra.mxu0 %v4674
        %4705 = vmatprep.subr.mxu0 0.0
        %4706 = vmatpush1.msra.mxu0 %v4675
        %4707 = vmatprep.subr.mxu0 0.0
        %4708 = vmatpush1.msra.mxu0 %v4676
        %4709 = vmatprep.subr.mxu0 0.0
        %4710 = vmatpush1.msra.mxu0 %v4677
        %4711 = vmatprep.subr.mxu0 0.0
        %4712 = vmatpush1.msra.mxu0 %v4678
        %4713 = vmatprep.subr.mxu0 0.0
        %4714 = vmatpush1.msra.mxu0 %v4679
        %4715 = vmatprep.subr.mxu0 0.0
        %4716 = vmatpush1.msra.mxu0 0.0
        %4717 = vmatprep.subr.mxu0 0.0
        %4718 = vmatpush1.msra.mxu0 0.0
        %4719 = vmatprep.subr.mxu0 0.0
        %4720 = vmatpush1.msra.mxu0 0.0
        %4721 = vmatprep.subr.mxu0 0.0
        %4722 = vmatpush1.msra.mxu0 0.0
        %4723 = vmatprep.subr.mxu0 0.0
        %4724 = vmatpush1.msra.mxu0 0.0
        %4725 = vmatprep.subr.mxu0 0.0
        %4726 = vmatpush1.msra.mxu0 0.0
        %4727 = vmatprep.subr.mxu0 0.0
        %4728 = vmatpush1.msra.mxu0 0.0
        %4729 = vmatprep.subr.mxu0 0.0
        %4730 = vmatpush1.msra.mxu0 0.0
        %4731 = vmatprep.subr.mxu0 0.0
        %4732 = vmatpush1.msra.mxu0 0.0
        %4733 = vmatprep.subr.mxu0 0.0
        %4734 = vmatpush1.msra.mxu0 0.0
        %4735 = vmatprep.subr.mxu0 0.0
        %4736 = vmatpush1.msra.mxu0 0.0
        %4737 = vmatprep.subr.mxu0 0.0
        %4738 = vmatpush1.msra.mxu0 0.0
        %4739 = vmatprep.subr.mxu0 0.0
        %4740 = vmatpush1.msra.mxu0 0.0
        %4741 = vmatprep.subr.mxu0 0.0
        %4742 = vmatpush1.msra.mxu0 0.0
        %4743 = vmatprep.subr.mxu0 0.0
        %4744 = vmatpush1.msra.mxu0 0.0
        %4745 = vmatprep.subr.mxu0 0.0
        %4746 = vmatpush1.msra.mxu0 0.0
        %4747 = vmatprep.subr.mxu0 0.0
        %4748 = vmatpush1.msra.mxu0 0.0
        %4749 = vmatprep.subr.mxu0 0.0
        %4750 = vmatpush1.msra.mxu0 0.0
        %4751 = vmatprep.subr.mxu0 0.0
        %4752 = vmatpush1.msra.mxu0 0.0
        %4753 = vmatprep.subr.mxu0 0.0
        %4754 = vmatpush1.msra.mxu0 0.0
        %4755 = vmatprep.mubr.f32.mxu0 0.0
        %4756 = vmatmul.mubr.f32.gmra.mrb[0].mxu0 %v4689
        %v4757 = vpop.f32.mrb[0].mxu0
        %v4758 = vadd.f32 %v4685, %v4757
        %v4759 = vpop.f32.mrb[0].mxu0
        %4760 = vdwg.mxu0
        %v4761 = vmax.f32 %v4758, 0.0
        %v4762 = vld [vmem:[%s11] sm:$0xff]
        %v4763 = vld [vmem:[%s11 + $0x8] sm:$0xff]
        %v4764 = vld [vmem:[%s11 + $0x10] sm:$0xff]
        %v4765 = vld [vmem:[%s11 + $0x18] sm:$0xff]
        %v4766 = vld [vmem:[%s11 + $0x20] sm:$0xff]
        %v4767 = vld [vmem:[%s11 + $0x28] sm:$0xff]
        %v4768 = vld [vmem:[%s11 + $0x30] sm:$0xff]
        %v4769 = vld [vmem:[%s11 + $0x38] sm:$0xff]
        %v4770 = vld [vmem:[%s11 + $0x40] sm:$0xff]
        %v4771 = vld [vmem:[%s11 + $0x48] sm:$0xff]
        %v4772 = vld [vmem:[%s11 + $0x50] sm:$0xff]
        %v4773 = vld [vmem:[%s11 + $0x58] sm:$0xff]
        %v4774 = vld [vmem:[%s11 + $0x60] sm:$0xff]
        %v4775 = vld [vmem:[%s11 + $0x68] sm:$0xff]
        %v4776 = vld [vmem:[%s11 + $0x70] sm:$0xff]
        %v4777 = vld [vmem:[%s11 + $0x78] sm:$0xff]
        %v4778 = vld [vmem:[%s12] sm:$0x1]
        %v4780 = vlaneseq
        %v4781 = vshrl.u32 %v4780, 7
        %v4782 = vsub.s32 0, %v4781
        %v4783 = vrot.slane %v4778, %v4782
        %4785 = vmatprep.subr.mxu0 0.0
        %4786 = vmatpush1.msra.mxu0 %v4762
        %4787 = vmatprep.subr.mxu0 0.0
        %4788 = vmatpush1.msra.mxu0 %v4763
        %4789 = vmatprep.subr.mxu0 0.0
        %4790 = vmatpush1.msra.mxu0 %v4764
        %4791 = vmatprep.subr.mxu0 0.0
        %4792 = vmatpush1.msra.mxu0 %v4765
        %4793 = vmatprep.subr.mxu0 0.0
        %4794 = vmatpush1.msra.mxu0 %v4766
        %4795 = vmatprep.subr.mxu0 0.0
        %4796 = vmatpush1.msra.mxu0 %v4767
        %4797 = vmatprep.subr.mxu0 0.0
        %4798 = vmatpush1.msra.mxu0 %v4768
        %4799 = vmatprep.subr.mxu0 0.0
        %4800 = vmatpush1.msra.mxu0 %v4769
        %4801 = vmatprep.subr.mxu0 0.0
        %4802 = vmatpush1.msra.mxu0 %v4770
        %4803 = vmatprep.subr.mxu0 0.0
        %4804 = vmatpush1.msra.mxu0 %v4771
        %4805 = vmatprep.subr.mxu0 0.0
        %4806 = vmatpush1.msra.mxu0 %v4772
        %4807 = vmatprep.subr.mxu0 0.0
        %4808 = vmatpush1.msra.mxu0 %v4773
        %4809 = vmatprep.subr.mxu0 0.0
        %4810 = vmatpush1.msra.mxu0 %v4774
        %4811 = vmatprep.subr.mxu0 0.0
        %4812 = vmatpush1.msra.mxu0 %v4775
        %4813 = vmatprep.subr.mxu0 0.0
        %4814 = vmatpush1.msra.mxu0 %v4776
        %4815 = vmatprep.subr.mxu0 0.0
        %4816 = vmatpush1.msra.mxu0 %v4777
        %4817 = vmatprep.subr.mxu0 0.0
        %4818 = vmatpush1.msra.mxu0 0.0
        %4819 = vmatprep.subr.mxu0 0.0
        %4820 = vmatpush1.msra.mxu0 0.0
        %4821 = vmatprep.subr.mxu0 0.0
        %4822 = vmatpush1.msra.mxu0 0.0
        %4823 = vmatprep.subr.mxu0 0.0
        %4824 = vmatpush1.msra.mxu0 0.0
        %4825 = vmatprep.subr.mxu0 0.0
        %4826 = vmatpush1.msra.mxu0 0.0
        %4827 = vmatprep.subr.mxu0 0.0
        %4828 = vmatpush1.msra.mxu0 0.0
        %4829 = vmatprep.subr.mxu0 0.0
        %4830 = vmatpush1.msra.mxu0 0.0
        %4831 = vmatprep.subr.mxu0 0.0
        %4832 = vmatpush1.msra.mxu0 0.0
        %4833 = vmatprep.subr.mxu0 0.0
        %4834 = vmatpush1.msra.mxu0 0.0
        %4835 = vmatprep.subr.mxu0 0.0
        %4836 = vmatpush1.msra.mxu0 0.0
        %4837 = vmatprep.subr.mxu0 0.0
        %4838 = vmatpush1.msra.mxu0 0.0
        %4839 = vmatprep.subr.mxu0 0.0
        %4840 = vmatpush1.msra.mxu0 0.0
        %4841 = vmatprep.subr.mxu0 0.0
        %4842 = vmatpush1.msra.mxu0 0.0
        %4843 = vmatprep.subr.mxu0 0.0
        %4844 = vmatpush1.msra.mxu0 0.0
        %4845 = vmatprep.subr.mxu0 0.0
        %4846 = vmatpush1.msra.mxu0 0.0
        %4847 = vmatprep.subr.mxu0 0.0
        %4848 = vmatpush1.msra.mxu0 0.0
        %4849 = vmatprep.mubr.f32.mxu0 0.0
        %4850 = vmatmul.mubr.f32.gmra.mrb[0].mxu0 %v4761
        %v4851 = vpop.f32.mrb[0].mxu0
        %v4852 = vadd.f32 %v4783, %v4851
        %v4853 = vpop.f32.mrb[0].mxu0
        %4854 = vdwg.mxu0
        %v4855 = vmax.f32 %v4852, 0.0
        %v4856 = vld [vmem:[%s13] sm:$0xff]
        %v4857 = vld [vmem:[%s13 + $0x8] sm:$0xff]
        %v4858 = vld [vmem:[%s13 + $0x10] sm:$0xff]
        %v4859 = vld [vmem:[%s13 + $0x18] sm:$0xff]
        %v4860 = vld [vmem:[%s13 + $0x20] sm:$0xff]
        %v4861 = vld [vmem:[%s13 + $0x28] sm:$0xff]
        %v4862 = vld [vmem:[%s13 + $0x30] sm:$0xff]
        %v4863 = vld [vmem:[%s13 + $0x38] sm:$0xff]
        %v4864 = vld [vmem:[%s13 + $0x40] sm:$0xff]
        %v4865 = vld [vmem:[%s13 + $0x48] sm:$0xff]
        %v4866 = vld [vmem:[%s13 + $0x50] sm:$0xff]
        %v4867 = vld [vmem:[%s13 + $0x58] sm:$0xff]
        %v4868 = vld [vmem:[%s13 + $0x60] sm:$0xff]
        %v4869 = vld [vmem:[%s13 + $0x68] sm:$0xff]
        %v4870 = vld [vmem:[%s13 + $0x70] sm:$0xff]
        %v4871 = vld [vmem:[%s13 + $0x78] sm:$0xff]
        %v4872 = vld [vmem:[%s14] sm:$0x1]
        %v4874 = vlaneseq
        %v4875 = vshrl.u32 %v4874, 7
        %v4876 = vsub.s32 0, %v4875
        %v4877 = vrot.slane %v4872, %v4876
        %4879 = vmatprep.subr.mxu0 0.0
        %4880 = vmatpush1.msra.mxu0 %v4856
        %4881 = vmatprep.subr.mxu0 0.0
        %4882 = vmatpush1.msra.mxu0 %v4857
        %4883 = vmatprep.subr.mxu0 0.0
        %4884 = vmatpush1.msra.mxu0 %v4858
        %4885 = vmatprep.subr.mxu0 0.0
        %4886 = vmatpush1.msra.mxu0 %v4859
        %4887 = vmatprep.subr.mxu0 0.0
        %4888 = vmatpush1.msra.mxu0 %v4860
        %4889 = vmatprep.subr.mxu0 0.0
        %4890 = vmatpush1.msra.mxu0 %v4861
        %4891 = vmatprep.subr.mxu0 0.0
        %4892 = vmatpush1.msra.mxu0 %v4862
        %4893 = vmatprep.subr.mxu0 0.0
        %4894 = vmatpush1.msra.mxu0 %v4863
        %4895 = vmatprep.subr.mxu0 0.0
        %4896 = vmatpush1.msra.mxu0 %v4864
        %4897 = vmatprep.subr.mxu0 0.0
        %4898 = vmatpush1.msra.mxu0 %v4865
        %4899 = vmatprep.subr.mxu0 0.0
        %4900 = vmatpush1.msra.mxu0 %v4866
        %4901 = vmatprep.subr.mxu0 0.0
        %4902 = vmatpush1.msra.mxu0 %v4867
        %4903 = vmatprep.subr.mxu0 0.0
        %4904 = vmatpush1.msra.mxu0 %v4868
        %4905 = vmatprep.subr.mxu0 0.0
        %4906 = vmatpush1.msra.mxu0 %v4869
        %4907 = vmatprep.subr.mxu0 0.0
        %4908 = vmatpush1.msra.mxu0 %v4870
        %4909 = vmatprep.subr.mxu0 0.0
        %4910 = vmatpush1.msra.mxu0 %v4871
        %4911 = vmatprep.subr.mxu0 0.0
        %4912 = vmatpush1.msra.mxu0 0.0
        %4913 = vmatprep.subr.mxu0 0.0
        %4914 = vmatpush1.msra.mxu0 0.0
        %4915 = vmatprep.subr.mxu0 0.0
        %4916 = vmatpush1.msra.mxu0 0.0
        %4917 = vmatprep.subr.mxu0 0.0
        %4918 = vmatpush1.msra.mxu0 0.0
        %4919 = vmatprep.subr.mxu0 0.0
        %4920 = vmatpush1.msra.mxu0 0.0
        %4921 = vmatprep.subr.mxu0 0.0
        %4922 = vmatpush1.msra.mxu0 0.0
        %4923 = vmatprep.subr.mxu0 0.0
        %4924 = vmatpush1.msra.mxu0 0.0
        %4925 = vmatprep.subr.mxu0 0.0
        %4926 = vmatpush1.msra.mxu0 0.0
        %4927 = vmatprep.subr.mxu0 0.0
        %4928 = vmatpush1.msra.mxu0 0.0
        %4929 = vmatprep.subr.mxu0 0.0
        %4930 = vmatpush1.msra.mxu0 0.0
        %4931 = vmatprep.subr.mxu0 0.0
        %4932 = vmatpush1.msra.mxu0 0.0
        %4933 = vmatprep.subr.mxu0 0.0
        %4934 = vmatpush1.msra.mxu0 0.0
        %4935 = vmatprep.subr.mxu0 0.0
        %4936 = vmatpush1.msra.mxu0 0.0
        %4937 = vmatprep.subr.mxu0 0.0
        %4938 = vmatpush1.msra.mxu0 0.0
        %4939 = vmatprep.subr.mxu0 0.0
        %4940 = vmatpush1.msra.mxu0 0.0
        %4941 = vmatprep.subr.mxu0 0.0
        %4942 = vmatpush1.msra.mxu0 0.0
        %4943 = vmatprep.mubr.f32.mxu0 0.0
        %4944 = vmatmul.mubr.f32.gmra.mrb[0].mxu0 %v4855
        %v4945 = vpop.f32.mrb[0].mxu0
        %v4946 = vadd.f32 %v4877, %v4945
        %v4947 = vpop.f32.mrb[0].mxu0
        %4948 = vdwg.mxu0
        %4949 = vst [vmem:[%s486] sm:$0x1] %v4946
        %s4950 = sand.u32 %s357, 1
        %s4951 = scalar_lea.sflag [#allocation3], %s4950
        %s4952 = sand.u32 %s357, 1
        %s4953 = scalar_lea.vmem [#allocation2], %s4952
        // Predicated region
        $region81: #{net_forward.1} parent=79 // pred_check
          %p4954 = pneg %p367
        $region82: #{net_forward.1} parent=79 // pred_check_branch
          %4956 = sbr.rel (%p4954) target = $region84
        $region83: #{net_forward.1} parent=79 // pred_region
          %s4958 = ssub.s32 16, 16
          %4959 = vsyncadd %s4951, %s4958
          %s4960 = smul.addr %s29, 16
          %s4961 = scalar_lea.hbm %s15, %s4960
          %s4963 = sshll.u32 %s4953, 4
          %s4964 = int_to_ptr.vmem [resolvable:$true] %s4963
          %4966 = dma.vmem_to_hbm [thread:$0]  %s4964, 16, %s4961, %s4951
        $region84: #{net_forward.1} parent=79 // pred_fallthru
          _
      $region80: #{net_forward.1} parent=5 // pred_fallthru
        _
      %p4967 = scmp.le.s32.totalorder 2, %s24
      // Predicated region
      $region85: #{net_forward.1} parent=5 // pred_check
        %p4968 = pneg %p4967
      $region86: #{net_forward.1} parent=5 // pred_check_branch
        %4970 = sbr.rel (%p4968) target = $region88
      $region87: #{net_forward.1} parent=5 // pred_region
        %s4971 = ssub.s32 %s24, 2
        // Predicated region
        $region89: #{net_forward.1} parent=87 // pred_check
          %p4972 = pneg %p373
        $region90: #{net_forward.1} parent=87 // pred_check_branch
          %4974 = sbr.rel (%p4972) target = $region92
        $region91: #{net_forward.1} parent=87 // pred_region
          %s4975 = sand.u32 %s358, 1
          %s4976 = scalar_lea.sflag [#allocation3], %s4975
          %s4977 = sand.u32 %s358, 1
          %s4978 = scalar_lea.vmem [#allocation2], %s4977
          %4979 = dma.done %s4976, 16
        $region92: #{net_forward.1} parent=87 // pred_fallthru
          _
      $region88: #{net_forward.1} parent=5 // pred_fallthru
        _
    $region6: #{net_forward.1} parent=1 // loop_footer
      %s28 = sadd.s32 1, %s24
    $region7: #{net_forward.1} parent=1 // loop_footer_branch
      %23 = sbr.rel target = $region3
    $region8: #{net_forward.1} parent=1 // loop_exit
      _
    %4980 = vsyncpa [#allocation3], 1
    %s4981 = scalar_lea.sflag [#allocation3], 1
    %4982 = vsyncpa %s4981, 1

</llo_original>
